<compile_context>
chip_gen: v7x
topology: tpu7x:2x2x1
jax: 0.10.0
libtpu: 0.0.40
codegen_flags: <defaults>
</compile_context>

<pallas_src>
import jax
import jax.numpy as jnp
from jax.experimental import pallas as pl
from jax.experimental.pallas import tpu as pltpu

MATMUL_DTYPE = jnp.bfloat16   # streamed weight / MXU-input dtype (f32 accumulate)


# ----------------------------- small math helpers -----------------------------

def _silu(x):
    return x * jax.nn.sigmoid(x)


def _softplus(x):
    return jnp.maximum(x, 0.0) + jnp.log(1.0 + jnp.exp(-jnp.abs(x)))


def _rmsnorm(x, w, eps=1e-5):
    return x * jax.lax.rsqrt(jnp.mean(x * x, axis=-1, keepdims=True) + eps) * w


# ----------------------------- Pallas kernels ---------------------------------

def mamba_stack_kernel(x_ref, rmsw_ref, w_inx_ref, w_inr_ref, convw_ref,
                       convb_ref, w_dtr_ref, w_dt_ref, b_dt_ref, w_b_ref,
                       w_c_ref, a_t_ref, d_ref, w_out_ref,
                       out_ref,
                       da_ref, dbu_ref, c_ref, y_ref, h_ref, xzext_ref):
    """grid = (n_layer, n_chunks). One step = one layer x one sequence chunk.

    out_ref (constant block index) holds the full residual stream, resident in
    VMEM for the entire grid.  h_ref / xzext_ref carry the scan state and the
    causal-conv tail across chunks of the same layer (reset at ci == 0).
    """
    li = pl.program_id(0)                              # layer index  ("arbitrary")
    ci = pl.program_id(1)                              # chunk index  ("arbitrary")

    b, T, d_model = x_ref.shape
    d_inner = w_out_ref.shape[1]
    n = a_t_ref.shape[1]
    K = convw_ref.shape[1]
    bT = b * T
    start = pl.multiple_of(ci * T, T)

    # Residual chunk: embedding (x_ref) at layer 0, accumulated stream otherwise.
    xres = jnp.where(li == 0, x_ref[...], out_ref[:, pl.ds(start, T), :])
    x2 = xres.reshape(bT, d_model)

    xn = _rmsnorm(x2, rmsw_ref[0])                     # (bT, d_model) f32
    xn_b = xn.astype(MATMUL_DTYPE)

    # in_proj split into two lane-dense bf16 matmuls (f32 accumulate).
    xz2 = jnp.dot(xn_b, w_inx_ref[0], preferred_element_type=jnp.float32)
    res2 = jnp.dot(xn_b, w_inr_ref[0], preferred_element_type=jnp.float32)
    xz = xz2.reshape(b, T, d_inner)

    # Causal depthwise conv; (K-1)-row tail carried across chunks in scratch.
    prev_tail = xzext_ref[:, T:T + K - 1, :]           # last K-1 rows of prev chunk
    xzext_ref[:, :K - 1, :] = jnp.where(ci > 0, prev_tail, 0.0)
    xzext_ref[:, K - 1:, :] = xz
    cw = convw_ref[0]                                  # (K, d_inner) f32
    acc = jnp.zeros((b, T, d_inner), jnp.float32) + convb_ref[0]
    for k in range(K):                                 # K is tiny & static
        acc = acc + xzext_ref[:, k:k + T, :] * cw[k]
    xc = _silu(acc)                                    # (b, T, d_inner)
    xc2 = xc.reshape(bT, d_inner)
    xc_b = xc2.astype(MATMUL_DTYPE)

    # x_proj: delta kept LOW-RANK (dt_rank zero-padded to 128 lanes -> exact),
    # plus the B / C projections.
    dtl = jnp.dot(xc_b, w_dtr_ref[0], preferred_element_type=jnp.float32)
    delta2 = _softplus(jnp.dot(dtl.astype(MATMUL_DTYPE), w_dt_ref[0],
                               preferred_element_type=jnp.float32) + b_dt_ref[0])
    B2 = jnp.dot(xc_b, w_b_ref[0], preferred_element_type=jnp.float32)
    C2 = jnp.dot(xc_b, w_c_ref[0], preferred_element_type=jnp.float32)

    delta = delta2.reshape(b, T, d_inner)
    Bm = B2.reshape(b, T, n)
    A_T = a_t_ref[0]                                   # (n, d_inner) == (-exp(A_log)).T

    # Hoisted scan inputs: exp()/dBu vectorized over the chunk (off the serial
    # chain); only the current chunk's (b, T, n, d_inner) is materialized.
    da_ref[...] = jnp.exp(delta[:, :, None, :] * A_T[None, None, :, :])
    dbu_ref[...] = (delta * xc)[:, :, None, :] * Bm[:, :, :, None]
    c_ref[...] = C2.reshape(b, T, n)

    # Serial recurrence over the chunk; h carried across chunks via h_ref.
    h0 = jnp.where(ci > 0, h_ref[...], 0.0)            # (b, n, d_inner) f32

    def scan_body(t, h):
        da_t = da_ref[:, pl.ds(t, 1), :, :][:, 0]      # (b, n, d_inner)
        dbu_t = dbu_ref[:, pl.ds(t, 1), :, :][:, 0]
        c_t = c_ref[:, pl.ds(t, 1), :][:, 0]           # (b, n)
        h = da_t * h + dbu_t
        y_ref[:, pl.ds(t, 1), :] = jnp.sum(h * c_t[:, :, None], axis=1)[:, None, :]
        return h

    h_ref[...] = jax.lax.fori_loop(0, T, scan_body, h0,
                                   unroll=True if T <= 16 else 8)

    # D skip-connection, gate, out_proj, residual add.
    y = y_ref[...] + xc * d_ref[0]                     # (b, T, d_inner) f32
    yg = y * _silu(res2.reshape(b, T, d_inner))
    out2 = jnp.dot(yg.reshape(bT, d_inner).astype(MATMUL_DTYPE), w_out_ref[0],
                   preferred_element_type=jnp.float32)
    out_ref[:, pl.ds(start, T), :] = out2.reshape(b, T, d_model) + xres


def head_kernel(x_ref, rmsw_ref, w_head_ref, out_ref):
    """Final RMSNorm + tied lm_head matmul for one (batch, vocab-tile) block."""
    x = x_ref[0].astype(jnp.float32)                   # (l, d_model)
    xn = _rmsnorm(x, rmsw_ref[...])
    out_ref[0] = jnp.dot(xn.astype(MATMUL_DTYPE), w_head_ref[...],
                         preferred_element_type=jnp.float32)


# ----------------------------- wrappers ----------------------------------------

_STACK_ORDER = ('rms_w', 'W_in_x', 'W_in_r', 'conv_w', 'conv_b', 'W_dtr', 'W_dt',
                'b_dt', 'W_B', 'W_C', 'A_T', 'D', 'W_out')


def _stack_layer_params(layers, matmul_dtype=MATMUL_DTYPE):
    """Stack per-layer params along a leading layer axis (pure JAX glue).

    MXU-streamed weights are stored in bf16 (halves per-layer weight DMA and
    doubles MXU throughput); VPU-path params (conv, bias, A, D, rms) stay f32.
    """
    d_inner = layers[0]['W_out'].shape[0]
    dt_rank = layers[0]['W_dt'].shape[0]
    n = layers[0]['A_log'].shape[1]
    dtr_pad = ((dt_rank + 127) // 128) * 128           # lane-dense low-rank dim

    def st(fn):
        return jnp.stack([fn(p) for p in layers], axis=0)

    def stw(fn):                                       # streamed MXU weights
        return st(fn).astype(matmul_dtype)

    return dict(
        rms_w=st(lambda p: p['rms_w']),                                    # (L,1,dm)
        W_in_x=stw(lambda p: p['W_in'][:, :d_inner]),                      # (L,dm,di)
        W_in_r=stw(lambda p: p['W_in'][:, d_inner:]),                      # (L,dm,di)
        conv_w=st(lambda p: p['conv_w']),                                  # (L,K,di)
        conv_b=st(lambda p: p['conv_b']),                                  # (L,1,di)
        W_dtr=stw(lambda p: jnp.pad(p['W_x'][:, :dt_rank],
                                    ((0, 0), (0, dtr_pad - dt_rank)))),    # (L,di,rp)
        W_dt=stw(lambda p: jnp.pad(p['W_dt'],
                                   ((0, dtr_pad - dt_rank), (0, 0)))),     # (L,rp,di)
        b_dt=st(lambda p: p['b_dt']),                                      # (L,1,di)
        W_B=stw(lambda p: p['W_x'][:, dt_rank:dt_rank + n]),               # (L,di,n)
        W_C=stw(lambda p: p['W_x'][:, dt_rank + n:dt_rank + 2 * n]),       # (L,di,n)
        A_T=st(lambda p: (-jnp.exp(p['A_log'])).T),                        # (L,n,di)
        D=st(lambda p: p['D']),                                            # (L,1,di)
        W_out=stw(lambda p: p['W_out']),                                   # (L,di,dm)
    )


def run_mamba_stack(x, stacked, n_layer, seq_tile=None):
    b, l, d_model = x.shape
    d_inner = stacked['W_out'].shape[1]
    n = stacked['A_T'].shape[1]
    K = stacked['conv_w'].shape[1]

    T = seq_tile if seq_tile is not None else min(l, 256)
    assert l % T == 0, "seq_tile must divide l"
    assert (T % 8 == 0) or (T == l), "seq_tile must be sublane-aligned"
    assert T >= K - 1, "seq_tile must cover the conv tail"
    n_chunks = l // T

    ws = [stacked[k] for k in _STACK_ORDER]
    in_specs = [pl.BlockSpec((b, T, d_model), lambda li, ci: (0, ci, 0))]
    in_specs += [pl.BlockSpec((1,) + w.shape[1:], lambda li, ci: (li, 0, 0))
                 for w in ws]

    return pl.pallas_call(
        mamba_stack_kernel,
        out_shape=jax.ShapeDtypeStruct((b, l, d_model), jnp.float32),
        grid=(n_layer, n_chunks),
        in_specs=in_specs,
        # Constant block index -> residual stream stays resident in VMEM.
        out_specs=pl.BlockSpec((b, l, d_model), lambda li, ci: (0, 0, 0)),
        scratch_shapes=[
            pltpu.VMEM((b, T, n, d_inner), jnp.float32),   # dA   (per chunk)
            pltpu.VMEM((b, T, n, d_inner), jnp.float32),   # dBu  (per chunk)
            pltpu.VMEM((b, T, n), jnp.float32),            # C    (per chunk)
            pltpu.VMEM((b, T, d_inner), jnp.float32),      # y    (per chunk)
            pltpu.VMEM((b, n, d_inner), jnp.float32),      # h carry
            pltpu.VMEM((b, T + K - 1, d_inner), jnp.float32),  # conv-tail carry
        ],
        compiler_params=pltpu.CompilerParams(
            dimension_semantics=("arbitrary", "arbitrary"),
            vmem_limit_bytes=48 * 1024 * 1024),
    )(x, *ws)


def run_head(x, rms_w, w_head, vocab_tile=512):
    """RMSNorm + tied lm_head, tiled over (batch, vocab) with both axes parallel."""
    b, l, d_model = x.shape
    vocab = w_head.shape[1]
    TV = vocab_tile if vocab >= vocab_tile else 128
    vocab_pad = ((vocab + TV - 1) // TV) * TV
    w_pad = jnp.pad(w_head, ((0, 0), (0, vocab_pad - vocab)))

    out = pl.pallas_call(
        head_kernel,
        out_shape=jax.ShapeDtypeStruct((b, l, vocab_pad), jnp.float32),
        grid=(b, vocab_pad // TV),
        in_specs=[pl.BlockSpec((1, l, d_model), lambda bi, vi: (bi, 0, 0)),
                  pl.BlockSpec(rms_w.shape, lambda bi, vi: (0, 0)),
                  pl.BlockSpec((d_model, TV), lambda bi, vi: (0, vi))],
        out_specs=pl.BlockSpec((1, l, TV), lambda bi, vi: (bi, 0, vi)),
        compiler_params=pltpu.CompilerParams(
            dimension_semantics=("parallel", "parallel")),
    )(x, rms_w, w_pad)
    return out[:, :, :vocab]


def mamba_forward(input_ids, params, seq_tile=None):
    # embedding gather kept in plain JAX (glue)
    x = params['embedding'][input_ids].astype(jnp.float32)        # (b, l, d_model)
    stacked = _stack_layer_params(params['layers'])
    x = run_mamba_stack(x, stacked, len(params['layers']), seq_tile=seq_tile)
    w_head = params['embedding'].T.astype(MATMUL_DTYPE)           # tied lm_head
    return run_head(x, params['norm_f_w'], w_head)


# ----------------------------- deterministic params ----------------------------

def init_params(key, args):
    d_model = args['d_model']
    d_inner = args['d_inner']
    n = args['d_state']
    dt_rank = args['dt_rank']
    K = args['d_conv']
    vocab = args['vocab_size']

    keys = jax.random.split(key, 1 + args['n_layer'])
    emb = 0.02 * jax.random.normal(keys[0], (vocab, d_model), jnp.float32)
    layers = []
    for li in range(args['n_layer']):
        lk = jax.random.split(keys[1 + li], 7)
        layers.append(dict(
            rms_w=jnp.ones((1, d_model), jnp.float32),
            W_in=0.05 * jax.random.normal(lk[0], (d_model, 2 * d_inner), jnp.float32),
            conv_w=0.2 * jax.random.normal(lk[1], (K, d_inner), jnp.float32),
            conv_b=0.1 * jax.random.normal(lk[2], (1, d_inner), jnp.float32),
            W_x=0.05 * jax.random.normal(lk[3], (d_inner, dt_rank + 2 * n), jnp.float32),
            W_dt=0.1 * jax.random.normal(lk[4], (dt_rank, d_inner), jnp.float32),
            b_dt=0.1 * jax.random.normal(lk[5], (1, d_inner), jnp.float32),
            A_log=jnp.tile(jnp.log(jnp.arange(1, n + 1, dtype=jnp.float32)), (d_inner, 1)),
            D=jnp.ones((1, d_inner), jnp.float32),
            W_out=0.05 * jax.random.normal(lk[6], (d_inner, d_model), jnp.float32),
        ))
    return dict(embedding=emb, layers=layers,
                norm_f_w=jnp.ones((1, d_model), jnp.float32))


# ----------------------------- JAX references -----------------------------------
# _ref_forward_matched mirrors the kernel's mixed-precision policy (bf16 MXU
# inputs, f32 accumulate / VPU math) -> tight comparison validates the Pallas
# mechanics (chunking, conv-tail / h carries, BlockSpecs).
# _ref_forward_f32 is the faithful f32 module reference (documentation / sanity).

def _mdot(a, w, mm_dtype):
    return jnp.dot(a.astype(mm_dtype), w.astype(mm_dtype),
                   preferred_element_type=jnp.float32)


def _ref_layer(x, p, mm_dtype=None):
    d_inner = p['W_out'].shape[0]
    dt_rank = p['W_dt'].shape[0]
    n = p['A_log'].shape[1]
    K = p['conv_w'].shape[0]
    b, l, _ = x.shape
    if mm_dtype is None:
        dot = lambda a, w: a @ w
    else:
        dot = lambda a, w: _mdot(a, w, mm_dtype)

    xn = _rmsnorm(x, p['rms_w'][0])
    xz = dot(xn, p['W_in'][:, :d_inner])
    res = dot(xn, p['W_in'][:, d_inner:])
    xpad = jnp.pad(xz, ((0, 0), (K - 1, 0), (0, 0)))
    conv = jnp.broadcast_to(p['conv_b'][0], xz.shape)
    for k in range(K):
        conv = conv + xpad[:, k:k + l, :] * p['conv_w'][k]
    xc = _silu(conv)
    dtl = dot(xc, p['W_x'][:, :dt_rank])
    delta = _softplus(dot(dtl, p['W_dt']) + p['b_dt'][0])
    B = dot(xc, p['W_x'][:, dt_rank:dt_rank + n])
    C = dot(xc, p['W_x'][:, dt_rank + n:dt_rank + 2 * n])
    A = -jnp.exp(p['A_log'])
    dA = jnp.exp(delta[..., None] * A)                          # (b,l,d,n)
    dBu = delta[..., None] * B[:, :, None, :] * xc[..., None]   # (b,l,d,n)
    h = jnp.zeros((b, d_inner, n), jnp.float32)
    ys = []
    for t in range(l):
        h = dA[:, t] * h + dBu[:, t]
        ys.append(jnp.sum(h * C[:, t, None, :], axis=-1))
    y = jnp.stack(ys, axis=1) + xc * p['D'][0]
    return dot(y * _silu(res), p['W_out']) + x


def _ref_forward(input_ids, params, mm_dtype=None):
    x = params['embedding'][input_ids].astype(jnp.float32)
    for lp in params['layers']:
        x = _ref_layer(x, lp, mm_dtype)
    xn = _rmsnorm(x, params['norm_f_w'][0])
    if mm_dtype is None:
        return xn @ params['embedding'].T
    return _mdot(xn, params['embedding'].T, mm_dtype)


def _ref_forward_matched(input_ids, params):
    return _ref_forward(input_ids, params, mm_dtype=MATMUL_DTYPE)


def _ref_forward_f32(input_ids, params):
    return _ref_forward(input_ids, params, mm_dtype=None)


# ----------------------------- main ---------------------------------------------

if __name__ == "__main__":
    # ModelArgs(d_model=32, n_layer=2, vocab_size=40) -> d_inner=64, dt_rank=2
    args = dict(d_model=32, n_layer=2, vocab_size=40, d_state=16,
                expand=2, dt_rank=2, d_conv=4)
    args['d_inner'] = args['expand'] * args['d_model']

    key = jax.random.PRNGKey(0)
    pkey, ikey = jax.random.split(key)
    params = init_params(pkey, args)

    b, l = 2, 16
    input_ids = jax.random.randint(ikey, (b, l), 0, args['vocab_size'], dtype=jnp.int32)

    # seq_tile=8 -> 2 chunks: exercises the cross-chunk h / conv-tail carries.
    logits = jax.block_until_ready(mamba_forward(input_ids, params, seq_tile=8))

    ref_matched = jax.block_until_ready(_ref_forward_matched(input_ids, params))
    ref_f32 = jax.block_until_ready(_ref_forward_f32(input_ids, params))

    assert logits.shape == (b, l, args['vocab_size'])
    # Tight check vs the precision-matched reference (validates Pallas mechanics).
    assert bool(jnp.allclose(logits, ref_matched, rtol=2e-2, atol=2e-3)), \
        float(jnp.max(jnp.abs(logits - ref_matched)))
    # Loose check vs the f32 module reference (bounds the bf16 weight-stream error).
    assert bool(jnp.allclose(logits, ref_f32, rtol=0.25, atol=0.05)), \
        float(jnp.max(jnp.abs(logits - ref_f32)))
    print("KERNEL_OK")
</pallas_src>

<mosaic_0001>
module attributes {stable_mosaic.version = 11 : i64} {
  func.func @mamba_stack_kernel(%arg0: i32, %arg1: i32, %arg2: memref<2x8x32xf32, #tpu.memory_space<vmem>>, %arg3: memref<1x1x32xf32, #tpu.memory_space<vmem>>, %arg4: memref<1x32x64xbf16, #tpu.memory_space<vmem>>, %arg5: memref<1x32x64xbf16, #tpu.memory_space<vmem>>, %arg6: memref<1x4x64xf32, #tpu.memory_space<vmem>>, %arg7: memref<1x1x64xf32, #tpu.memory_space<vmem>>, %arg8: memref<1x64x128xbf16, #tpu.memory_space<vmem>>, %arg9: memref<1x128x64xbf16, #tpu.memory_space<vmem>>, %arg10: memref<1x1x64xf32, #tpu.memory_space<vmem>>, %arg11: memref<1x64x16xbf16, #tpu.memory_space<vmem>>, %arg12: memref<1x64x16xbf16, #tpu.memory_space<vmem>>, %arg13: memref<1x16x64xf32, #tpu.memory_space<vmem>>, %arg14: memref<1x1x64xf32, #tpu.memory_space<vmem>>, %arg15: memref<1x64x32xbf16, #tpu.memory_space<vmem>>, %arg16: memref<2x16x32xf32, #tpu.memory_space<vmem>>, %arg17: memref<2x8x16x64xf32, #tpu.memory_space<vmem>>, %arg18: memref<2x8x16x64xf32, #tpu.memory_space<vmem>>, %arg19: memref<2x8x16xf32, #tpu.memory_space<vmem>>, %arg20: memref<2x8x64xf32, #tpu.memory_space<vmem>>, %arg21: memref<2x16x64xf32, #tpu.memory_space<vmem>>, %arg22: memref<2x11x64xf32, #tpu.memory_space<vmem>>) attributes {dimension_semantics = [#tpu.dimension_semantics<arbitrary>, #tpu.dimension_semantics<arbitrary>], iteration_bounds = array<i64: 2, 2>, scalar_prefetch = 0 : i64, scratch_operands = 6 : i64, tpu.core_type = #tpu.core_type<tc>, window_params = [{transform_indices = @transform_0, window_bounds = array<i64: 2, 8, 32>}, {transform_indices = @transform_1, window_bounds = array<i64: 1, 1, 32>}, {transform_indices = @transform_2, window_bounds = array<i64: 1, 32, 64>}, {transform_indices = @transform_3, window_bounds = array<i64: 1, 32, 64>}, {transform_indices = @transform_4, window_bounds = array<i64: 1, 4, 64>}, {transform_indices = @transform_5, window_bounds = array<i64: 1, 1, 64>}, {transform_indices = @transform_6, window_bounds = array<i64: 1, 64, 128>}, {transform_indices = @transform_7, window_bounds = array<i64: 1, 128, 64>}, {transform_indices = @transform_8, window_bounds = array<i64: 1, 1, 64>}, {transform_indices = @transform_9, window_bounds = array<i64: 1, 64, 16>}, {transform_indices = @transform_10, window_bounds = array<i64: 1, 64, 16>}, {transform_indices = @transform_11, window_bounds = array<i64: 1, 16, 64>}, {transform_indices = @transform_12, window_bounds = array<i64: 1, 1, 64>}, {transform_indices = @transform_13, window_bounds = array<i64: 1, 64, 32>}, {pipeline_mode = #tpu.pipeline_mode<synchronous>, transform_indices = @transform_14, window_bounds = array<i64: 2, 16, 32>}]} {
    %c8_i32 = arith.constant 8 : i32
    %0 = arith.muli %arg1, %c8_i32 : i32
    %1 = tpu.assume_multiple %0, 8 : i32
    %c0_i32 = arith.constant 0 : i32
    %2 = arith.cmpi eq, %arg0, %c0_i32 : i32
    %c0 = arith.constant 0 : index
    %c0_0 = arith.constant 0 : index
    %c0_1 = arith.constant 0 : index
    %3 = vector.load %arg2[%c0, %c0_0, %c0_1] : memref<2x8x32xf32, #tpu.memory_space<vmem>>, vector<2x8x32xf32>
    %c0_2 = arith.constant 0 : index
    %4 = arith.index_cast %1 : i32 to index
    %c0_3 = arith.constant 0 : index
    %5 = vector.load %arg16[%c0_2, %4, %c0_3] : memref<2x16x32xf32, #tpu.memory_space<vmem>>, vector<2x8x32xf32>
    %6 = arith.select %2, %3, %5 : vector<2x8x32xf32>
    %7 = vector.shape_cast %6 : vector<2x8x32xf32> to vector<16x32xf32>
    %c0_4 = arith.constant 0 : index
    %c0_5 = arith.constant 0 : index
    %c0_6 = arith.constant 0 : index
    %8 = vector.load %arg3[%c0_4, %c0_5, %c0_6] : memref<1x1x32xf32, #tpu.memory_space<vmem>>, vector<1x1x32xf32>
    %9 = vector.shape_cast %8 : vector<1x1x32xf32> to vector<1x32xf32>
    %10 = arith.mulf %7, %7 : vector<16x32xf32>
    %cst = arith.constant dense<0.000000e+00> : vector<16xf32>
    %11 = vector.multi_reduction <add>, %10, %cst [1] : vector<16x32xf32> to vector<16xf32>
    %12 = vector.shape_cast %11 : vector<16xf32> to vector<16x1xf32>
    %cst_7 = arith.constant 3.200000e+01 : f32
    %13 = vector.broadcast %cst_7 : f32 to vector<16x1xf32>
    %14 = arith.divf %12, %13 : vector<16x1xf32>
    %cst_8 = arith.constant 9.99999974E-6 : f32
    %15 = vector.broadcast %cst_8 : f32 to vector<16x1xf32>
    %16 = arith.addf %14, %15 : vector<16x1xf32>
    %17 = math.rsqrt %16 : vector<16x1xf32>
    %18 = vector.broadcast %17 : vector<16x1xf32> to vector<16x32xf32>
    %19 = arith.mulf %7, %18 : vector<16x32xf32>
    %20 = vector.broadcast %9 : vector<1x32xf32> to vector<16x32xf32>
    %21 = arith.mulf %19, %20 : vector<16x32xf32>
    %22 = arith.truncf %21 : vector<16x32xf32> to vector<16x32xbf16>
    %c0_9 = arith.constant 0 : index
    %c0_10 = arith.constant 0 : index
    %c0_11 = arith.constant 0 : index
    %23 = vector.load %arg4[%c0_9, %c0_10, %c0_11] : memref<1x32x64xbf16, #tpu.memory_space<vmem>>, vector<1x32x64xbf16>
    %24 = vector.shape_cast %23 : vector<1x32x64xbf16> to vector<32x64xbf16>
    %cst_12 = arith.constant dense<0.000000e+00> : vector<16x64xf32>
    %25 = tpu.matmul %22, %24, %cst_12 {dimension_numbers = #tpu.dot_dimension_numbers<[1], [0], [0], [1], [0, 0, 1, 1], [], []>} : vector<16x32xbf16>, vector<32x64xbf16>, vector<16x64xf32> -> vector<16x64xf32>
    %c0_13 = arith.constant 0 : index
    %c0_14 = arith.constant 0 : index
    %c0_15 = arith.constant 0 : index
    %26 = vector.load %arg5[%c0_13, %c0_14, %c0_15] : memref<1x32x64xbf16, #tpu.memory_space<vmem>>, vector<1x32x64xbf16>
    %27 = vector.shape_cast %26 : vector<1x32x64xbf16> to vector<32x64xbf16>
    %cst_16 = arith.constant dense<0.000000e+00> : vector<16x64xf32>
    %28 = tpu.matmul %22, %27, %cst_16 {dimension_numbers = #tpu.dot_dimension_numbers<[1], [0], [0], [1], [0, 0, 1, 1], [], []>} : vector<16x32xbf16>, vector<32x64xbf16>, vector<16x64xf32> -> vector<16x64xf32>
    %29 = vector.shape_cast %25 : vector<16x64xf32> to vector<2x8x64xf32>
    %c0_17 = arith.constant 0 : index
    %c8 = arith.constant 8 : index
    %c0_18 = arith.constant 0 : index
    %30 = vector.load %arg22[%c0_17, %c8, %c0_18] : memref<2x11x64xf32, #tpu.memory_space<vmem>>, vector<2x3x64xf32>
    %c0_i32_19 = arith.constant 0 : i32
    %31 = arith.cmpi sgt, %arg1, %c0_i32_19 : i32
    %cst_20 = arith.constant 0.000000e+00 : f32
    %32 = vector.broadcast %cst_20 : f32 to vector<2x3x64xf32>
    %33 = arith.select %31, %30, %32 : vector<2x3x64xf32>
    %c0_21 = arith.constant 0 : index
    %c0_22 = arith.constant 0 : index
    %c0_23 = arith.constant 0 : index
    %34 = vector.load %arg22[%c0_21, %c0_22, %c0_23] : memref<2x11x64xf32, #tpu.memory_space<vmem>>, vector<2x3x64xf32>
    tpu.vector_store %arg22[%c0_21, %c0_22, %c0_23], %33 {strides = array<i32>} : memref<2x11x64xf32, #tpu.memory_space<vmem>>, vector<2x3x64xf32>,
    %c0_24 = arith.constant 0 : index
    %c3 = arith.constant 3 : index
    %c0_25 = arith.constant 0 : index
    %35 = vector.load %arg22[%c0_24, %c3, %c0_25] : memref<2x11x64xf32, #tpu.memory_space<vmem>>, vector<2x8x64xf32>
    tpu.vector_store %arg22[%c0_24, %c3, %c0_25], %29 {strides = array<i32>} : memref<2x11x64xf32, #tpu.memory_space<vmem>>, vector<2x8x64xf32>,
    %c0_26 = arith.constant 0 : index
    %c0_27 = arith.constant 0 : index
    %c0_28 = arith.constant 0 : index
    %36 = vector.load %arg6[%c0_26, %c0_27, %c0_28] : memref<1x4x64xf32, #tpu.memory_space<vmem>>, vector<1x4x64xf32>
    %37 = vector.shape_cast %36 : vector<1x4x64xf32> to vector<4x64xf32>
    %cst_29 = arith.constant 0.000000e+00 : f32
    %38 = vector.broadcast %cst_29 : f32 to vector<2x8x64xf32>
    %c0_30 = arith.constant 0 : index
    %c0_31 = arith.constant 0 : index
    %c0_32 = arith.constant 0 : index
    %39 = vector.load %arg7[%c0_30, %c0_31, %c0_32] : memref<1x1x64xf32, #tpu.memory_space<vmem>>, vector<1x1x64xf32>
    %40 = vector.shape_cast %39 : vector<1x1x64xf32> to vector<1x64xf32>
    %41 = vector.shape_cast %40 : vector<1x64xf32> to vector<1x1x64xf32>
    %42 = vector.broadcast %41 : vector<1x1x64xf32> to vector<2x8x64xf32>
    %43 = arith.addf %38, %42 : vector<2x8x64xf32>
    %c0_33 = arith.constant 0 : index
    %c0_34 = arith.constant 0 : index
    %c0_35 = arith.constant 0 : index
    %44 = vector.load %arg22[%c0_33, %c0_34, %c0_35] : memref<2x11x64xf32, #tpu.memory_space<vmem>>, vector<2x8x64xf32>
    %45 = vector.extract_strided_slice %37 {offsets = [0, 0], sizes = [1, 64], strides = [1, 1]} : vector<4x64xf32> to vector<1x64xf32>
    %46 = vector.shape_cast %45 : vector<1x64xf32> to vector<64xf32>
    %47 = vector.shape_cast %46 : vector<64xf32> to vector<1x1x64xf32>
    %48 = vector.broadcast %47 : vector<1x1x64xf32> to vector<2x8x64xf32>
    %49 = arith.mulf %44, %48 : vector<2x8x64xf32>
    %50 = arith.addf %43, %49 : vector<2x8x64xf32>
    %c0_36 = arith.constant 0 : index
    %c1 = arith.constant 1 : index
    %c0_37 = arith.constant 0 : index
    %51 = vector.load %arg22[%c0_36, %c1, %c0_37] : memref<2x11x64xf32, #tpu.memory_space<vmem>>, vector<2x8x64xf32>
    %52 = vector.extract_strided_slice %37 {offsets = [1, 0], sizes = [1, 64], strides = [1, 1]} : vector<4x64xf32> to vector<1x64xf32>
    %53 = vector.shape_cast %52 : vector<1x64xf32> to vector<64xf32>
    %54 = vector.shape_cast %53 : vector<64xf32> to vector<1x1x64xf32>
    %55 = vector.broadcast %54 : vector<1x1x64xf32> to vector<2x8x64xf32>
    %56 = arith.mulf %51, %55 : vector<2x8x64xf32>
    %57 = arith.addf %50, %56 : vector<2x8x64xf32>
    %c0_38 = arith.constant 0 : index
    %c2 = arith.constant 2 : index
    %c0_39 = arith.constant 0 : index
    %58 = vector.load %arg22[%c0_38, %c2, %c0_39] : memref<2x11x64xf32, #tpu.memory_space<vmem>>, vector<2x8x64xf32>
    %59 = vector.extract_strided_slice %37 {offsets = [2, 0], sizes = [1, 64], strides = [1, 1]} : vector<4x64xf32> to vector<1x64xf32>
    %60 = vector.shape_cast %59 : vector<1x64xf32> to vector<64xf32>
    %61 = vector.shape_cast %60 : vector<64xf32> to vector<1x1x64xf32>
    %62 = vector.broadcast %61 : vector<1x1x64xf32> to vector<2x8x64xf32>
    %63 = arith.mulf %58, %62 : vector<2x8x64xf32>
    %64 = arith.addf %57, %63 : vector<2x8x64xf32>
    %c0_40 = arith.constant 0 : index
    %c3_41 = arith.constant 3 : index
    %c0_42 = arith.constant 0 : index
    %65 = vector.load %arg22[%c0_40, %c3_41, %c0_42] : memref<2x11x64xf32, #tpu.memory_space<vmem>>, vector<2x8x64xf32>
    %66 = vector.extract_strided_slice %37 {offsets = [3, 0], sizes = [1, 64], strides = [1, 1]} : vector<4x64xf32> to vector<1x64xf32>
    %67 = vector.shape_cast %66 : vector<1x64xf32> to vector<64xf32>
    %68 = vector.shape_cast %67 : vector<64xf32> to vector<1x1x64xf32>
    %69 = vector.broadcast %68 : vector<1x1x64xf32> to vector<2x8x64xf32>
    %70 = arith.mulf %65, %69 : vector<2x8x64xf32>
    %71 = arith.addf %64, %70 : vector<2x8x64xf32>
    %72 = arith.negf %71 : vector<2x8x64xf32>
    %73 = math.exp %72 : vector<2x8x64xf32>
    %cst_43 = arith.constant 1.000000e+00 : f32
    %74 = vector.broadcast %cst_43 : f32 to vector<2x8x64xf32>
    %75 = arith.addf %74, %73 : vector<2x8x64xf32>
    %76 = arith.divf %74, %75 : vector<2x8x64xf32>
    %77 = arith.mulf %71, %76 : vector<2x8x64xf32>
    %78 = vector.shape_cast %77 : vector<2x8x64xf32> to vector<16x64xf32>
    %79 = arith.truncf %78 : vector<16x64xf32> to vector<16x64xbf16>
    %c0_44 = arith.constant 0 : index
    %c0_45 = arith.constant 0 : index
    %c0_46 = arith.constant 0 : index
    %80 = vector.load %arg8[%c0_44, %c0_45, %c0_46] : memref<1x64x128xbf16, #tpu.memory_space<vmem>>, vector<1x64x128xbf16>
    %81 = vector.shape_cast %80 : vector<1x64x128xbf16> to vector<64x128xbf16>
    %cst_47 = arith.constant dense<0.000000e+00> : vector<16x128xf32>
    %82 = tpu.matmul %79, %81, %cst_47 {dimension_numbers = #tpu.dot_dimension_numbers<[1], [0], [0], [1], [0, 0, 1, 1], [], []>} : vector<16x64xbf16>, vector<64x128xbf16>, vector<16x128xf32> -> vector<16x128xf32>
    %83 = arith.truncf %82 : vector<16x128xf32> to vector<16x128xbf16>
    %c0_48 = arith.constant 0 : index
    %c0_49 = arith.constant 0 : index
    %c0_50 = arith.constant 0 : index
    %84 = vector.load %arg9[%c0_48, %c0_49, %c0_50] : memref<1x128x64xbf16, #tpu.memory_space<vmem>>, vector<1x128x64xbf16>
    %85 = vector.shape_cast %84 : vector<1x128x64xbf16> to vector<128x64xbf16>
    %cst_51 = arith.constant dense<0.000000e+00> : vector<16x64xf32>
    %86 = tpu.matmul %83, %85, %cst_51 {dimension_numbers = #tpu.dot_dimension_numbers<[1], [0], [0], [1], [0, 0, 1, 1], [], []>} : vector<16x128xbf16>, vector<128x64xbf16>, vector<16x64xf32> -> vector<16x64xf32>
    %c0_52 = arith.constant 0 : index
    %c0_53 = arith.constant 0 : index
    %c0_54 = arith.constant 0 : index
    %87 = vector.load %arg10[%c0_52, %c0_53, %c0_54] : memref<1x1x64xf32, #tpu.memory_space<vmem>>, vector<1x1x64xf32>
    %88 = vector.shape_cast %87 : vector<1x1x64xf32> to vector<1x64xf32>
    %89 = vector.broadcast %88 : vector<1x64xf32> to vector<16x64xf32>
    %90 = arith.addf %86, %89 : vector<16x64xf32>
    %cst_55 = arith.constant 0.000000e+00 : f32
    %91 = vector.broadcast %cst_55 : f32 to vector<16x64xf32>
    %92 = arith.maximumf %90, %91 : vector<16x64xf32>
    %93 = math.absf %90 : vector<16x64xf32>
    %cst_56 = arith.constant 0.000000e+00 : f32
    %94 = vector.broadcast %cst_56 : f32 to vector<16x64xf32>
    %95 = arith.subf %94, %93 : vector<16x64xf32>
    %96 = math.exp %95 : vector<16x64xf32>
    %cst_57 = arith.constant 1.000000e+00 : f32
    %97 = vector.broadcast %cst_57 : f32 to vector<16x64xf32>
    %98 = arith.addf %97, %96 : vector<16x64xf32>
    %99 = math.log %98 : vector<16x64xf32>
    %100 = arith.addf %92, %99 : vector<16x64xf32>
    %c0_58 = arith.constant 0 : index
    %c0_59 = arith.constant 0 : index
    %c0_60 = arith.constant 0 : index
    %101 = vector.load %arg11[%c0_58, %c0_59, %c0_60] : memref<1x64x16xbf16, #tpu.memory_space<vmem>>, vector<1x64x16xbf16>
    %102 = vector.shape_cast %101 : vector<1x64x16xbf16> to vector<64x16xbf16>
    %cst_61 = arith.constant dense<0.000000e+00> : vector<16x16xf32>
    %103 = tpu.matmul %79, %102, %cst_61 {dimension_numbers = #tpu.dot_dimension_numbers<[1], [0], [0], [1], [0, 0, 1, 1], [], []>} : vector<16x64xbf16>, vector<64x16xbf16>, vector<16x16xf32> -> vector<16x16xf32>
    %c0_62 = arith.constant 0 : index
    %c0_63 = arith.constant 0 : index
    %c0_64 = arith.constant 0 : index
    %104 = vector.load %arg12[%c0_62, %c0_63, %c0_64] : memref<1x64x16xbf16, #tpu.memory_space<vmem>>, vector<1x64x16xbf16>
    %105 = vector.shape_cast %104 : vector<1x64x16xbf16> to vector<64x16xbf16>
    %cst_65 = arith.constant dense<0.000000e+00> : vector<16x16xf32>
    %106 = tpu.matmul %79, %105, %cst_65 {dimension_numbers = #tpu.dot_dimension_numbers<[1], [0], [0], [1], [0, 0, 1, 1], [], []>} : vector<16x64xbf16>, vector<64x16xbf16>, vector<16x16xf32> -> vector<16x16xf32>
    %107 = vector.shape_cast %100 : vector<16x64xf32> to vector<2x8x64xf32>
    %108 = vector.shape_cast %103 : vector<16x16xf32> to vector<2x8x16xf32>
    %c0_66 = arith.constant 0 : index
    %c0_67 = arith.constant 0 : index
    %c0_68 = arith.constant 0 : index
    %109 = vector.load %arg13[%c0_66, %c0_67, %c0_68] : memref<1x16x64xf32, #tpu.memory_space<vmem>>, vector<1x16x64xf32>
    %110 = vector.shape_cast %109 : vector<1x16x64xf32> to vector<16x64xf32>
    %111 = vector.shape_cast %107 : vector<2x8x64xf32> to vector<2x8x1x64xf32>
    %112 = vector.shape_cast %110 : vector<16x64xf32> to vector<1x1x16x64xf32>
    %113 = vector.broadcast %111 : vector<2x8x1x64xf32> to vector<2x8x16x64xf32>
    %114 = vector.broadcast %112 : vector<1x1x16x64xf32> to vector<2x8x16x64xf32>
    %115 = arith.mulf %113, %114 : vector<2x8x16x64xf32>
    %116 = math.exp %115 : vector<2x8x16x64xf32>
    %c0_69 = arith.constant 0 : index
    %c0_70 = arith.constant 0 : index
    %c0_71 = arith.constant 0 : index
    %c0_72 = arith.constant 0 : index
    %117 = vector.load %arg17[%c0_69, %c0_70, %c0_71, %c0_72] : memref<2x8x16x64xf32, #tpu.memory_space<vmem>>, vector<2x8x16x64xf32>
    tpu.vector_store %arg17[%c0_69, %c0_70, %c0_71, %c0_72], %116 {strides = array<i32>} : memref<2x8x16x64xf32, #tpu.memory_space<vmem>>, vector<2x8x16x64xf32>,
    %118 = arith.mulf %107, %77 : vector<2x8x64xf32>
    %119 = vector.shape_cast %118 : vector<2x8x64xf32> to vector<2x8x1x64xf32>
    %120 = vector.shape_cast %108 : vector<2x8x16xf32> to vector<2x8x16x1xf32>
    %121 = vector.broadcast %119 : vector<2x8x1x64xf32> to vector<2x8x16x64xf32>
    %122 = vector.broadcast %120 : vector<2x8x16x1xf32> to vector<2x8x16x64xf32>
    %123 = arith.mulf %121, %122 : vector<2x8x16x64xf32>
    %c0_73 = arith.constant 0 : index
    %c0_74 = arith.constant 0 : index
    %c0_75 = arith.constant 0 : index
    %c0_76 = arith.constant 0 : index
    %124 = vector.load %arg18[%c0_73, %c0_74, %c0_75, %c0_76] : memref<2x8x16x64xf32, #tpu.memory_space<vmem>>, vector<2x8x16x64xf32>
    tpu.vector_store %arg18[%c0_73, %c0_74, %c0_75, %c0_76], %123 {strides = array<i32>} : memref<2x8x16x64xf32, #tpu.memory_space<vmem>>, vector<2x8x16x64xf32>,
    %125 = vector.shape_cast %106 : vector<16x16xf32> to vector<2x8x16xf32>
    %c0_77 = arith.constant 0 : index
    %c0_78 = arith.constant 0 : index
    %c0_79 = arith.constant 0 : index
    %126 = vector.load %arg19[%c0_77, %c0_78, %c0_79] : memref<2x8x16xf32, #tpu.memory_space<vmem>>, vector<2x8x16xf32>
    tpu.vector_store %arg19[%c0_77, %c0_78, %c0_79], %125 {strides = array<i32>} : memref<2x8x16xf32, #tpu.memory_space<vmem>>, vector<2x8x16xf32>,
    %c0_i32_80 = arith.constant 0 : i32
    %127 = arith.cmpi sgt, %arg1, %c0_i32_80 : i32
    %c0_81 = arith.constant 0 : index
    %c0_82 = arith.constant 0 : index
    %c0_83 = arith.constant 0 : index
    %128 = vector.load %arg21[%c0_81, %c0_82, %c0_83] : memref<2x16x64xf32, #tpu.memory_space<vmem>>, vector<2x16x64xf32>
    %cst_84 = arith.constant 0.000000e+00 : f32
    %129 = vector.broadcast %cst_84 : f32 to vector<2x16x64xf32>
    %130 = arith.select %127, %128, %129 : vector<2x16x64xf32>
    %c0_i32_85 = arith.constant 0 : i32
    %c0_86 = arith.constant 0 : index
    %131 = arith.index_cast %c0_i32_85 : i32 to index
    %c0_87 = arith.constant 0 : index
    %c0_88 = arith.constant 0 : index
    %132 = vector.load %arg17[%c0_86, %131, %c0_87, %c0_88] : memref<2x8x16x64xf32, #tpu.memory_space<vmem>>, vector<2x1x16x64xf32>
    %133 = vector.shape_cast %132 : vector<2x1x16x64xf32> to vector<2x16x64xf32>
    %c0_89 = arith.constant 0 : index
    %134 = arith.index_cast %c0_i32_85 : i32 to index
    %c0_90 = arith.constant 0 : index
    %c0_91 = arith.constant 0 : index
    %135 = vector.load %arg18[%c0_89, %134, %c0_90, %c0_91] : memref<2x8x16x64xf32, #tpu.memory_space<vmem>>, vector<2x1x16x64xf32>
    %136 = vector.shape_cast %135 : vector<2x1x16x64xf32> to vector<2x16x64xf32>
    %c0_92 = arith.constant 0 : index
    %137 = arith.index_cast %c0_i32_85 : i32 to index
    %c0_93 = arith.constant 0 : index
    %138 = vector.load %arg19[%c0_92, %137, %c0_93] : memref<2x8x16xf32, #tpu.memory_space<vmem>>, vector<2x1x16xf32>
    %139 = vector.shape_cast %138 : vector<2x1x16xf32> to vector<2x16xf32>
    %140 = arith.mulf %133, %130 : vector<2x16x64xf32>
    %141 = arith.addf %140, %136 : vector<2x16x64xf32>
    %142 = vector.shape_cast %139 : vector<2x16xf32> to vector<2x16x1xf32>
    %143 = vector.broadcast %142 : vector<2x16x1xf32> to vector<2x16x64xf32>
    %144 = arith.mulf %141, %143 : vector<2x16x64xf32>
    %cst_94 = arith.constant dense<0.000000e+00> : vector<2x64xf32>
    %145 = vector.multi_reduction <add>, %144, %cst_94 [1] : vector<2x16x64xf32> to vector<2x64xf32>
    %146 = vector.shape_cast %145 : vector<2x64xf32> to vector<2x1x64xf32>
    %c0_95 = arith.constant 0 : index
    %147 = arith.index_cast %c0_i32_85 : i32 to index
    %c0_96 = arith.constant 0 : index
    %148 = vector.load %arg20[%c0_95, %147, %c0_96] : memref<2x8x64xf32, #tpu.memory_space<vmem>>, vector<2x1x64xf32>
    tpu.vector_store %arg20[%c0_95, %147, %c0_96], %146 {strides = array<i32>} : memref<2x8x64xf32, #tpu.memory_space<vmem>>, vector<2x1x64xf32>,
    %c1_i32 = arith.constant 1 : i32
    %c0_97 = arith.constant 0 : index
    %149 = arith.index_cast %c1_i32 : i32 to index
    %c0_98 = arith.constant 0 : index
    %c0_99 = arith.constant 0 : index
    %150 = vector.load %arg17[%c0_97, %149, %c0_98, %c0_99] : memref<2x8x16x64xf32, #tpu.memory_space<vmem>>, vector<2x1x16x64xf32>
    %151 = vector.shape_cast %150 : vector<2x1x16x64xf32> to vector<2x16x64xf32>
    %c0_100 = arith.constant 0 : index
    %152 = arith.index_cast %c1_i32 : i32 to index
    %c0_101 = arith.constant 0 : index
    %c0_102 = arith.constant 0 : index
    %153 = vector.load %arg18[%c0_100, %152, %c0_101, %c0_102] : memref<2x8x16x64xf32, #tpu.memory_space<vmem>>, vector<2x1x16x64xf32>
    %154 = vector.shape_cast %153 : vector<2x1x16x64xf32> to vector<2x16x64xf32>
    %c0_103 = arith.constant 0 : index
    %155 = arith.index_cast %c1_i32 : i32 to index
    %c0_104 = arith.constant 0 : index
    %156 = vector.load %arg19[%c0_103, %155, %c0_104] : memref<2x8x16xf32, #tpu.memory_space<vmem>>, vector<2x1x16xf32>
    %157 = vector.shape_cast %156 : vector<2x1x16xf32> to vector<2x16xf32>
    %158 = arith.mulf %151, %141 : vector<2x16x64xf32>
    %159 = arith.addf %158, %154 : vector<2x16x64xf32>
    %160 = vector.shape_cast %157 : vector<2x16xf32> to vector<2x16x1xf32>
    %161 = vector.broadcast %160 : vector<2x16x1xf32> to vector<2x16x64xf32>
    %162 = arith.mulf %159, %161 : vector<2x16x64xf32>
    %cst_105 = arith.constant dense<0.000000e+00> : vector<2x64xf32>
    %163 = vector.multi_reduction <add>, %162, %cst_105 [1] : vector<2x16x64xf32> to vector<2x64xf32>
    %164 = vector.shape_cast %163 : vector<2x64xf32> to vector<2x1x64xf32>
    %c0_106 = arith.constant 0 : index
    %165 = arith.index_cast %c1_i32 : i32 to index
    %c0_107 = arith.constant 0 : index
    %166 = vector.load %arg20[%c0_106, %165, %c0_107] : memref<2x8x64xf32, #tpu.memory_space<vmem>>, vector<2x1x64xf32>
    tpu.vector_store %arg20[%c0_106, %165, %c0_107], %164 {strides = array<i32>} : memref<2x8x64xf32, #tpu.memory_space<vmem>>, vector<2x1x64xf32>,
    %c2_i32 = arith.constant 2 : i32
    %c0_108 = arith.constant 0 : index
    %167 = arith.index_cast %c2_i32 : i32 to index
    %c0_109 = arith.constant 0 : index
    %c0_110 = arith.constant 0 : index
    %168 = vector.load %arg17[%c0_108, %167, %c0_109, %c0_110] : memref<2x8x16x64xf32, #tpu.memory_space<vmem>>, vector<2x1x16x64xf32>
    %169 = vector.shape_cast %168 : vector<2x1x16x64xf32> to vector<2x16x64xf32>
    %c0_111 = arith.constant 0 : index
    %170 = arith.index_cast %c2_i32 : i32 to index
    %c0_112 = arith.constant 0 : index
    %c0_113 = arith.constant 0 : index
    %171 = vector.load %arg18[%c0_111, %170, %c0_112, %c0_113] : memref<2x8x16x64xf32, #tpu.memory_space<vmem>>, vector<2x1x16x64xf32>
    %172 = vector.shape_cast %171 : vector<2x1x16x64xf32> to vector<2x16x64xf32>
    %c0_114 = arith.constant 0 : index
    %173 = arith.index_cast %c2_i32 : i32 to index
    %c0_115 = arith.constant 0 : index
    %174 = vector.load %arg19[%c0_114, %173, %c0_115] : memref<2x8x16xf32, #tpu.memory_space<vmem>>, vector<2x1x16xf32>
    %175 = vector.shape_cast %174 : vector<2x1x16xf32> to vector<2x16xf32>
    %176 = arith.mulf %169, %159 : vector<2x16x64xf32>
    %177 = arith.addf %176, %172 : vector<2x16x64xf32>
    %178 = vector.shape_cast %175 : vector<2x16xf32> to vector<2x16x1xf32>
    %179 = vector.broadcast %178 : vector<2x16x1xf32> to vector<2x16x64xf32>
    %180 = arith.mulf %177, %179 : vector<2x16x64xf32>
    %cst_116 = arith.constant dense<0.000000e+00> : vector<2x64xf32>
    %181 = vector.multi_reduction <add>, %180, %cst_116 [1] : vector<2x16x64xf32> to vector<2x64xf32>
    %182 = vector.shape_cast %181 : vector<2x64xf32> to vector<2x1x64xf32>
    %c0_117 = arith.constant 0 : index
    %183 = arith.index_cast %c2_i32 : i32 to index
    %c0_118 = arith.constant 0 : index
    %184 = vector.load %arg20[%c0_117, %183, %c0_118] : memref<2x8x64xf32, #tpu.memory_space<vmem>>, vector<2x1x64xf32>
    tpu.vector_store %arg20[%c0_117, %183, %c0_118], %182 {strides = array<i32>} : memref<2x8x64xf32, #tpu.memory_space<vmem>>, vector<2x1x64xf32>,
    %c3_i32 = arith.constant 3 : i32
    %c0_119 = arith.constant 0 : index
    %185 = arith.index_cast %c3_i32 : i32 to index
    %c0_120 = arith.constant 0 : index
    %c0_121 = arith.constant 0 : index
    %186 = vector.load %arg17[%c0_119, %185, %c0_120, %c0_121] : memref<2x8x16x64xf32, #tpu.memory_space<vmem>>, vector<2x1x16x64xf32>
    %187 = vector.shape_cast %186 : vector<2x1x16x64xf32> to vector<2x16x64xf32>
    %c0_122 = arith.constant 0 : index
    %188 = arith.index_cast %c3_i32 : i32 to index
    %c0_123 = arith.constant 0 : index
    %c0_124 = arith.constant 0 : index
    %189 = vector.load %arg18[%c0_122, %188, %c0_123, %c0_124] : memref<2x8x16x64xf32, #tpu.memory_space<vmem>>, vector<2x1x16x64xf32>
    %190 = vector.shape_cast %189 : vector<2x1x16x64xf32> to vector<2x16x64xf32>
    %c0_125 = arith.constant 0 : index
    %191 = arith.index_cast %c3_i32 : i32 to index
    %c0_126 = arith.constant 0 : index
    %192 = vector.load %arg19[%c0_125, %191, %c0_126] : memref<2x8x16xf32, #tpu.memory_space<vmem>>, vector<2x1x16xf32>
    %193 = vector.shape_cast %192 : vector<2x1x16xf32> to vector<2x16xf32>
    %194 = arith.mulf %187, %177 : vector<2x16x64xf32>
    %195 = arith.addf %194, %190 : vector<2x16x64xf32>
    %196 = vector.shape_cast %193 : vector<2x16xf32> to vector<2x16x1xf32>
    %197 = vector.broadcast %196 : vector<2x16x1xf32> to vector<2x16x64xf32>
    %198 = arith.mulf %195, %197 : vector<2x16x64xf32>
    %cst_127 = arith.constant dense<0.000000e+00> : vector<2x64xf32>
    %199 = vector.multi_reduction <add>, %198, %cst_127 [1] : vector<2x16x64xf32> to vector<2x64xf32>
    %200 = vector.shape_cast %199 : vector<2x64xf32> to vector<2x1x64xf32>
    %c0_128 = arith.constant 0 : index
    %201 = arith.index_cast %c3_i32 : i32 to index
    %c0_129 = arith.constant 0 : index
    %202 = vector.load %arg20[%c0_128, %201, %c0_129] : memref<2x8x64xf32, #tpu.memory_space<vmem>>, vector<2x1x64xf32>
    tpu.vector_store %arg20[%c0_128, %201, %c0_129], %200 {strides = array<i32>} : memref<2x8x64xf32, #tpu.memory_space<vmem>>, vector<2x1x64xf32>,
    %c4_i32 = arith.constant 4 : i32
    %c0_130 = arith.constant 0 : index
    %203 = arith.index_cast %c4_i32 : i32 to index
    %c0_131 = arith.constant 0 : index
    %c0_132 = arith.constant 0 : index
    %204 = vector.load %arg17[%c0_130, %203, %c0_131, %c0_132] : memref<2x8x16x64xf32, #tpu.memory_space<vmem>>, vector<2x1x16x64xf32>
    %205 = vector.shape_cast %204 : vector<2x1x16x64xf32> to vector<2x16x64xf32>
    %c0_133 = arith.constant 0 : index
    %206 = arith.index_cast %c4_i32 : i32 to index
    %c0_134 = arith.constant 0 : index
    %c0_135 = arith.constant 0 : index
    %207 = vector.load %arg18[%c0_133, %206, %c0_134, %c0_135] : memref<2x8x16x64xf32, #tpu.memory_space<vmem>>, vector<2x1x16x64xf32>
    %208 = vector.shape_cast %207 : vector<2x1x16x64xf32> to vector<2x16x64xf32>
    %c0_136 = arith.constant 0 : index
    %209 = arith.index_cast %c4_i32 : i32 to index
    %c0_137 = arith.constant 0 : index
    %210 = vector.load %arg19[%c0_136, %209, %c0_137] : memref<2x8x16xf32, #tpu.memory_space<vmem>>, vector<2x1x16xf32>
    %211 = vector.shape_cast %210 : vector<2x1x16xf32> to vector<2x16xf32>
    %212 = arith.mulf %205, %195 : vector<2x16x64xf32>
    %213 = arith.addf %212, %208 : vector<2x16x64xf32>
    %214 = vector.shape_cast %211 : vector<2x16xf32> to vector<2x16x1xf32>
    %215 = vector.broadcast %214 : vector<2x16x1xf32> to vector<2x16x64xf32>
    %216 = arith.mulf %213, %215 : vector<2x16x64xf32>
    %cst_138 = arith.constant dense<0.000000e+00> : vector<2x64xf32>
    %217 = vector.multi_reduction <add>, %216, %cst_138 [1] : vector<2x16x64xf32> to vector<2x64xf32>
    %218 = vector.shape_cast %217 : vector<2x64xf32> to vector<2x1x64xf32>
    %c0_139 = arith.constant 0 : index
    %219 = arith.index_cast %c4_i32 : i32 to index
    %c0_140 = arith.constant 0 : index
    %220 = vector.load %arg20[%c0_139, %219, %c0_140] : memref<2x8x64xf32, #tpu.memory_space<vmem>>, vector<2x1x64xf32>
    tpu.vector_store %arg20[%c0_139, %219, %c0_140], %218 {strides = array<i32>} : memref<2x8x64xf32, #tpu.memory_space<vmem>>, vector<2x1x64xf32>,
    %c5_i32 = arith.constant 5 : i32
    %c0_141 = arith.constant 0 : index
    %221 = arith.index_cast %c5_i32 : i32 to index
    %c0_142 = arith.constant 0 : index
    %c0_143 = arith.constant 0 : index
    %222 = vector.load %arg17[%c0_141, %221, %c0_142, %c0_143] : memref<2x8x16x64xf32, #tpu.memory_space<vmem>>, vector<2x1x16x64xf32>
    %223 = vector.shape_cast %222 : vector<2x1x16x64xf32> to vector<2x16x64xf32>
    %c0_144 = arith.constant 0 : index
    %224 = arith.index_cast %c5_i32 : i32 to index
    %c0_145 = arith.constant 0 : index
    %c0_146 = arith.constant 0 : index
    %225 = vector.load %arg18[%c0_144, %224, %c0_145, %c0_146] : memref<2x8x16x64xf32, #tpu.memory_space<vmem>>, vector<2x1x16x64xf32>
    %226 = vector.shape_cast %225 : vector<2x1x16x64xf32> to vector<2x16x64xf32>
    %c0_147 = arith.constant 0 : index
    %227 = arith.index_cast %c5_i32 : i32 to index
    %c0_148 = arith.constant 0 : index
    %228 = vector.load %arg19[%c0_147, %227, %c0_148] : memref<2x8x16xf32, #tpu.memory_space<vmem>>, vector<2x1x16xf32>
    %229 = vector.shape_cast %228 : vector<2x1x16xf32> to vector<2x16xf32>
    %230 = arith.mulf %223, %213 : vector<2x16x64xf32>
    %231 = arith.addf %230, %226 : vector<2x16x64xf32>
    %232 = vector.shape_cast %229 : vector<2x16xf32> to vector<2x16x1xf32>
    %233 = vector.broadcast %232 : vector<2x16x1xf32> to vector<2x16x64xf32>
    %234 = arith.mulf %231, %233 : vector<2x16x64xf32>
    %cst_149 = arith.constant dense<0.000000e+00> : vector<2x64xf32>
    %235 = vector.multi_reduction <add>, %234, %cst_149 [1] : vector<2x16x64xf32> to vector<2x64xf32>
    %236 = vector.shape_cast %235 : vector<2x64xf32> to vector<2x1x64xf32>
    %c0_150 = arith.constant 0 : index
    %237 = arith.index_cast %c5_i32 : i32 to index
    %c0_151 = arith.constant 0 : index
    %238 = vector.load %arg20[%c0_150, %237, %c0_151] : memref<2x8x64xf32, #tpu.memory_space<vmem>>, vector<2x1x64xf32>
    tpu.vector_store %arg20[%c0_150, %237, %c0_151], %236 {strides = array<i32>} : memref<2x8x64xf32, #tpu.memory_space<vmem>>, vector<2x1x64xf32>,
    %c6_i32 = arith.constant 6 : i32
    %c0_152 = arith.constant 0 : index
    %239 = arith.index_cast %c6_i32 : i32 to index
    %c0_153 = arith.constant 0 : index
    %c0_154 = arith.constant 0 : index
    %240 = vector.load %arg17[%c0_152, %239, %c0_153, %c0_154] : memref<2x8x16x64xf32, #tpu.memory_space<vmem>>, vector<2x1x16x64xf32>
    %241 = vector.shape_cast %240 : vector<2x1x16x64xf32> to vector<2x16x64xf32>
    %c0_155 = arith.constant 0 : index
    %242 = arith.index_cast %c6_i32 : i32 to index
    %c0_156 = arith.constant 0 : index
    %c0_157 = arith.constant 0 : index
    %243 = vector.load %arg18[%c0_155, %242, %c0_156, %c0_157] : memref<2x8x16x64xf32, #tpu.memory_space<vmem>>, vector<2x1x16x64xf32>
    %244 = vector.shape_cast %243 : vector<2x1x16x64xf32> to vector<2x16x64xf32>
    %c0_158 = arith.constant 0 : index
    %245 = arith.index_cast %c6_i32 : i32 to index
    %c0_159 = arith.constant 0 : index
    %246 = vector.load %arg19[%c0_158, %245, %c0_159] : memref<2x8x16xf32, #tpu.memory_space<vmem>>, vector<2x1x16xf32>
    %247 = vector.shape_cast %246 : vector<2x1x16xf32> to vector<2x16xf32>
    %248 = arith.mulf %241, %231 : vector<2x16x64xf32>
    %249 = arith.addf %248, %244 : vector<2x16x64xf32>
    %250 = vector.shape_cast %247 : vector<2x16xf32> to vector<2x16x1xf32>
    %251 = vector.broadcast %250 : vector<2x16x1xf32> to vector<2x16x64xf32>
    %252 = arith.mulf %249, %251 : vector<2x16x64xf32>
    %cst_160 = arith.constant dense<0.000000e+00> : vector<2x64xf32>
    %253 = vector.multi_reduction <add>, %252, %cst_160 [1] : vector<2x16x64xf32> to vector<2x64xf32>
    %254 = vector.shape_cast %253 : vector<2x64xf32> to vector<2x1x64xf32>
    %c0_161 = arith.constant 0 : index
    %255 = arith.index_cast %c6_i32 : i32 to index
    %c0_162 = arith.constant 0 : index
    %256 = vector.load %arg20[%c0_161, %255, %c0_162] : memref<2x8x64xf32, #tpu.memory_space<vmem>>, vector<2x1x64xf32>
    tpu.vector_store %arg20[%c0_161, %255, %c0_162], %254 {strides = array<i32>} : memref<2x8x64xf32, #tpu.memory_space<vmem>>, vector<2x1x64xf32>,
    %c7_i32 = arith.constant 7 : i32
    %c0_163 = arith.constant 0 : index
    %257 = arith.index_cast %c7_i32 : i32 to index
    %c0_164 = arith.constant 0 : index
    %c0_165 = arith.constant 0 : index
    %258 = vector.load %arg17[%c0_163, %257, %c0_164, %c0_165] : memref<2x8x16x64xf32, #tpu.memory_space<vmem>>, vector<2x1x16x64xf32>
    %259 = vector.shape_cast %258 : vector<2x1x16x64xf32> to vector<2x16x64xf32>
    %c0_166 = arith.constant 0 : index
    %260 = arith.index_cast %c7_i32 : i32 to index
    %c0_167 = arith.constant 0 : index
    %c0_168 = arith.constant 0 : index
    %261 = vector.load %arg18[%c0_166, %260, %c0_167, %c0_168] : memref<2x8x16x64xf32, #tpu.memory_space<vmem>>, vector<2x1x16x64xf32>
    %262 = vector.shape_cast %261 : vector<2x1x16x64xf32> to vector<2x16x64xf32>
    %c0_169 = arith.constant 0 : index
    %263 = arith.index_cast %c7_i32 : i32 to index
    %c0_170 = arith.constant 0 : index
    %264 = vector.load %arg19[%c0_169, %263, %c0_170] : memref<2x8x16xf32, #tpu.memory_space<vmem>>, vector<2x1x16xf32>
    %265 = vector.shape_cast %264 : vector<2x1x16xf32> to vector<2x16xf32>
    %266 = arith.mulf %259, %249 : vector<2x16x64xf32>
    %267 = arith.addf %266, %262 : vector<2x16x64xf32>
    %268 = vector.shape_cast %265 : vector<2x16xf32> to vector<2x16x1xf32>
    %269 = vector.broadcast %268 : vector<2x16x1xf32> to vector<2x16x64xf32>
    %270 = arith.mulf %267, %269 : vector<2x16x64xf32>
    %cst_171 = arith.constant dense<0.000000e+00> : vector<2x64xf32>
    %271 = vector.multi_reduction <add>, %270, %cst_171 [1] : vector<2x16x64xf32> to vector<2x64xf32>
    %272 = vector.shape_cast %271 : vector<2x64xf32> to vector<2x1x64xf32>
    %c0_172 = arith.constant 0 : index
    %273 = arith.index_cast %c7_i32 : i32 to index
    %c0_173 = arith.constant 0 : index
    %274 = vector.load %arg20[%c0_172, %273, %c0_173] : memref<2x8x64xf32, #tpu.memory_space<vmem>>, vector<2x1x64xf32>
    tpu.vector_store %arg20[%c0_172, %273, %c0_173], %272 {strides = array<i32>} : memref<2x8x64xf32, #tpu.memory_space<vmem>>, vector<2x1x64xf32>,
    %c8_i32_174 = arith.constant 8 : i32
    %c0_175 = arith.constant 0 : index
    %c0_176 = arith.constant 0 : index
    %c0_177 = arith.constant 0 : index
    %275 = vector.load %arg21[%c0_175, %c0_176, %c0_177] : memref<2x16x64xf32, #tpu.memory_space<vmem>>, vector<2x16x64xf32>
    tpu.vector_store %arg21[%c0_175, %c0_176, %c0_177], %267 {strides = array<i32>} : memref<2x16x64xf32, #tpu.memory_space<vmem>>, vector<2x16x64xf32>,
    %c0_178 = arith.constant 0 : index
    %c0_179 = arith.constant 0 : index
    %c0_180 = arith.constant 0 : index
    %276 = vector.load %arg20[%c0_178, %c0_179, %c0_180] : memref<2x8x64xf32, #tpu.memory_space<vmem>>, vector<2x8x64xf32>
    %c0_181 = arith.constant 0 : index
    %c0_182 = arith.constant 0 : index
    %c0_183 = arith.constant 0 : index
    %277 = vector.load %arg14[%c0_181, %c0_182, %c0_183] : memref<1x1x64xf32, #tpu.memory_space<vmem>>, vector<1x1x64xf32>
    %278 = vector.shape_cast %277 : vector<1x1x64xf32> to vector<1x64xf32>
    %279 = vector.shape_cast %278 : vector<1x64xf32> to vector<1x1x64xf32>
    %280 = vector.broadcast %279 : vector<1x1x64xf32> to vector<2x8x64xf32>
    %281 = arith.mulf %77, %280 : vector<2x8x64xf32>
    %282 = arith.addf %276, %281 : vector<2x8x64xf32>
    %283 = vector.shape_cast %28 : vector<16x64xf32> to vector<2x8x64xf32>
    %284 = arith.negf %283 : vector<2x8x64xf32>
    %285 = math.exp %284 : vector<2x8x64xf32>
    %cst_184 = arith.constant 1.000000e+00 : f32
    %286 = vector.broadcast %cst_184 : f32 to vector<2x8x64xf32>
    %287 = arith.addf %286, %285 : vector<2x8x64xf32>
    %288 = arith.divf %286, %287 : vector<2x8x64xf32>
    %289 = arith.mulf %283, %288 : vector<2x8x64xf32>
    %290 = arith.mulf %282, %289 : vector<2x8x64xf32>
    %291 = vector.shape_cast %290 : vector<2x8x64xf32> to vector<16x64xf32>
    %292 = arith.truncf %291 : vector<16x64xf32> to vector<16x64xbf16>
    %c0_185 = arith.constant 0 : index
    %c0_186 = arith.constant 0 : index
    %c0_187 = arith.constant 0 : index
    %293 = vector.load %arg15[%c0_185, %c0_186, %c0_187] : memref<1x64x32xbf16, #tpu.memory_space<vmem>>, vector<1x64x32xbf16>
    %294 = vector.shape_cast %293 : vector<1x64x32xbf16> to vector<64x32xbf16>
    %cst_188 = arith.constant dense<0.000000e+00> : vector<16x32xf32>
    %295 = tpu.matmul %292, %294, %cst_188 {dimension_numbers = #tpu.dot_dimension_numbers<[1], [0], [0], [1], [0, 0, 1, 1], [], []>} : vector<16x64xbf16>, vector<64x32xbf16>, vector<16x32xf32> -> vector<16x32xf32>
    %296 = vector.shape_cast %295 : vector<16x32xf32> to vector<2x8x32xf32>
    %297 = arith.addf %296, %6 : vector<2x8x32xf32>
    %c0_189 = arith.constant 0 : index
    %298 = arith.index_cast %1 : i32 to index
    %c0_190 = arith.constant 0 : index
    %299 = vector.load %arg16[%c0_189, %298, %c0_190] : memref<2x16x32xf32, #tpu.memory_space<vmem>>, vector<2x8x32xf32>
    tpu.vector_store %arg16[%c0_189, %298, %c0_190], %297 {strides = array<i32>} : memref<2x16x32xf32, #tpu.memory_space<vmem>>, vector<2x8x32xf32>,
    return
  }
  func.func @transform_0(%arg0: i32, %arg1: i32) -> (i32, i32, i32) {
    %c0_i32 = arith.constant 0 : i32
    %c0_i32_0 = arith.constant 0 : i32
    %c0_i32_1 = arith.constant 0 : i32
    return %c0_i32, %arg1, %c0_i32_0 : i32, i32, i32
  }
  func.func @transform_1(%arg0: i32, %arg1: i32) -> (i32, i32, i32) {
    %c0_i32 = arith.constant 0 : i32
    %c0_i32_0 = arith.constant 0 : i32
    %c0_i32_1 = arith.constant 0 : i32
    return %arg0, %c0_i32, %c0_i32_0 : i32, i32, i32
  }
  func.func @transform_2(%arg0: i32, %arg1: i32) -> (i32, i32, i32) {
    %c0_i32 = arith.constant 0 : i32
    %c0_i32_0 = arith.constant 0 : i32
    %c0_i32_1 = arith.constant 0 : i32
    return %arg0, %c0_i32, %c0_i32_0 : i32, i32, i32
  }
  func.func @transform_3(%arg0: i32, %arg1: i32) -> (i32, i32, i32) {
    %c0_i32 = arith.constant 0 : i32
    %c0_i32_0 = arith.constant 0 : i32
    %c0_i32_1 = arith.constant 0 : i32
    return %arg0, %c0_i32, %c0_i32_0 : i32, i32, i32
  }
  func.func @transform_4(%arg0: i32, %arg1: i32) -> (i32, i32, i32) {
    %c0_i32 = arith.constant 0 : i32
    %c0_i32_0 = arith.constant 0 : i32
    %c0_i32_1 = arith.constant 0 : i32
    return %arg0, %c0_i32, %c0_i32_0 : i32, i32, i32
  }
  func.func @transform_5(%arg0: i32, %arg1: i32) -> (i32, i32, i32) {
    %c0_i32 = arith.constant 0 : i32
    %c0_i32_0 = arith.constant 0 : i32
    %c0_i32_1 = arith.constant 0 : i32
    return %arg0, %c0_i32, %c0_i32_0 : i32, i32, i32
  }
  func.func @transform_6(%arg0: i32, %arg1: i32) -> (i32, i32, i32) {
    %c0_i32 = arith.constant 0 : i32
    %c0_i32_0 = arith.constant 0 : i32
    %c0_i32_1 = arith.constant 0 : i32
    return %arg0, %c0_i32, %c0_i32_0 : i32, i32, i32
  }
  func.func @transform_7(%arg0: i32, %arg1: i32) -> (i32, i32, i32) {
    %c0_i32 = arith.constant 0 : i32
    %c0_i32_0 = arith.constant 0 : i32
    %c0_i32_1 = arith.constant 0 : i32
    return %arg0, %c0_i32, %c0_i32_0 : i32, i32, i32
  }
  func.func @transform_8(%arg0: i32, %arg1: i32) -> (i32, i32, i32) {
    %c0_i32 = arith.constant 0 : i32
    %c0_i32_0 = arith.constant 0 : i32
    %c0_i32_1 = arith.constant 0 : i32
    return %arg0, %c0_i32, %c0_i32_0 : i32, i32, i32
  }
  func.func @transform_9(%arg0: i32, %arg1: i32) -> (i32, i32, i32) {
    %c0_i32 = arith.constant 0 : i32
    %c0_i32_0 = arith.constant 0 : i32
    %c0_i32_1 = arith.constant 0 : i32
    return %arg0, %c0_i32, %c0_i32_0 : i32, i32, i32
  }
  func.func @transform_10(%arg0: i32, %arg1: i32) -> (i32, i32, i32) {
    %c0_i32 = arith.constant 0 : i32
    %c0_i32_0 = arith.constant 0 : i32
    %c0_i32_1 = arith.constant 0 : i32
    return %arg0, %c0_i32, %c0_i32_0 : i32, i32, i32
  }
  func.func @transform_11(%arg0: i32, %arg1: i32) -> (i32, i32, i32) {
    %c0_i32 = arith.constant 0 : i32
    %c0_i32_0 = arith.constant 0 : i32
    %c0_i32_1 = arith.constant 0 : i32
    return %arg0, %c0_i32, %c0_i32_0 : i32, i32, i32
  }
  func.func @transform_12(%arg0: i32, %arg1: i32) -> (i32, i32, i32) {
    %c0_i32 = arith.constant 0 : i32
    %c0_i32_0 = arith.constant 0 : i32
    %c0_i32_1 = arith.constant 0 : i32
    return %arg0, %c0_i32, %c0_i32_0 : i32, i32, i32
  }
  func.func @transform_13(%arg0: i32, %arg1: i32) -> (i32, i32, i32) {
    %c0_i32 = arith.constant 0 : i32
    %c0_i32_0 = arith.constant 0 : i32
    %c0_i32_1 = arith.constant 0 : i32
    return %arg0, %c0_i32, %c0_i32_0 : i32, i32, i32
  }
  func.func @transform_14(%arg0: i32, %arg1: i32) -> (i32, i32, i32) {
    %c0_i32 = arith.constant 0 : i32
    %c0_i32_0 = arith.constant 0 : i32
    %c0_i32_1 = arith.constant 0 : i32
    %c0_i32_2 = arith.constant 0 : i32
    return %c0_i32, %c0_i32_0, %c0_i32_1 : i32, i32, i32
  }
}

</mosaic_0001>

<llo_original>
// kernel: tpu_custom_call.1
$region0: #{tpu_custom_call.1}
  #allocation0 [shape = 'u32[]', space=smem, size = 0x4, offset = 0x4, fixed_abs, tag = 'smem constant byte address 0x4 - core index']
  #allocation1 [shape = 'u32[144,128]{1,0:T(1,128)}', space=vmem, size = 0x12000, scoped, tag = 'internal scratch']
  #allocation2 [shape = 'f32[2,8,16,64]{3,2,1,0:T(8,128)}', space=vmem, size = 0x20000, scoped, tag = 'scratch operand']
  #allocation3 [shape = 'f32[2,8,16,64]{3,2,1,0:T(8,128)}', space=vmem, size = 0x20000, scoped, tag = 'scratch operand']
  #allocation4 [shape = 'f32[2,8,16]{2,1,0:T(8,128)}', space=vmem, size = 0x2000, scoped, tag = 'scratch operand']
  #allocation5 [shape = 'f32[2,8,64]{2,1,0:T(8,128)}', space=vmem, size = 0x2000, scoped, tag = 'scratch operand']
  #allocation6 [shape = 'f32[2,16,64]{2,1,0:T(8,128)}', space=vmem, size = 0x4000, scoped, tag = 'scratch operand']
  #allocation7 [shape = 'f32[2,11,64]{2,1,0:T(8,128)}', space=vmem, size = 0x4000, scoped, tag = 'scratch operand']
  %s0 = inlined_call_operand.vmem [shape: f32[2,16,32], index: 0, kind: input, shape index: {}]
  %s1 = inlined_call_operand.vmem [shape: f32[2,1,32], index: 1, kind: input, shape index: {}]
  %s2 = inlined_call_operand.vmem [shape: bf16[2,32,64], index: 2, kind: input, shape index: {}]
  %s3 = inlined_call_operand.vmem [shape: bf16[2,32,64], index: 3, kind: input, shape index: {}]
  %s4 = inlined_call_operand.vmem [shape: f32[2,4,64], index: 4, kind: input, shape index: {}]
  %s5 = inlined_call_operand.vmem [shape: f32[2,1,64], index: 5, kind: input, shape index: {}]
  %s6 = inlined_call_operand.vmem [shape: bf16[2,64,128], index: 6, kind: input, shape index: {}]
  %s7 = inlined_call_operand.vmem [shape: bf16[2,128,64], index: 7, kind: input, shape index: {}]
  %s8 = inlined_call_operand.vmem [shape: f32[2,1,64], index: 8, kind: input, shape index: {}]
  %s9 = inlined_call_operand.vmem [shape: bf16[2,64,16], index: 9, kind: input, shape index: {}]
  %s10 = inlined_call_operand.vmem [shape: bf16[2,64,16], index: 10, kind: input, shape index: {}]
  %s11 = inlined_call_operand.vmem [shape: f32[2,16,64], index: 11, kind: input, shape index: {}]
  %s12 = inlined_call_operand.vmem [shape: f32[2,1,64], index: 12, kind: input, shape index: {}]
  %s13 = inlined_call_operand.vmem [shape: bf16[2,64,32], index: 13, kind: input, shape index: {}]
  %s14 = inlined_call_operand.hbm [shape: f32[2,16,32], index: 14, kind: output, shape index: {}]
  %s15 = sld [smem:[#allocation0]]
  $region127: #{tpu_custom_call.1} parent=0
    _
  %s17 = ssub.s32 1, %s15
  %s18 = scalar_select 0, %s17, %s15
  $region1: #{tpu_custom_call.1} parent=0
    #allocation8 [shape = 'u8[16384]{0}', space=vmem, size = 0x4000, scoped, tag = 'input window, operand 0']
    #allocation9 [shape = 'u8[16384]{0}', space=vmem, size = 0x4000, scoped, tag = 'output window, operand 0, single buffered']
    #allocation10 [shape = 's32[2]{0}', space=sflag, size = 0x8, scoped, tag = 'scoped memory for tpu_custom_call.1']
    %19 = vsyncpa [#allocation10], 0
    loop: start=0, step=1, limit=6
    $region2: #{tpu_custom_call.1} parent=1 // loop_pre_header
      _
    $region3: #{tpu_custom_call.1} parent=1 // loop_header
      %s21 = sphi 0, %s25
      %p22 = scmp.ge.s32.totalorder %s21, 6
      %s28 = sphi 0, %s40
      %s29 = sphi 0, %s36
      %s30 = sphi 0, %s28
      %s31 = sphi 0, %s29
      %s32 = sphi 0, %s30
      %s33 = sphi 0, %s31
      %s43 = sphi 0, %s45
      %s46 = sphi 0, %s43
      %s47 = sphi 0, %s46
      %s63 = sphi 0, %s47
      %s69 = sphi 0, %s71
      %s72 = sphi 0, %s69
      %s73 = sphi 0, %s72
      %s89 = sphi 0, %s73
      %s95 = sphi 0, %s97
      %s98 = sphi 0, %s95
      %s99 = sphi 0, %s98
      %s115 = sphi 0, %s99
      %s121 = sphi 0, %s123
      %s124 = sphi 0, %s121
      %s125 = sphi 0, %s124
      %s141 = sphi 0, %s125
      %s147 = sphi 0, %s149
      %s150 = sphi 0, %s147
      %s151 = sphi 0, %s150
      %s167 = sphi 0, %s151
      %s173 = sphi 0, %s175
      %s176 = sphi 0, %s173
      %s177 = sphi 0, %s176
      %s193 = sphi 0, %s177
      %s199 = sphi 0, %s201
      %s202 = sphi 0, %s199
      %s203 = sphi 0, %s202
      %s219 = sphi 0, %s203
      %s225 = sphi 0, %s227
      %s228 = sphi 0, %s225
      %s229 = sphi 0, %s228
      %s245 = sphi 0, %s229
      %s251 = sphi 0, %s253
      %s254 = sphi 0, %s251
      %s255 = sphi 0, %s254
      %s271 = sphi 0, %s255
      %s277 = sphi 0, %s279
      %s280 = sphi 0, %s277
      %s281 = sphi 0, %s280
      %s297 = sphi 0, %s281
      %s303 = sphi 0, %s305
      %s306 = sphi 0, %s303
      %s307 = sphi 0, %s306
      %s323 = sphi 0, %s307
      %s329 = sphi 0, %s331
      %s332 = sphi 0, %s329
      %s333 = sphi 0, %s332
      %s349 = sphi 0, %s333
      %s355 = sphi 0, %s357
      %s358 = sphi 0, %s355
      %s359 = sphi 0, %s358
      %s375 = sphi 0, %s359
      %s381 = sphi 0, %s383
      %s384 = sphi 0, %s381
      %s385 = sphi 0, %s384
      %s401 = sphi 0, %s385
      %s405 = sphi 0, %s405
      %s407 = sphi 0, %s405
      %s408 = sphi 0, %s407
      %s422 = sphi 0, %s408
    $region4: #{tpu_custom_call.1} parent=1 // loop_header_branch
      %24 = sbr.rel (%p22) target = $region8
    $region5: #{tpu_custom_call.1} parent=1 // loop_body
      %s26 = ssub.s32 %s21, 1
      %s27 = ssub.s32 %s21, 2
      %s34 = sadd.s32 1, %s29
      %p35 = scmp.ge.s32.totalorder %s34, 2
      %s36 = scalar_select %p35, 0, %s34
      %s37 = sadd.s32 1, %s28
      %s38 = scalar_select %p35, %s37, %s28
      %p39 = scmp.ge.s32.totalorder %s38, 2
      %s40 = scalar_select %p39, 0, %s38
      %s41 = ssub.s32 %s29, %s36
      %p42 = scmp.eq.s32.totalorder %s41, 0
      %s44 = sadd.s32 %s43, 1
      %s45 = scalar_select %p42, %s43, %s44
      %p48 = pneg %p42
      %p49 = scmp.eq.s32.totalorder %s21, 3
      %p50 = por %p48, %p49
      %p51 = scmp.ne.s32.totalorder %s43, %s46
      %p52 = scmp.eq.s32.totalorder %s21, 0
      %p53 = por %p51, %p52
      %p54 = scmp.ne.s32.totalorder %s43, %s46
      %p55 = scmp.eq.s32.totalorder %s26, 3
      %p56 = por %p54, %p55
      %p57 = scmp.ne.s32.totalorder %s46, %s47
      %p58 = scmp.eq.s32.totalorder %s26, 0
      %p59 = por %p57, %p58
      %p60 = scmp.ne.s32.totalorder %s46, %s47
      %p61 = scmp.eq.s32.totalorder %s27, 3
      %p62 = por %p60, %p61
      %p64 = scmp.ne.s32.totalorder %s47, %s63
      %p65 = scmp.eq.s32.totalorder %s27, 0
      %p66 = por %p64, %p65
      %s67 = ssub.s32 %s28, %s40
      %p68 = scmp.eq.s32.totalorder %s67, 0
      %s70 = sadd.s32 %s69, 1
      %s71 = scalar_select %p68, %s69, %s70
      %p74 = pneg %p68
      %p75 = scmp.eq.s32.totalorder %s21, 3
      %p76 = por %p74, %p75
      %p77 = scmp.ne.s32.totalorder %s69, %s72
      %p78 = scmp.eq.s32.totalorder %s21, 0
      %p79 = por %p77, %p78
      %p80 = scmp.ne.s32.totalorder %s69, %s72
      %p81 = scmp.eq.s32.totalorder %s26, 3
      %p82 = por %p80, %p81
      %p83 = scmp.ne.s32.totalorder %s72, %s73
      %p84 = scmp.eq.s32.totalorder %s26, 0
      %p85 = por %p83, %p84
      %p86 = scmp.ne.s32.totalorder %s72, %s73
      %p87 = scmp.eq.s32.totalorder %s27, 3
      %p88 = por %p86, %p87
      %p90 = scmp.ne.s32.totalorder %s73, %s89
      %p91 = scmp.eq.s32.totalorder %s27, 0
      %p92 = por %p90, %p91
      %s93 = ssub.s32 %s28, %s40
      %p94 = scmp.eq.s32.totalorder %s93, 0
      %s96 = sadd.s32 %s95, 1
      %s97 = scalar_select %p94, %s95, %s96
      %p100 = pneg %p94
      %p101 = scmp.eq.s32.totalorder %s21, 3
      %p102 = por %p100, %p101
      %p103 = scmp.ne.s32.totalorder %s95, %s98
      %p104 = scmp.eq.s32.totalorder %s21, 0
      %p105 = por %p103, %p104
      %p106 = scmp.ne.s32.totalorder %s95, %s98
      %p107 = scmp.eq.s32.totalorder %s26, 3
      %p108 = por %p106, %p107
      %p109 = scmp.ne.s32.totalorder %s98, %s99
      %p110 = scmp.eq.s32.totalorder %s26, 0
      %p111 = por %p109, %p110
      %p112 = scmp.ne.s32.totalorder %s98, %s99
      %p113 = scmp.eq.s32.totalorder %s27, 3
      %p114 = por %p112, %p113
      %p116 = scmp.ne.s32.totalorder %s99, %s115
      %p117 = scmp.eq.s32.totalorder %s27, 0
      %p118 = por %p116, %p117
      %s119 = ssub.s32 %s28, %s40
      %p120 = scmp.eq.s32.totalorder %s119, 0
      %s122 = sadd.s32 %s121, 1
      %s123 = scalar_select %p120, %s121, %s122
      %p126 = pneg %p120
      %p127 = scmp.eq.s32.totalorder %s21, 3
      %p128 = por %p126, %p127
      %p129 = scmp.ne.s32.totalorder %s121, %s124
      %p130 = scmp.eq.s32.totalorder %s21, 0
      %p131 = por %p129, %p130
      %p132 = scmp.ne.s32.totalorder %s121, %s124
      %p133 = scmp.eq.s32.totalorder %s26, 3
      %p134 = por %p132, %p133
      %p135 = scmp.ne.s32.totalorder %s124, %s125
      %p136 = scmp.eq.s32.totalorder %s26, 0
      %p137 = por %p135, %p136
      %p138 = scmp.ne.s32.totalorder %s124, %s125
      %p139 = scmp.eq.s32.totalorder %s27, 3
      %p140 = por %p138, %p139
      %p142 = scmp.ne.s32.totalorder %s125, %s141
      %p143 = scmp.eq.s32.totalorder %s27, 0
      %p144 = por %p142, %p143
      %s145 = ssub.s32 %s28, %s40
      %p146 = scmp.eq.s32.totalorder %s145, 0
      %s148 = sadd.s32 %s147, 1
      %s149 = scalar_select %p146, %s147, %s148
      %p152 = pneg %p146
      %p153 = scmp.eq.s32.totalorder %s21, 3
      %p154 = por %p152, %p153
      %p155 = scmp.ne.s32.totalorder %s147, %s150
      %p156 = scmp.eq.s32.totalorder %s21, 0
      %p157 = por %p155, %p156
      %p158 = scmp.ne.s32.totalorder %s147, %s150
      %p159 = scmp.eq.s32.totalorder %s26, 3
      %p160 = por %p158, %p159
      %p161 = scmp.ne.s32.totalorder %s150, %s151
      %p162 = scmp.eq.s32.totalorder %s26, 0
      %p163 = por %p161, %p162
      %p164 = scmp.ne.s32.totalorder %s150, %s151
      %p165 = scmp.eq.s32.totalorder %s27, 3
      %p166 = por %p164, %p165
      %p168 = scmp.ne.s32.totalorder %s151, %s167
      %p169 = scmp.eq.s32.totalorder %s27, 0
      %p170 = por %p168, %p169
      %s171 = ssub.s32 %s28, %s40
      %p172 = scmp.eq.s32.totalorder %s171, 0
      %s174 = sadd.s32 %s173, 1
      %s175 = scalar_select %p172, %s173, %s174
      %p178 = pneg %p172
      %p179 = scmp.eq.s32.totalorder %s21, 3
      %p180 = por %p178, %p179
      %p181 = scmp.ne.s32.totalorder %s173, %s176
      %p182 = scmp.eq.s32.totalorder %s21, 0
      %p183 = por %p181, %p182
      %p184 = scmp.ne.s32.totalorder %s173, %s176
      %p185 = scmp.eq.s32.totalorder %s26, 3
      %p186 = por %p184, %p185
      %p187 = scmp.ne.s32.totalorder %s176, %s177
      %p188 = scmp.eq.s32.totalorder %s26, 0
      %p189 = por %p187, %p188
      %p190 = scmp.ne.s32.totalorder %s176, %s177
      %p191 = scmp.eq.s32.totalorder %s27, 3
      %p192 = por %p190, %p191
      %p194 = scmp.ne.s32.totalorder %s177, %s193
      %p195 = scmp.eq.s32.totalorder %s27, 0
      %p196 = por %p194, %p195
      %s197 = ssub.s32 %s28, %s40
      %p198 = scmp.eq.s32.totalorder %s197, 0
      %s200 = sadd.s32 %s199, 1
      %s201 = scalar_select %p198, %s199, %s200
      %p204 = pneg %p198
      %p205 = scmp.eq.s32.totalorder %s21, 3
      %p206 = por %p204, %p205
      %p207 = scmp.ne.s32.totalorder %s199, %s202
      %p208 = scmp.eq.s32.totalorder %s21, 0
      %p209 = por %p207, %p208
      %p210 = scmp.ne.s32.totalorder %s199, %s202
      %p211 = scmp.eq.s32.totalorder %s26, 3
      %p212 = por %p210, %p211
      %p213 = scmp.ne.s32.totalorder %s202, %s203
      %p214 = scmp.eq.s32.totalorder %s26, 0
      %p215 = por %p213, %p214
      %p216 = scmp.ne.s32.totalorder %s202, %s203
      %p217 = scmp.eq.s32.totalorder %s27, 3
      %p218 = por %p216, %p217
      %p220 = scmp.ne.s32.totalorder %s203, %s219
      %p221 = scmp.eq.s32.totalorder %s27, 0
      %p222 = por %p220, %p221
      %s223 = ssub.s32 %s28, %s40
      %p224 = scmp.eq.s32.totalorder %s223, 0
      %s226 = sadd.s32 %s225, 1
      %s227 = scalar_select %p224, %s225, %s226
      %p230 = pneg %p224
      %p231 = scmp.eq.s32.totalorder %s21, 3
      %p232 = por %p230, %p231
      %p233 = scmp.ne.s32.totalorder %s225, %s228
      %p234 = scmp.eq.s32.totalorder %s21, 0
      %p235 = por %p233, %p234
      %p236 = scmp.ne.s32.totalorder %s225, %s228
      %p237 = scmp.eq.s32.totalorder %s26, 3
      %p238 = por %p236, %p237
      %p239 = scmp.ne.s32.totalorder %s228, %s229
      %p240 = scmp.eq.s32.totalorder %s26, 0
      %p241 = por %p239, %p240
      %p242 = scmp.ne.s32.totalorder %s228, %s229
      %p243 = scmp.eq.s32.totalorder %s27, 3
      %p244 = por %p242, %p243
      %p246 = scmp.ne.s32.totalorder %s229, %s245
      %p247 = scmp.eq.s32.totalorder %s27, 0
      %p248 = por %p246, %p247
      %s249 = ssub.s32 %s28, %s40
      %p250 = scmp.eq.s32.totalorder %s249, 0
      %s252 = sadd.s32 %s251, 1
      %s253 = scalar_select %p250, %s251, %s252
      %p256 = pneg %p250
      %p257 = scmp.eq.s32.totalorder %s21, 3
      %p258 = por %p256, %p257
      %p259 = scmp.ne.s32.totalorder %s251, %s254
      %p260 = scmp.eq.s32.totalorder %s21, 0
      %p261 = por %p259, %p260
      %p262 = scmp.ne.s32.totalorder %s251, %s254
      %p263 = scmp.eq.s32.totalorder %s26, 3
      %p264 = por %p262, %p263
      %p265 = scmp.ne.s32.totalorder %s254, %s255
      %p266 = scmp.eq.s32.totalorder %s26, 0
      %p267 = por %p265, %p266
      %p268 = scmp.ne.s32.totalorder %s254, %s255
      %p269 = scmp.eq.s32.totalorder %s27, 3
      %p270 = por %p268, %p269
      %p272 = scmp.ne.s32.totalorder %s255, %s271
      %p273 = scmp.eq.s32.totalorder %s27, 0
      %p274 = por %p272, %p273
      %s275 = ssub.s32 %s28, %s40
      %p276 = scmp.eq.s32.totalorder %s275, 0
      %s278 = sadd.s32 %s277, 1
      %s279 = scalar_select %p276, %s277, %s278
      %p282 = pneg %p276
      %p283 = scmp.eq.s32.totalorder %s21, 3
      %p284 = por %p282, %p283
      %p285 = scmp.ne.s32.totalorder %s277, %s280
      %p286 = scmp.eq.s32.totalorder %s21, 0
      %p287 = por %p285, %p286
      %p288 = scmp.ne.s32.totalorder %s277, %s280
      %p289 = scmp.eq.s32.totalorder %s26, 3
      %p290 = por %p288, %p289
      %p291 = scmp.ne.s32.totalorder %s280, %s281
      %p292 = scmp.eq.s32.totalorder %s26, 0
      %p293 = por %p291, %p292
      %p294 = scmp.ne.s32.totalorder %s280, %s281
      %p295 = scmp.eq.s32.totalorder %s27, 3
      %p296 = por %p294, %p295
      %p298 = scmp.ne.s32.totalorder %s281, %s297
      %p299 = scmp.eq.s32.totalorder %s27, 0
      %p300 = por %p298, %p299
      %s301 = ssub.s32 %s28, %s40
      %p302 = scmp.eq.s32.totalorder %s301, 0
      %s304 = sadd.s32 %s303, 1
      %s305 = scalar_select %p302, %s303, %s304
      %p308 = pneg %p302
      %p309 = scmp.eq.s32.totalorder %s21, 3
      %p310 = por %p308, %p309
      %p311 = scmp.ne.s32.totalorder %s303, %s306
      %p312 = scmp.eq.s32.totalorder %s21, 0
      %p313 = por %p311, %p312
      %p314 = scmp.ne.s32.totalorder %s303, %s306
      %p315 = scmp.eq.s32.totalorder %s26, 3
      %p316 = por %p314, %p315
      %p317 = scmp.ne.s32.totalorder %s306, %s307
      %p318 = scmp.eq.s32.totalorder %s26, 0
      %p319 = por %p317, %p318
      %p320 = scmp.ne.s32.totalorder %s306, %s307
      %p321 = scmp.eq.s32.totalorder %s27, 3
      %p322 = por %p320, %p321
      %p324 = scmp.ne.s32.totalorder %s307, %s323
      %p325 = scmp.eq.s32.totalorder %s27, 0
      %p326 = por %p324, %p325
      %s327 = ssub.s32 %s28, %s40
      %p328 = scmp.eq.s32.totalorder %s327, 0
      %s330 = sadd.s32 %s329, 1
      %s331 = scalar_select %p328, %s329, %s330
      %p334 = pneg %p328
      %p335 = scmp.eq.s32.totalorder %s21, 3
      %p336 = por %p334, %p335
      %p337 = scmp.ne.s32.totalorder %s329, %s332
      %p338 = scmp.eq.s32.totalorder %s21, 0
      %p339 = por %p337, %p338
      %p340 = scmp.ne.s32.totalorder %s329, %s332
      %p341 = scmp.eq.s32.totalorder %s26, 3
      %p342 = por %p340, %p341
      %p343 = scmp.ne.s32.totalorder %s332, %s333
      %p344 = scmp.eq.s32.totalorder %s26, 0
      %p345 = por %p343, %p344
      %p346 = scmp.ne.s32.totalorder %s332, %s333
      %p347 = scmp.eq.s32.totalorder %s27, 3
      %p348 = por %p346, %p347
      %p350 = scmp.ne.s32.totalorder %s333, %s349
      %p351 = scmp.eq.s32.totalorder %s27, 0
      %p352 = por %p350, %p351
      %s353 = ssub.s32 %s28, %s40
      %p354 = scmp.eq.s32.totalorder %s353, 0
      %s356 = sadd.s32 %s355, 1
      %s357 = scalar_select %p354, %s355, %s356
      %p360 = pneg %p354
      %p361 = scmp.eq.s32.totalorder %s21, 3
      %p362 = por %p360, %p361
      %p363 = scmp.ne.s32.totalorder %s355, %s358
      %p364 = scmp.eq.s32.totalorder %s21, 0
      %p365 = por %p363, %p364
      %p366 = scmp.ne.s32.totalorder %s355, %s358
      %p367 = scmp.eq.s32.totalorder %s26, 3
      %p368 = por %p366, %p367
      %p369 = scmp.ne.s32.totalorder %s358, %s359
      %p370 = scmp.eq.s32.totalorder %s26, 0
      %p371 = por %p369, %p370
      %p372 = scmp.ne.s32.totalorder %s358, %s359
      %p373 = scmp.eq.s32.totalorder %s27, 3
      %p374 = por %p372, %p373
      %p376 = scmp.ne.s32.totalorder %s359, %s375
      %p377 = scmp.eq.s32.totalorder %s27, 0
      %p378 = por %p376, %p377
      %s379 = ssub.s32 %s28, %s40
      %p380 = scmp.eq.s32.totalorder %s379, 0
      %s382 = sadd.s32 %s381, 1
      %s383 = scalar_select %p380, %s381, %s382
      %p386 = pneg %p380
      %p387 = scmp.eq.s32.totalorder %s21, 3
      %p388 = por %p386, %p387
      %p389 = scmp.ne.s32.totalorder %s381, %s384
      %p390 = scmp.eq.s32.totalorder %s21, 0
      %p391 = por %p389, %p390
      %p392 = scmp.ne.s32.totalorder %s381, %s384
      %p393 = scmp.eq.s32.totalorder %s26, 3
      %p394 = por %p392, %p393
      %p395 = scmp.ne.s32.totalorder %s384, %s385
      %p396 = scmp.eq.s32.totalorder %s26, 0
      %p397 = por %p395, %p396
      %p398 = scmp.ne.s32.totalorder %s384, %s385
      %p399 = scmp.eq.s32.totalorder %s27, 3
      %p400 = por %p398, %p399
      %p402 = scmp.ne.s32.totalorder %s385, %s401
      %p403 = scmp.eq.s32.totalorder %s27, 0
      %p404 = por %p402, %p403
      %s406 = sadd.s32 %s405, 1
      %p409 = scmp.eq.s32.totalorder %s21, 3
      %p410 = scmp.ne.s32.totalorder %s405, %s407
      %p411 = scmp.eq.s32.totalorder %s21, 0
      %p412 = por %p410, %p411
      %p413 = scmp.ne.s32.totalorder %s405, %s407
      %p414 = scmp.eq.s32.totalorder %s26, 3
      %p415 = por %p413, %p414
      %p416 = scmp.ne.s32.totalorder %s407, %s408
      %p417 = scmp.eq.s32.totalorder %s26, 0
      %p418 = por %p416, %p417
      %p419 = scmp.ne.s32.totalorder %s407, %s408
      %p420 = scmp.eq.s32.totalorder %s27, 3
      %p421 = por %p419, %p420
      %p423 = scmp.ne.s32.totalorder %s408, %s422
      %p424 = scmp.eq.s32.totalorder %s27, 0
      %p425 = por %p423, %p424
      %p426 = scmp.le.s32.totalorder 1, %s21
      %p427 = scmp.lt.s32.totalorder %s21, 5
      %p428 = pnand %p426, %p427
      %p429 = pneg %p428
      // Predicated region
      $region9: #{tpu_custom_call.1} parent=5 // pred_check
        _
      $region10: #{tpu_custom_call.1} parent=5 // pred_check_branch
        %431 = sbr.rel (%p428) target = $region12
      $region11: #{tpu_custom_call.1} parent=5 // pred_region
        %s432 = ssub.s32 %s21, 1
      $region12: #{tpu_custom_call.1} parent=5 // pred_fallthru
        _
      %p433 = scmp.lt.s32.totalorder %s21, 4
      // Predicated region
      $region13: #{tpu_custom_call.1} parent=5 // pred_check
        %p434 = pneg %p433
      $region14: #{tpu_custom_call.1} parent=5 // pred_check_branch
        %436 = sbr.rel (%p434) target = $region16
      $region15: #{tpu_custom_call.1} parent=5 // pred_region
        // Predicated region
        $region17: #{tpu_custom_call.1} parent=15 // pred_check
          %p437 = pneg %p53
        $region18: #{tpu_custom_call.1} parent=15 // pred_check_branch
          %439 = sbr.rel (%p437) target = $region20
        $region19: #{tpu_custom_call.1} parent=15 // pred_region
          %s440 = sand.u32 %s43, 1
          %s441 = sand.u32 %s43, 1
          %s442 = smul.addr %s441, 16
          %s443 = scalar_lea.vmem [#allocation8], %s442
          %s444 = smul.addr %s29, 8
          %s445 = scalar_lea.vmem %s0, %s444
          // Predicated region
          $region21: #{tpu_custom_call.1} parent=19 // pred_check
            _
          $region22: #{tpu_custom_call.1} parent=19 // pred_check_branch
            %447 = sbr.rel (0) target = $region24
          $region23: #{tpu_custom_call.1} parent=19 // pred_region
            // Predicated region
            $region25: #{tpu_custom_call.1} parent=23 // pred_check
              _
            $region26: #{tpu_custom_call.1} parent=23 // pred_check_branch
              %449 = sbr.rel (0) target = $region28
            $region27: #{tpu_custom_call.1} parent=23 // pred_region
              // Predicated region
              $region40: #{tpu_custom_call.1} parent=27 // pred_check
                _
              $region41: #{tpu_custom_call.1} parent=27 // pred_check_branch
                %466 = sbr.rel (0) target = $region43
              $region42: #{tpu_custom_call.1} parent=27 // pred_region
                loop: start=0, step=1, limit=1
                $region44: #{tpu_custom_call.1} parent=42 // loop_pre_header
                  _
                $region45: #{tpu_custom_call.1} parent=42 // loop_header
                  %s468 = sphi 0, %s472
                  %p469 = scmp.ge.s32.totalorder %s468, 1
                  %s473 = sphi %s445, %s445
                  %s474 = sphi %s443, %s443
                $region46: #{tpu_custom_call.1} parent=42 // loop_header_branch
                  %471 = sbr.rel (%p469) target = $region50
                $region47: #{tpu_custom_call.1} parent=42 // loop_body
                  %v475 = vld [vmem:[%s473] sm:$0xff]
                  %476 = vst [vmem:[%s474] sm:$0xff] %v475
                  %v477 = vld [vmem:[%s473 + $0x10] sm:$0xff]
                  %478 = vst [vmem:[%s474 + $0x8] sm:$0xff] %v477
                $region48: #{tpu_custom_call.1} parent=42 // loop_footer
                  %s472 = sadd.s32 1, %s468
                $region49: #{tpu_custom_call.1} parent=42 // loop_footer_branch
                  %467 = sbr.rel target = $region45
                $region50: #{tpu_custom_call.1} parent=42 // loop_exit
                  _
              $region43: #{tpu_custom_call.1} parent=27 // pred_fallthru
                _
              // Predicated region
              $region51: #{tpu_custom_call.1} parent=27 // pred_check
                _
              $region52: #{tpu_custom_call.1} parent=27 // pred_check_branch
                %480 = sbr.rel target = $region54
              $region53: #{tpu_custom_call.1} parent=27 // pred_region
                _
              $region54: #{tpu_custom_call.1} parent=27 // pred_fallthru
                _
            $region28: #{tpu_custom_call.1} parent=23 // pred_fallthru
              _
            // Predicated region
            $region29: #{tpu_custom_call.1} parent=23 // pred_check
              _
            $region30: #{tpu_custom_call.1} parent=23 // pred_check_branch
              %451 = sbr.rel target = $region32
            $region31: #{tpu_custom_call.1} parent=23 // pred_region
              loop: start=0, step=1, limit=1
              $region33: #{tpu_custom_call.1} parent=31 // loop_pre_header
                _
              $region34: #{tpu_custom_call.1} parent=31 // loop_header
                %s454 = sphi 0, %s458
                %p455 = scmp.ge.s32.totalorder %s454, 1
                %s459 = sphi %s445, %s445
                %s460 = sphi %s443, %s443
              $region35: #{tpu_custom_call.1} parent=31 // loop_header_branch
                %457 = sbr.rel (%p455) target = $region39
              $region36: #{tpu_custom_call.1} parent=31 // loop_body
                %v461 = vld [vmem:[%s459] sm:$0xff]
                %462 = vst [vmem:[%s460] sm:$0xff] %v461
                %v463 = vld [vmem:[%s459 + $0x10] sm:$0xff]
                %464 = vst [vmem:[%s460 + $0x8] sm:$0xff] %v463
              $region37: #{tpu_custom_call.1} parent=31 // loop_footer
                %s458 = sadd.s32 1, %s454
              $region38: #{tpu_custom_call.1} parent=31 // loop_footer_branch
                %453 = sbr.rel target = $region34
              $region39: #{tpu_custom_call.1} parent=31 // loop_exit
                _
            $region32: #{tpu_custom_call.1} parent=23 // pred_fallthru
              _
          $region24: #{tpu_custom_call.1} parent=19 // pred_fallthru
            _
          %481 = vnop
        $region20: #{tpu_custom_call.1} parent=15 // pred_fallthru
          _
        // Predicated region
        $region55: #{tpu_custom_call.1} parent=15 // pred_check
          %p482 = pneg %p79
        $region56: #{tpu_custom_call.1} parent=15 // pred_check_branch
          %484 = sbr.rel (%p482) target = $region58
        $region57: #{tpu_custom_call.1} parent=15 // pred_region
          %p485 = scmp.lt.s32.totalorder %s28, 1
          %s486 = scalar_select %p485, %s28, 1
          %s487 = scalar_lea.vmem %s1, %s486
        $region58: #{tpu_custom_call.1} parent=15 // pred_fallthru
          _
        // Predicated region
        $region59: #{tpu_custom_call.1} parent=15 // pred_check
          %p488 = pneg %p105
        $region60: #{tpu_custom_call.1} parent=15 // pred_check_branch
          %490 = sbr.rel (%p488) target = $region62
        $region61: #{tpu_custom_call.1} parent=15 // pred_region
          %p491 = scmp.lt.s32.totalorder %s28, 1
          %s492 = scalar_select %p491, %s28, 1
          %s493 = smul.addr %s492, 4
          %s494 = smul.addr %s493, 4
          %s495 = scalar_lea.vmem %s2, %s494
        $region62: #{tpu_custom_call.1} parent=15 // pred_fallthru
          _
        // Predicated region
        $region63: #{tpu_custom_call.1} parent=15 // pred_check
          %p496 = pneg %p131
        $region64: #{tpu_custom_call.1} parent=15 // pred_check_branch
          %498 = sbr.rel (%p496) target = $region66
        $region65: #{tpu_custom_call.1} parent=15 // pred_region
          %p499 = scmp.lt.s32.totalorder %s28, 1
          %s500 = scalar_select %p499, %s28, 1
          %s501 = smul.addr %s500, 4
          %s502 = smul.addr %s501, 4
          %s503 = scalar_lea.vmem %s3, %s502
        $region66: #{tpu_custom_call.1} parent=15 // pred_fallthru
          _
        // Predicated region
        $region67: #{tpu_custom_call.1} parent=15 // pred_check
          %p504 = pneg %p157
        $region68: #{tpu_custom_call.1} parent=15 // pred_check_branch
          %506 = sbr.rel (%p504) target = $region70
        $region69: #{tpu_custom_call.1} parent=15 // pred_region
          %p507 = scmp.lt.s32.totalorder %s28, 1
          %s508 = scalar_select %p507, %s28, 1
          %s509 = smul.addr %s508, 4
          %s510 = scalar_lea.vmem %s4, %s509
        $region70: #{tpu_custom_call.1} parent=15 // pred_fallthru
          _
        // Predicated region
        $region71: #{tpu_custom_call.1} parent=15 // pred_check
          %p511 = pneg %p183
        $region72: #{tpu_custom_call.1} parent=15 // pred_check_branch
          %513 = sbr.rel (%p511) target = $region74
        $region73: #{tpu_custom_call.1} parent=15 // pred_region
          %p514 = scmp.lt.s32.totalorder %s28, 1
          %s515 = scalar_select %p514, %s28, 1
          %s516 = scalar_lea.vmem %s5, %s515
        $region74: #{tpu_custom_call.1} parent=15 // pred_fallthru
          _
        // Predicated region
        $region75: #{tpu_custom_call.1} parent=15 // pred_check
          %p517 = pneg %p209
        $region76: #{tpu_custom_call.1} parent=15 // pred_check_branch
          %519 = sbr.rel (%p517) target = $region78
        $region77: #{tpu_custom_call.1} parent=15 // pred_region
          %p520 = scmp.lt.s32.totalorder %s28, 1
          %s521 = scalar_select %p520, %s28, 1
          %s522 = smul.addr %s521, 8
          %s523 = smul.addr %s522, 4
          %s524 = scalar_lea.vmem %s6, %s523
        $region78: #{tpu_custom_call.1} parent=15 // pred_fallthru
          _
        // Predicated region
        $region79: #{tpu_custom_call.1} parent=15 // pred_check
          %p525 = pneg %p235
        $region80: #{tpu_custom_call.1} parent=15 // pred_check_branch
          %527 = sbr.rel (%p525) target = $region82
        $region81: #{tpu_custom_call.1} parent=15 // pred_region
          %p528 = scmp.lt.s32.totalorder %s28, 1
          %s529 = scalar_select %p528, %s28, 1
          %s530 = smul.addr %s529, 16
          %s531 = smul.addr %s530, 4
          %s532 = scalar_lea.vmem %s7, %s531
        $region82: #{tpu_custom_call.1} parent=15 // pred_fallthru
          _
        // Predicated region
        $region83: #{tpu_custom_call.1} parent=15 // pred_check
          %p533 = pneg %p261
        $region84: #{tpu_custom_call.1} parent=15 // pred_check_branch
          %535 = sbr.rel (%p533) target = $region86
        $region85: #{tpu_custom_call.1} parent=15 // pred_region
          %p536 = scmp.lt.s32.totalorder %s28, 1
          %s537 = scalar_select %p536, %s28, 1
          %s538 = scalar_lea.vmem %s8, %s537
        $region86: #{tpu_custom_call.1} parent=15 // pred_fallthru
          _
        // Predicated region
        $region87: #{tpu_custom_call.1} parent=15 // pred_check
          %p539 = pneg %p287
        $region88: #{tpu_custom_call.1} parent=15 // pred_check_branch
          %541 = sbr.rel (%p539) target = $region90
        $region89: #{tpu_custom_call.1} parent=15 // pred_region
          %p542 = scmp.lt.s32.totalorder %s28, 1
          %s543 = scalar_select %p542, %s28, 1
          %s544 = smul.addr %s543, 8
          %s545 = smul.addr %s544, 4
          %s546 = scalar_lea.vmem %s9, %s545
        $region90: #{tpu_custom_call.1} parent=15 // pred_fallthru
          _
        // Predicated region
        $region91: #{tpu_custom_call.1} parent=15 // pred_check
          %p547 = pneg %p313
        $region92: #{tpu_custom_call.1} parent=15 // pred_check_branch
          %549 = sbr.rel (%p547) target = $region94
        $region93: #{tpu_custom_call.1} parent=15 // pred_region
          %p550 = scmp.lt.s32.totalorder %s28, 1
          %s551 = scalar_select %p550, %s28, 1
          %s552 = smul.addr %s551, 8
          %s553 = smul.addr %s552, 4
          %s554 = scalar_lea.vmem %s10, %s553
        $region94: #{tpu_custom_call.1} parent=15 // pred_fallthru
          _
        // Predicated region
        $region95: #{tpu_custom_call.1} parent=15 // pred_check
          %p555 = pneg %p339
        $region96: #{tpu_custom_call.1} parent=15 // pred_check_branch
          %557 = sbr.rel (%p555) target = $region98
        $region97: #{tpu_custom_call.1} parent=15 // pred_region
          %p558 = scmp.lt.s32.totalorder %s28, 1
          %s559 = scalar_select %p558, %s28, 1
          %s560 = smul.addr %s559, 2
          %s561 = smul.addr %s560, 8
          %s562 = scalar_lea.vmem %s11, %s561
        $region98: #{tpu_custom_call.1} parent=15 // pred_fallthru
          _
        // Predicated region
        $region99: #{tpu_custom_call.1} parent=15 // pred_check
          %p563 = pneg %p365
        $region100: #{tpu_custom_call.1} parent=15 // pred_check_branch
          %565 = sbr.rel (%p563) target = $region102
        $region101: #{tpu_custom_call.1} parent=15 // pred_region
          %p566 = scmp.lt.s32.totalorder %s28, 1
          %s567 = scalar_select %p566, %s28, 1
          %s568 = scalar_lea.vmem %s12, %s567
        $region102: #{tpu_custom_call.1} parent=15 // pred_fallthru
          _
        // Predicated region
        $region103: #{tpu_custom_call.1} parent=15 // pred_check
          %p569 = pneg %p391
        $region104: #{tpu_custom_call.1} parent=15 // pred_check_branch
          %571 = sbr.rel (%p569) target = $region106
        $region105: #{tpu_custom_call.1} parent=15 // pred_region
          %p572 = scmp.lt.s32.totalorder %s28, 1
          %s573 = scalar_select %p572, %s28, 1
          %s574 = smul.addr %s573, 8
          %s575 = smul.addr %s574, 4
          %s576 = scalar_lea.vmem %s13, %s575
        $region106: #{tpu_custom_call.1} parent=15 // pred_fallthru
          _
      $region16: #{tpu_custom_call.1} parent=5 // pred_fallthru
        _
      %p577 = scmp.le.s32.totalorder 1, %s21
      %p578 = scmp.lt.s32.totalorder %s21, 5
      %p579 = pnand %p577, %p578
      %p580 = pneg %p579
      // Predicated region
      $region107: #{tpu_custom_call.1} parent=5 // pred_check
        _
      $region108: #{tpu_custom_call.1} parent=5 // pred_check_branch
        %582 = sbr.rel (%p579) target = $region110
      $region109: #{tpu_custom_call.1} parent=5 // pred_region
        %s583 = ssub.s32 %s21, 1
        %s584 = sand.u32 %s46, 1
        %s585 = sand.u32 %s46, 1
        %s586 = smul.addr %s585, 16
        %s587 = scalar_lea.vmem [#allocation8], %s586
        // Predicated region
        $region111: #{tpu_custom_call.1} parent=109 // pred_check
          %p588 = pneg %p59
        $region112: #{tpu_custom_call.1} parent=109 // pred_check_branch
          %590 = sbr.rel (%p588) target = $region114
        $region113: #{tpu_custom_call.1} parent=109 // pred_region
          _
        $region114: #{tpu_custom_call.1} parent=109 // pred_fallthru
          _
        %s591 = sand.u32 %s46, 1
        %s592 = sand.u32 %s46, 1
        %s593 = smul.addr %s592, 16
        %s594 = scalar_lea.vmem [#allocation8], %s593
        %p595 = pneg %p59
        %p596 = pneg %p56
        %p597 = scmp.lt.s32.totalorder %s30, 1
        %s598 = scalar_select %p597, %s30, 1
        %s599 = scalar_lea.vmem %s1, %s598
        %p600 = pneg %p85
        %p601 = pneg %p82
        %p602 = scmp.lt.s32.totalorder %s30, 1
        %s603 = scalar_select %p602, %s30, 1
        %s604 = smul.addr %s603, 4
        %s605 = smul.addr %s604, 4
        %s606 = scalar_lea.vmem %s2, %s605
        %p607 = pneg %p111
        %p608 = pneg %p108
        %p609 = scmp.lt.s32.totalorder %s30, 1
        %s610 = scalar_select %p609, %s30, 1
        %s611 = smul.addr %s610, 4
        %s612 = smul.addr %s611, 4
        %s613 = scalar_lea.vmem %s3, %s612
        %p614 = pneg %p137
        %p615 = pneg %p134
        %p616 = scmp.lt.s32.totalorder %s30, 1
        %s617 = scalar_select %p616, %s30, 1
        %s618 = smul.addr %s617, 4
        %s619 = scalar_lea.vmem %s4, %s618
        %p620 = pneg %p163
        %p621 = pneg %p160
        %p622 = scmp.lt.s32.totalorder %s30, 1
        %s623 = scalar_select %p622, %s30, 1
        %s624 = scalar_lea.vmem %s5, %s623
        %p625 = pneg %p189
        %p626 = pneg %p186
        %p627 = scmp.lt.s32.totalorder %s30, 1
        %s628 = scalar_select %p627, %s30, 1
        %s629 = smul.addr %s628, 8
        %s630 = smul.addr %s629, 4
        %s631 = scalar_lea.vmem %s6, %s630
        %p632 = pneg %p215
        %p633 = pneg %p212
        %p634 = scmp.lt.s32.totalorder %s30, 1
        %s635 = scalar_select %p634, %s30, 1
        %s636 = smul.addr %s635, 16
        %s637 = smul.addr %s636, 4
        %s638 = scalar_lea.vmem %s7, %s637
        %p639 = pneg %p241
        %p640 = pneg %p238
        %p641 = scmp.lt.s32.totalorder %s30, 1
        %s642 = scalar_select %p641, %s30, 1
        %s643 = scalar_lea.vmem %s8, %s642
        %p644 = pneg %p267
        %p645 = pneg %p264
        %p646 = scmp.lt.s32.totalorder %s30, 1
        %s647 = scalar_select %p646, %s30, 1
        %s648 = smul.addr %s647, 8
        %s649 = smul.addr %s648, 4
        %s650 = scalar_lea.vmem %s9, %s649
        %p651 = pneg %p293
        %p652 = pneg %p290
        %p653 = scmp.lt.s32.totalorder %s30, 1
        %s654 = scalar_select %p653, %s30, 1
        %s655 = smul.addr %s654, 8
        %s656 = smul.addr %s655, 4
        %s657 = scalar_lea.vmem %s10, %s656
        %p658 = pneg %p319
        %p659 = pneg %p316
        %p660 = scmp.lt.s32.totalorder %s30, 1
        %s661 = scalar_select %p660, %s30, 1
        %s662 = smul.addr %s661, 2
        %s663 = smul.addr %s662, 8
        %s664 = scalar_lea.vmem %s11, %s663
        %p665 = pneg %p345
        %p666 = pneg %p342
        %p667 = scmp.lt.s32.totalorder %s30, 1
        %s668 = scalar_select %p667, %s30, 1
        %s669 = scalar_lea.vmem %s12, %s668
        %p670 = pneg %p371
        %p671 = pneg %p368
        %p672 = scmp.lt.s32.totalorder %s30, 1
        %s673 = scalar_select %p672, %s30, 1
        %s674 = smul.addr %s673, 8
        %s675 = smul.addr %s674, 4
        %s676 = scalar_lea.vmem %s13, %s675
        %p677 = pneg %p397
        %p678 = pneg %p394
        %p679 = pneg %p418
        %p680 = pneg %p415
        %p681 = scmp.lt.s32.totalorder %s30, 1
        %s682 = scalar_select %p681, %s30, 1
        %s683 = scalar_lea.vmem %s1, %s682
        %p684 = scmp.lt.s32.totalorder %s30, 1
        %s685 = scalar_select %p684, %s30, 1
        %s686 = smul.addr %s685, 4
        %s687 = smul.addr %s686, 4
        %s688 = scalar_lea.vmem %s2, %s687
        %p689 = scmp.lt.s32.totalorder %s30, 1
        %s690 = scalar_select %p689, %s30, 1
        %s691 = smul.addr %s690, 4
        %s692 = smul.addr %s691, 4
        %s693 = scalar_lea.vmem %s3, %s692
        %p694 = scmp.lt.s32.totalorder %s30, 1
        %s695 = scalar_select %p694, %s30, 1
        %s696 = smul.addr %s695, 4
        %s697 = scalar_lea.vmem %s4, %s696
        %p698 = scmp.lt.s32.totalorder %s30, 1
        %s699 = scalar_select %p698, %s30, 1
        %s700 = scalar_lea.vmem %s5, %s699
        %p701 = scmp.lt.s32.totalorder %s30, 1
        %s702 = scalar_select %p701, %s30, 1
        %s703 = smul.addr %s702, 8
        %s704 = smul.addr %s703, 4
        %s705 = scalar_lea.vmem %s6, %s704
        %p706 = scmp.lt.s32.totalorder %s30, 1
        %s707 = scalar_select %p706, %s30, 1
        %s708 = smul.addr %s707, 16
        %s709 = smul.addr %s708, 4
        %s710 = scalar_lea.vmem %s7, %s709
        %p711 = scmp.lt.s32.totalorder %s30, 1
        %s712 = scalar_select %p711, %s30, 1
        %s713 = scalar_lea.vmem %s8, %s712
        %p714 = scmp.lt.s32.totalorder %s30, 1
        %s715 = scalar_select %p714, %s30, 1
        %s716 = smul.addr %s715, 8
        %s717 = smul.addr %s716, 4
        %s718 = scalar_lea.vmem %s9, %s717
        %p719 = scmp.lt.s32.totalorder %s30, 1
        %s720 = scalar_select %p719, %s30, 1
        %s721 = smul.addr %s720, 8
        %s722 = smul.addr %s721, 4
        %s723 = scalar_lea.vmem %s10, %s722
        %p724 = scmp.lt.s32.totalorder %s30, 1
        %s725 = scalar_select %p724, %s30, 1
        %s726 = smul.addr %s725, 2
        %s727 = smul.addr %s726, 8
        %s728 = scalar_lea.vmem %s11, %s727
        %p729 = scmp.lt.s32.totalorder %s30, 1
        %s730 = scalar_select %p729, %s30, 1
        %s731 = scalar_lea.vmem %s12, %s730
        %p732 = scmp.lt.s32.totalorder %s30, 1
        %s733 = scalar_select %p732, %s30, 1
        %s734 = smul.addr %s733, 8
        %s735 = smul.addr %s734, 4
        %s736 = scalar_lea.vmem %s13, %s735
        %s738 = smul.u32 %s31, 8
        %p739 = scmp.eq.s32.totalorder %s30, 0
        %v740 = vld [vmem:[%s587] sm:$0xff]
        %v741 = vld [vmem:[%s587 + $0x8] sm:$0xff]
        %s742 = scalar_lea.vmem [#allocation9], %s738
        %v743 = vld [vmem:[%s742] sm:$0xff]
        %v744 = vld [vmem:[%s742 + $0x10] sm:$0xff]
        %s745 = scalar_select %p739, 1, 0
        %v746 = vstv %s745
        %vm747 = vcmp.eq.s32.totalorder %v746, 1
        %v748 = vsel %vm747, %v740, %v743
        %v749 = vsel %vm747, %v741, %v744
        %v750 = vld [vmem:[%s683] sm:$0x1]
        %v751 = vmul.f32 %v748, %v748
        %v752 = vmul.f32 %v749, %v749
        %vm753 = vcmask 261120
        %v754 = vsel %vm753, %v751, 0.0
        %755 = vadd.xlane.f32.xlu0 %v754
        %v756 = vpop.xlane.xlu0 %755
        %v757 = vsel %vm753, %v752, 0.0
        %758 = vadd.xlane.f32.xlu0 %v757
        %v759 = vpop.xlane.xlu0 %758
        %v760 = vrcp.pop 32.0
        %v761 = vmul.f32 %v756, %v760
        %v762 = vmul.f32 %v759, %v760
        %v763 = vadd.f32 %v761, 1e-05
        %v764 = vadd.f32 %v762, 1e-05
        %v765 = vrsqrt.pop %v763
        %v766 = vrsqrt.pop %v764
        %v767 = vmul.f32 %v748, %v765
        %v768 = vmul.f32 %v749, %v766
        %v770 = vlaneseq
        %v771 = vshrl.u32 %v770, 7
        %v772 = vsub.s32 0, %v771
        %v773 = vrot.slane %v750, %v772
        %v775 = vmul.f32 %v767, %v773
        %v776 = vmul.f32 %v768, %v773
        %v777 = vpack.c.bf16 %v776, %v775
        %v778 = vld [vmem:[%s688] sm:$0xf]
        %v779 = vld [vmem:[%s688 + $0x4] sm:$0xf]
        %v780 = vld [vmem:[%s688 + $0x8] sm:$0xf]
        %v781 = vld [vmem:[%s688 + $0xc] sm:$0xf]
        %v786 = vunpack.c.l.b16 %v778
        %v787 = vunpack.c.l.b16 %v779
        %v788 = vunpack.c.l.b16 %v780
        %v789 = vunpack.c.l.b16 %v781
        %v790 = vpack.c.b16 %v787, %v786
        %v791 = vpack.c.b16 %v789, %v788
        %v795 = vsel %vm753, %v777, 0
        %797 = vmatprep.subr.bf16.mxu0 0
        %798 = vmatpush1.bf16.msra.mxu0 %v790
        %799 = vmatprep.subr.bf16.mxu0 0
        %800 = vmatpush1.bf16.msra.mxu0 %v791
        %801 = vmatprep.subr.bf16.mxu0 0
        %802 = vmatpush1.bf16.msra.mxu0 0
        %803 = vmatprep.subr.bf16.mxu0 0
        %804 = vmatpush1.bf16.msra.mxu0 0
        %805 = vmatprep.subr.bf16.mxu0 0
        %806 = vmatpush1.bf16.msra.mxu0 0
        %807 = vmatprep.subr.bf16.mxu0 0
        %808 = vmatpush1.bf16.msra.mxu0 0
        %809 = vmatprep.subr.bf16.mxu0 0
        %810 = vmatpush1.bf16.msra.mxu0 0
        %811 = vmatprep.subr.bf16.mxu0 0
        %812 = vmatpush1.bf16.msra.mxu0 0
        %813 = vmatprep.subr.bf16.mxu0 0
        %814 = vmatpush1.bf16.msra.mxu0 0
        %815 = vmatprep.subr.bf16.mxu0 0
        %816 = vmatpush1.bf16.msra.mxu0 0
        %817 = vmatprep.subr.bf16.mxu0 0
        %818 = vmatpush1.bf16.msra.mxu0 0
        %819 = vmatprep.subr.bf16.mxu0 0
        %820 = vmatpush1.bf16.msra.mxu0 0
        %821 = vmatprep.subr.bf16.mxu0 0
        %822 = vmatpush1.bf16.msra.mxu0 0
        %823 = vmatprep.subr.bf16.mxu0 0
        %824 = vmatpush1.bf16.msra.mxu0 0
        %825 = vmatprep.subr.bf16.mxu0 0
        %826 = vmatpush1.bf16.msra.mxu0 0
        %827 = vmatprep.subr.bf16.mxu0 0
        %828 = vmatpush1.bf16.msra.mxu0 0
        %829 = vmatprep.mubr.bf16.mxu0 0
        %830 = vmatmul.mubr.bf16.gmra.mrb[0].mxu0 %v795
        %v831 = vpop.f32.mrb[0].mxu0
        %v832 = vadd.f32 0.0, %v831
        %v833 = vpop.f32.mrb[0].mxu0
        %v834 = vpop.f32.mrb[0].mxu0
        %v835 = vadd.f32 0.0, %v834
        %v836 = vpop.f32.mrb[0].mxu0
        %837 = vdwg.mxu0
        %v838 = vld [vmem:[%s693] sm:$0xf]
        %v839 = vld [vmem:[%s693 + $0x4] sm:$0xf]
        %v840 = vld [vmem:[%s693 + $0x8] sm:$0xf]
        %v841 = vld [vmem:[%s693 + $0xc] sm:$0xf]
        %v846 = vunpack.c.l.b16 %v838
        %v847 = vunpack.c.l.b16 %v839
        %v848 = vunpack.c.l.b16 %v840
        %v849 = vunpack.c.l.b16 %v841
        %v850 = vpack.c.b16 %v847, %v846
        %v851 = vpack.c.b16 %v849, %v848
        %854 = vmatprep.subr.bf16.mxu0 0
        %855 = vmatpush1.bf16.msra.mxu0 %v850
        %856 = vmatprep.subr.bf16.mxu0 0
        %857 = vmatpush1.bf16.msra.mxu0 %v851
        %858 = vmatprep.subr.bf16.mxu0 0
        %859 = vmatpush1.bf16.msra.mxu0 0
        %860 = vmatprep.subr.bf16.mxu0 0
        %861 = vmatpush1.bf16.msra.mxu0 0
        %862 = vmatprep.subr.bf16.mxu0 0
        %863 = vmatpush1.bf16.msra.mxu0 0
        %864 = vmatprep.subr.bf16.mxu0 0
        %865 = vmatpush1.bf16.msra.mxu0 0
        %866 = vmatprep.subr.bf16.mxu0 0
        %867 = vmatpush1.bf16.msra.mxu0 0
        %868 = vmatprep.subr.bf16.mxu0 0
        %869 = vmatpush1.bf16.msra.mxu0 0
        %870 = vmatprep.subr.bf16.mxu0 0
        %871 = vmatpush1.bf16.msra.mxu0 0
        %872 = vmatprep.subr.bf16.mxu0 0
        %873 = vmatpush1.bf16.msra.mxu0 0
        %874 = vmatprep.subr.bf16.mxu0 0
        %875 = vmatpush1.bf16.msra.mxu0 0
        %876 = vmatprep.subr.bf16.mxu0 0
        %877 = vmatpush1.bf16.msra.mxu0 0
        %878 = vmatprep.subr.bf16.mxu0 0
        %879 = vmatpush1.bf16.msra.mxu0 0
        %880 = vmatprep.subr.bf16.mxu0 0
        %881 = vmatpush1.bf16.msra.mxu0 0
        %882 = vmatprep.subr.bf16.mxu0 0
        %883 = vmatpush1.bf16.msra.mxu0 0
        %884 = vmatprep.subr.bf16.mxu0 0
        %885 = vmatpush1.bf16.msra.mxu0 0
        %886 = vmatprep.mubr.bf16.mxu0 0
        %887 = vmatmul.mubr.bf16.gmra.mrb[0].mxu0 %v795
        %v888 = vpop.f32.mrb[0].mxu0
        %v889 = vadd.f32 0.0, %v888
        %v890 = vpop.f32.mrb[0].mxu0
        %v891 = vpop.f32.mrb[0].mxu0
        %v892 = vadd.f32 0.0, %v891
        %v893 = vpop.f32.mrb[0].mxu0
        %894 = vdwg.mxu0
        %v895 = vld [vmem:[#allocation7 + $0x8] sm:$0x7]
        %v896 = vld [vmem:[#allocation7 + $0x18] sm:$0x7]
        %p897 = scmp.gt.s32.totalorder %s31, 0
        %s898 = scalar_select %p897, 1, 0
        %v899 = vstv %s898
        %vm900 = vcmp.eq.s32.totalorder %v899, 1
        %v901 = vsel %vm900, %v895, 0.0
        %v902 = vsel %vm900, %v896, 0.0
        %vm903 = vcmask 518144
        %904 = vst.msk [vmem:[#allocation7] sm:$0x7] %vm903, %v901
        %905 = vst.msk [vmem:[#allocation7 + $0x10] sm:$0x7] %vm903, %v902
        %vm906 = vcmask 523264
        %907 = vst.msk [vmem:[#allocation7 + $0x3] sm:$0xff] %vm906, %v832
        %908 = vst.msk [vmem:[#allocation7 + $0x13] sm:$0xff] %vm906, %v835
        %v909 = vld [vmem:[%s697] sm:$0xf]
        %v910 = vld [vmem:[%s700] sm:$0x1]
        %v912 = vlaneseq
        %v913 = vshrl.u32 %v912, 7
        %v914 = vsub.s32 0, %v913
        %v915 = vrot.slane %v910, %v914
        %v917 = vadd.f32 %v915, 0.0
        %v918 = vld [vmem:[#allocation7] sm:$0xff]
        %v919 = vld [vmem:[#allocation7 + $0x10] sm:$0xff]
        %v920 = vlaneseq
        %v921 = vshrl.u32 %v920, 7
        %v922 = vsub.s32 0, %v921
        %v923 = vrot.slane %v909, %v922
        %v924 = vmul.f32 %v918, %v923
        %v925 = vmul.f32 %v919, %v923
        %v926 = vadd.f32 %v917, %v924
        %v927 = vadd.f32 %v917, %v925
        %v928 = vld [vmem:[#allocation7 + $0x1] sm:$0xff]
        %v929 = vld [vmem:[#allocation7 + $0x11] sm:$0xff]
        %v930 = vlaneseq
        %v931 = vshrl.u32 %v930, 7
        %v932 = vsub.s32 1, %v931
        %v933 = vrot.slane %v909, %v932
        %v934 = vmul.f32 %v928, %v933
        %v935 = vmul.f32 %v929, %v933
        %v936 = vadd.f32 %v926, %v934
        %v937 = vadd.f32 %v927, %v935
        %v938 = vld [vmem:[#allocation7 + $0x2] sm:$0xff]
        %v939 = vld [vmem:[#allocation7 + $0x12] sm:$0xff]
        %v940 = vlaneseq
        %v941 = vshrl.u32 %v940, 7
        %v942 = vsub.s32 2, %v941
        %v943 = vrot.slane %v909, %v942
        %v944 = vmul.f32 %v938, %v943
        %v945 = vmul.f32 %v939, %v943
        %v946 = vadd.f32 %v936, %v944
        %v947 = vadd.f32 %v937, %v945
        %v948 = vld [vmem:[#allocation7 + $0x3] sm:$0xff]
        %v949 = vld [vmem:[#allocation7 + $0x13] sm:$0xff]
        %v950 = vlaneseq
        %v951 = vshrl.u32 %v950, 7
        %v952 = vsub.s32 3, %v951
        %v953 = vrot.slane %v909, %v952
        %v954 = vmul.f32 %v948, %v953
        %v955 = vmul.f32 %v949, %v953
        %v956 = vadd.f32 %v946, %v954
        %v957 = vadd.f32 %v947, %v955
        %v958 = vxor.u32 %v956, 2147483648
        %v959 = vxor.u32 %v957, 2147483648
        %v960 = vmul.f32 %v958, 1.442695
        %v961 = vpow.pop %v960
        %v962 = vmul.f32 %v959, 1.442695
        %v963 = vpow.pop %v962
        %v964 = vadd.f32 %v961, 1.0
        %v965 = vadd.f32 %v963, 1.0
        %v966 = vrcp.pop %v964
        %v967 = vmul.f32 1.0, %v966
        %v968 = vrcp.pop %v965
        %v969 = vmul.f32 1.0, %v968
        %v970 = vmul.f32 %v956, %v967
        %v971 = vmul.f32 %v957, %v969
        %v972 = vpack.c.bf16 %v971, %v970
        %v973 = vld [vmem:[%s705] sm:$0xf]
        %v974 = vld [vmem:[%s705 + $0x4] sm:$0xf]
        %v975 = vld [vmem:[%s705 + $0x8] sm:$0xf]
        %v976 = vld [vmem:[%s705 + $0xc] sm:$0xf]
        %v977 = vld [vmem:[%s705 + $0x10] sm:$0xf]
        %v978 = vld [vmem:[%s705 + $0x14] sm:$0xf]
        %v979 = vld [vmem:[%s705 + $0x18] sm:$0xf]
        %v980 = vld [vmem:[%s705 + $0x1c] sm:$0xf]
        %v989 = vunpack.c.l.b16 %v973
        %v990 = vunpack.c.l.b16 %v974
        %v991 = vunpack.c.l.b16 %v975
        %v992 = vunpack.c.l.b16 %v976
        %v993 = vunpack.c.l.b16 %v977
        %v994 = vunpack.c.l.b16 %v978
        %v995 = vunpack.c.l.b16 %v979
        %v996 = vunpack.c.l.b16 %v980
        %v997 = vpack.c.b16 %v990, %v989
        %v998 = vpack.c.b16 %v992, %v991
        %v999 = vpack.c.b16 %v994, %v993
        %v1000 = vpack.c.b16 %v996, %v995
        %v1006 = vsel %vm906, %v972, 0
        %1008 = vmatprep.subr.bf16.mxu0 0
        %1009 = vmatpush1.bf16.msra.mxu0 %v997
        %1010 = vmatprep.subr.bf16.mxu0 0
        %1011 = vmatpush1.bf16.msra.mxu0 %v998
        %1012 = vmatprep.subr.bf16.mxu0 0
        %1013 = vmatpush1.bf16.msra.mxu0 %v999
        %1014 = vmatprep.subr.bf16.mxu0 0
        %1015 = vmatpush1.bf16.msra.mxu0 %v1000
        %1016 = vmatprep.subr.bf16.mxu0 0
        %1017 = vmatpush1.bf16.msra.mxu0 0
        %1018 = vmatprep.subr.bf16.mxu0 0
        %1019 = vmatpush1.bf16.msra.mxu0 0
        %1020 = vmatprep.subr.bf16.mxu0 0
        %1021 = vmatpush1.bf16.msra.mxu0 0
        %1022 = vmatprep.subr.bf16.mxu0 0
        %1023 = vmatpush1.bf16.msra.mxu0 0
        %1024 = vmatprep.subr.bf16.mxu0 0
        %1025 = vmatpush1.bf16.msra.mxu0 0
        %1026 = vmatprep.subr.bf16.mxu0 0
        %1027 = vmatpush1.bf16.msra.mxu0 0
        %1028 = vmatprep.subr.bf16.mxu0 0
        %1029 = vmatpush1.bf16.msra.mxu0 0
        %1030 = vmatprep.subr.bf16.mxu0 0
        %1031 = vmatpush1.bf16.msra.mxu0 0
        %1032 = vmatprep.subr.bf16.mxu0 0
        %1033 = vmatpush1.bf16.msra.mxu0 0
        %1034 = vmatprep.subr.bf16.mxu0 0
        %1035 = vmatpush1.bf16.msra.mxu0 0
        %1036 = vmatprep.subr.bf16.mxu0 0
        %1037 = vmatpush1.bf16.msra.mxu0 0
        %1038 = vmatprep.subr.bf16.mxu0 0
        %1039 = vmatpush1.bf16.msra.mxu0 0
        %1040 = vmatprep.mubr.bf16.mxu0 0
        %1041 = vmatmul.mubr.bf16.gmra.mrb[0].mxu0 %v1006
        %v1042 = vpop.f32.mrb[0].mxu0
        %v1043 = vadd.f32 0.0, %v1042
        %v1044 = vpop.f32.mrb[0].mxu0
        %v1045 = vpop.f32.mrb[0].mxu0
        %v1046 = vadd.f32 0.0, %v1045
        %v1047 = vpop.f32.mrb[0].mxu0
        %1048 = vdwg.mxu0
        %v1049 = vpack.c.bf16 %v1046, %v1043
        %v1050 = vld [vmem:[%s710] sm:$0xf]
        %v1051 = vld [vmem:[%s710 + $0x4] sm:$0xf]
        %v1052 = vld [vmem:[%s710 + $0x8] sm:$0xf]
        %v1053 = vld [vmem:[%s710 + $0xc] sm:$0xf]
        %v1054 = vld [vmem:[%s710 + $0x10] sm:$0xf]
        %v1055 = vld [vmem:[%s710 + $0x14] sm:$0xf]
        %v1056 = vld [vmem:[%s710 + $0x18] sm:$0xf]
        %v1057 = vld [vmem:[%s710 + $0x1c] sm:$0xf]
        %v1058 = vld [vmem:[%s710 + $0x20] sm:$0xf]
        %v1059 = vld [vmem:[%s710 + $0x24] sm:$0xf]
        %v1060 = vld [vmem:[%s710 + $0x28] sm:$0xf]
        %v1061 = vld [vmem:[%s710 + $0x2c] sm:$0xf]
        %v1062 = vld [vmem:[%s710 + $0x30] sm:$0xf]
        %v1063 = vld [vmem:[%s710 + $0x34] sm:$0xf]
        %v1064 = vld [vmem:[%s710 + $0x38] sm:$0xf]
        %v1065 = vld [vmem:[%s710 + $0x3c] sm:$0xf]
        %v1066 = vld [vmem:[%s713] sm:$0x1]
        %v1068 = vlaneseq
        %v1069 = vshrl.u32 %v1068, 7
        %v1070 = vsub.s32 0, %v1069
        %v1071 = vrot.slane %v1066, %v1070
        %v1089 = vunpack.c.l.b16 %v1050
        %v1090 = vunpack.c.l.b16 %v1051
        %v1091 = vunpack.c.l.b16 %v1052
        %v1092 = vunpack.c.l.b16 %v1053
        %v1093 = vunpack.c.l.b16 %v1054
        %v1094 = vunpack.c.l.b16 %v1055
        %v1095 = vunpack.c.l.b16 %v1056
        %v1096 = vunpack.c.l.b16 %v1057
        %v1097 = vunpack.c.l.b16 %v1058
        %v1098 = vunpack.c.l.b16 %v1059
        %v1099 = vunpack.c.l.b16 %v1060
        %v1100 = vunpack.c.l.b16 %v1061
        %v1101 = vunpack.c.l.b16 %v1062
        %v1102 = vunpack.c.l.b16 %v1063
        %v1103 = vunpack.c.l.b16 %v1064
        %v1104 = vunpack.c.l.b16 %v1065
        %v1105 = vpack.c.b16 %v1090, %v1089
        %v1106 = vpack.c.b16 %v1092, %v1091
        %v1107 = vpack.c.b16 %v1094, %v1093
        %v1108 = vpack.c.b16 %v1096, %v1095
        %v1109 = vpack.c.b16 %v1098, %v1097
        %v1110 = vpack.c.b16 %v1100, %v1099
        %v1111 = vpack.c.b16 %v1102, %v1101
        %v1112 = vpack.c.b16 %v1104, %v1103
        %1121 = vmatprep.subr.bf16.mxu0 0
        %1122 = vmatpush1.bf16.msra.mxu0 %v1105
        %1123 = vmatprep.subr.bf16.mxu0 0
        %1124 = vmatpush1.bf16.msra.mxu0 %v1106
        %1125 = vmatprep.subr.bf16.mxu0 0
        %1126 = vmatpush1.bf16.msra.mxu0 %v1107
        %1127 = vmatprep.subr.bf16.mxu0 0
        %1128 = vmatpush1.bf16.msra.mxu0 %v1108
        %1129 = vmatprep.subr.bf16.mxu0 0
        %1130 = vmatpush1.bf16.msra.mxu0 %v1109
        %1131 = vmatprep.subr.bf16.mxu0 0
        %1132 = vmatpush1.bf16.msra.mxu0 %v1110
        %1133 = vmatprep.subr.bf16.mxu0 0
        %1134 = vmatpush1.bf16.msra.mxu0 %v1111
        %1135 = vmatprep.subr.bf16.mxu0 0
        %1136 = vmatpush1.bf16.msra.mxu0 %v1112
        %1137 = vmatprep.subr.bf16.mxu0 0
        %1138 = vmatpush1.bf16.msra.mxu0 0
        %1139 = vmatprep.subr.bf16.mxu0 0
        %1140 = vmatpush1.bf16.msra.mxu0 0
        %1141 = vmatprep.subr.bf16.mxu0 0
        %1142 = vmatpush1.bf16.msra.mxu0 0
        %1143 = vmatprep.subr.bf16.mxu0 0
        %1144 = vmatpush1.bf16.msra.mxu0 0
        %1145 = vmatprep.subr.bf16.mxu0 0
        %1146 = vmatpush1.bf16.msra.mxu0 0
        %1147 = vmatprep.subr.bf16.mxu0 0
        %1148 = vmatpush1.bf16.msra.mxu0 0
        %1149 = vmatprep.subr.bf16.mxu0 0
        %1150 = vmatpush1.bf16.msra.mxu0 0
        %1151 = vmatprep.subr.bf16.mxu0 0
        %1152 = vmatpush1.bf16.msra.mxu0 0
        %1153 = vmatprep.mubr.bf16.mxu0 0
        %1154 = vmatmul.mubr.bf16.gmra.mrb[0].mxu0 %v1049
        %v1155 = vpop.f32.mrb[0].mxu0
        %v1156 = vadd.f32 %v1071, %v1155
        %v1157 = vpop.f32.mrb[0].mxu0
        %v1158 = vpop.f32.mrb[0].mxu0
        %v1159 = vadd.f32 %v1071, %v1158
        %v1160 = vpop.f32.mrb[0].mxu0
        %1161 = vdwg.mxu0
        %v1162 = vmax.f32 %v1156, 0.0
        %v1163 = vmax.f32 %v1159, 0.0
        %v1164 = vand.u32 2147483647, %v1156
        %v1165 = vand.u32 2147483647, %v1159
        %v1166 = vsub.f32 0.0, %v1164
        %v1167 = vsub.f32 0.0, %v1165
        %v1168 = vmul.f32 %v1166, 1.442695
        %v1169 = vpow.pop %v1168
        %v1170 = vmul.f32 %v1167, 1.442695
        %v1171 = vpow.pop %v1170
        %v1172 = vadd.f32 %v1169, 1.0
        %v1173 = vadd.f32 %v1171, 1.0
        %v1174 = vlog2.pop %v1172
        %v1175 = vmul.f32 %v1174, 0.6931472
        %v1176 = vlog2.pop %v1173
        %v1177 = vmul.f32 %v1176, 0.6931472
        %v1178 = vadd.f32 %v1162, %v1175
        %v1179 = vadd.f32 %v1163, %v1177
        %v1180 = vld [vmem:[%s718] sm:$0xf]
        %v1181 = vld [vmem:[%s718 + $0x4] sm:$0xf]
        %v1182 = vld [vmem:[%s718 + $0x8] sm:$0xf]
        %v1183 = vld [vmem:[%s718 + $0xc] sm:$0xf]
        %v1184 = vld [vmem:[%s718 + $0x10] sm:$0xf]
        %v1185 = vld [vmem:[%s718 + $0x14] sm:$0xf]
        %v1186 = vld [vmem:[%s718 + $0x18] sm:$0xf]
        %v1187 = vld [vmem:[%s718 + $0x1c] sm:$0xf]
        %v1196 = vunpack.c.l.b16 %v1180
        %v1197 = vunpack.c.l.b16 %v1181
        %v1198 = vunpack.c.l.b16 %v1182
        %v1199 = vunpack.c.l.b16 %v1183
        %v1200 = vunpack.c.l.b16 %v1184
        %v1201 = vunpack.c.l.b16 %v1185
        %v1202 = vunpack.c.l.b16 %v1186
        %v1203 = vunpack.c.l.b16 %v1187
        %v1204 = vpack.c.b16 %v1197, %v1196
        %v1205 = vpack.c.b16 %v1199, %v1198
        %v1206 = vpack.c.b16 %v1201, %v1200
        %v1207 = vpack.c.b16 %v1203, %v1202
        %1212 = vmatprep.subr.bf16.mxu0 0
        %1213 = vmatpush1.bf16.msra.mxu0 %v1204
        %1214 = vmatprep.subr.bf16.mxu0 0
        %1215 = vmatpush1.bf16.msra.mxu0 %v1205
        %1216 = vmatprep.subr.bf16.mxu0 0
        %1217 = vmatpush1.bf16.msra.mxu0 %v1206
        %1218 = vmatprep.subr.bf16.mxu0 0
        %1219 = vmatpush1.bf16.msra.mxu0 %v1207
        %1220 = vmatprep.subr.bf16.mxu0 0
        %1221 = vmatpush1.bf16.msra.mxu0 0
        %1222 = vmatprep.subr.bf16.mxu0 0
        %1223 = vmatpush1.bf16.msra.mxu0 0
        %1224 = vmatprep.subr.bf16.mxu0 0
        %1225 = vmatpush1.bf16.msra.mxu0 0
        %1226 = vmatprep.subr.bf16.mxu0 0
        %1227 = vmatpush1.bf16.msra.mxu0 0
        %1228 = vmatprep.subr.bf16.mxu0 0
        %1229 = vmatpush1.bf16.msra.mxu0 0
        %1230 = vmatprep.subr.bf16.mxu0 0
        %1231 = vmatpush1.bf16.msra.mxu0 0
        %1232 = vmatprep.subr.bf16.mxu0 0
        %1233 = vmatpush1.bf16.msra.mxu0 0
        %1234 = vmatprep.subr.bf16.mxu0 0
        %1235 = vmatpush1.bf16.msra.mxu0 0
        %1236 = vmatprep.subr.bf16.mxu0 0
        %1237 = vmatpush1.bf16.msra.mxu0 0
        %1238 = vmatprep.subr.bf16.mxu0 0
        %1239 = vmatpush1.bf16.msra.mxu0 0
        %1240 = vmatprep.subr.bf16.mxu0 0
        %1241 = vmatpush1.bf16.msra.mxu0 0
        %1242 = vmatprep.subr.bf16.mxu0 0
        %1243 = vmatpush1.bf16.msra.mxu0 0
        %1244 = vmatprep.mubr.bf16.mxu0 0
        %1245 = vmatmul.mubr.bf16.gmra.mrb[0].mxu0 %v1006
        %v1246 = vpop.f32.mrb[0].mxu0
        %v1247 = vadd.f32 0.0, %v1246
        %v1248 = vpop.f32.mrb[0].mxu0
        %v1249 = vpop.f32.mrb[0].mxu0
        %v1250 = vadd.f32 0.0, %v1249
        %v1251 = vpop.f32.mrb[0].mxu0
        %1252 = vdwg.mxu0
        %v1253 = vld [vmem:[%s723] sm:$0xf]
        %v1254 = vld [vmem:[%s723 + $0x4] sm:$0xf]
        %v1255 = vld [vmem:[%s723 + $0x8] sm:$0xf]
        %v1256 = vld [vmem:[%s723 + $0xc] sm:$0xf]
        %v1257 = vld [vmem:[%s723 + $0x10] sm:$0xf]
        %v1258 = vld [vmem:[%s723 + $0x14] sm:$0xf]
        %v1259 = vld [vmem:[%s723 + $0x18] sm:$0xf]
        %v1260 = vld [vmem:[%s723 + $0x1c] sm:$0xf]
        %v1269 = vunpack.c.l.b16 %v1253
        %v1270 = vunpack.c.l.b16 %v1254
        %v1271 = vunpack.c.l.b16 %v1255
        %v1272 = vunpack.c.l.b16 %v1256
        %v1273 = vunpack.c.l.b16 %v1257
        %v1274 = vunpack.c.l.b16 %v1258
        %v1275 = vunpack.c.l.b16 %v1259
        %v1276 = vunpack.c.l.b16 %v1260
        %v1277 = vpack.c.b16 %v1270, %v1269
        %v1278 = vpack.c.b16 %v1272, %v1271
        %v1279 = vpack.c.b16 %v1274, %v1273
        %v1280 = vpack.c.b16 %v1276, %v1275
        %1285 = vmatprep.subr.bf16.mxu0 0
        %1286 = vmatpush1.bf16.msra.mxu0 %v1277
        %1287 = vmatprep.subr.bf16.mxu0 0
        %1288 = vmatpush1.bf16.msra.mxu0 %v1278
        %1289 = vmatprep.subr.bf16.mxu0 0
        %1290 = vmatpush1.bf16.msra.mxu0 %v1279
        %1291 = vmatprep.subr.bf16.mxu0 0
        %1292 = vmatpush1.bf16.msra.mxu0 %v1280
        %1293 = vmatprep.subr.bf16.mxu0 0
        %1294 = vmatpush1.bf16.msra.mxu0 0
        %1295 = vmatprep.subr.bf16.mxu0 0
        %1296 = vmatpush1.bf16.msra.mxu0 0
        %1297 = vmatprep.subr.bf16.mxu0 0
        %1298 = vmatpush1.bf16.msra.mxu0 0
        %1299 = vmatprep.subr.bf16.mxu0 0
        %1300 = vmatpush1.bf16.msra.mxu0 0
        %1301 = vmatprep.subr.bf16.mxu0 0
        %1302 = vmatpush1.bf16.msra.mxu0 0
        %1303 = vmatprep.subr.bf16.mxu0 0
        %1304 = vmatpush1.bf16.msra.mxu0 0
        %1305 = vmatprep.subr.bf16.mxu0 0
        %1306 = vmatpush1.bf16.msra.mxu0 0
        %1307 = vmatprep.subr.bf16.mxu0 0
        %1308 = vmatpush1.bf16.msra.mxu0 0
        %1309 = vmatprep.subr.bf16.mxu0 0
        %1310 = vmatpush1.bf16.msra.mxu0 0
        %1311 = vmatprep.subr.bf16.mxu0 0
        %1312 = vmatpush1.bf16.msra.mxu0 0
        %1313 = vmatprep.subr.bf16.mxu0 0
        %1314 = vmatpush1.bf16.msra.mxu0 0
        %1315 = vmatprep.subr.bf16.mxu0 0
        %1316 = vmatpush1.bf16.msra.mxu0 0
        %1317 = vmatprep.mubr.bf16.mxu0 0
        %1318 = vmatmul.mubr.bf16.gmra.mrb[0].mxu0 %v1006
        %v1319 = vpop.f32.mrb[0].mxu0
        %v1320 = vadd.f32 0.0, %v1319
        %v1321 = vpop.f32.mrb[0].mxu0
        %v1322 = vpop.f32.mrb[0].mxu0
        %v1323 = vadd.f32 0.0, %v1322
        %v1324 = vpop.f32.mrb[0].mxu0
        %1325 = vdwg.mxu0
        %v1326 = vld [vmem:[%s728] sm:$0xff]
        %v1327 = vld [vmem:[%s728 + $0x8] sm:$0xff]
        %v1330 = vcombine.high %v1178, %v1178
        %v1332 = vunpack.c.l.s4 1966171168
        %v1333 = vunpack.c.0.s8 %v1332
        %v1334 = vlaneseq
        %v1335 = vshrl.u32 %v1334, 7
        %v1336 = vsub.s32 %v1333, %v1335
        %v1337 = vrot.slane %v1178, %v1336
        %v1339 = vunpack.c.l.s4 1966171168
        %v1340 = vunpack.c.0.s8 %v1339
        %v1341 = vlaneseq
        %v1342 = vshrl.u32 %v1341, 7
        %v1343 = vsub.s32 %v1340, %v1342
        %v1344 = vrot.slane %v1330, %v1343
        %v1345 = vcombine.high %v1337, %v1337
        %v1346 = vcombine.high %v1344, %v1344
        %v1348 = vunpack.c.l.s4 1966171168
        %v1349 = vunpack.c.0.s8 %v1348
        %v1350 = vlaneseq
        %v1351 = vshrl.u32 %v1350, 7
        %v1352 = vsub.s32 %v1349, %v1351
        %v1353 = vrot.slane %v1337, %v1352
        %v1355 = vunpack.c.l.s4 1966171168
        %v1356 = vunpack.c.0.s8 %v1355
        %v1357 = vlaneseq
        %v1358 = vshrl.u32 %v1357, 7
        %v1359 = vsub.s32 %v1356, %v1358
        %v1360 = vrot.slane %v1344, %v1359
        %v1362 = vunpack.c.l.s4 1966171168
        %v1363 = vunpack.c.0.s8 %v1362
        %v1364 = vlaneseq
        %v1365 = vshrl.u32 %v1364, 7
        %v1366 = vsub.s32 %v1363, %v1365
        %v1367 = vrot.slane %v1345, %v1366
        %v1369 = vunpack.c.l.s4 1966171168
        %v1370 = vunpack.c.0.s8 %v1369
        %v1371 = vlaneseq
        %v1372 = vshrl.u32 %v1371, 7
        %v1373 = vsub.s32 %v1370, %v1372
        %v1374 = vrot.slane %v1346, %v1373
        %v1375 = vcombine.high %v1353, %v1353
        %v1376 = vcombine.high %v1360, %v1360
        %v1377 = vcombine.high %v1367, %v1367
        %v1378 = vcombine.high %v1374, %v1374
        %v1379 = vcombine.high %v1179, %v1179
        %v1381 = vunpack.c.l.s4 1966171168
        %v1382 = vunpack.c.0.s8 %v1381
        %v1383 = vlaneseq
        %v1384 = vshrl.u32 %v1383, 7
        %v1385 = vsub.s32 %v1382, %v1384
        %v1386 = vrot.slane %v1179, %v1385
        %v1388 = vunpack.c.l.s4 1966171168
        %v1389 = vunpack.c.0.s8 %v1388
        %v1390 = vlaneseq
        %v1391 = vshrl.u32 %v1390, 7
        %v1392 = vsub.s32 %v1389, %v1391
        %v1393 = vrot.slane %v1379, %v1392
        %v1394 = vcombine.high %v1386, %v1386
        %v1395 = vcombine.high %v1393, %v1393
        %v1397 = vunpack.c.l.s4 1966171168
        %v1398 = vunpack.c.0.s8 %v1397
        %v1399 = vlaneseq
        %v1400 = vshrl.u32 %v1399, 7
        %v1401 = vsub.s32 %v1398, %v1400
        %v1402 = vrot.slane %v1386, %v1401
        %v1404 = vunpack.c.l.s4 1966171168
        %v1405 = vunpack.c.0.s8 %v1404
        %v1406 = vlaneseq
        %v1407 = vshrl.u32 %v1406, 7
        %v1408 = vsub.s32 %v1405, %v1407
        %v1409 = vrot.slane %v1393, %v1408
        %v1411 = vunpack.c.l.s4 1966171168
        %v1412 = vunpack.c.0.s8 %v1411
        %v1413 = vlaneseq
        %v1414 = vshrl.u32 %v1413, 7
        %v1415 = vsub.s32 %v1412, %v1414
        %v1416 = vrot.slane %v1394, %v1415
        %v1418 = vunpack.c.l.s4 1966171168
        %v1419 = vunpack.c.0.s8 %v1418
        %v1420 = vlaneseq
        %v1421 = vshrl.u32 %v1420, 7
        %v1422 = vsub.s32 %v1419, %v1421
        %v1423 = vrot.slane %v1395, %v1422
        %v1424 = vcombine.high %v1402, %v1402
        %v1425 = vcombine.high %v1409, %v1409
        %v1426 = vcombine.high %v1416, %v1416
        %v1427 = vcombine.high %v1423, %v1423
        %v1428 = vlaneseq
        %v1429 = vshrl.u32 %v1428, 7
        %v1430 = vsub.s32 0, %v1429
        %v1431 = vrot.slane %v1353, %v1430
        %v1432 = vlaneseq
        %v1433 = vshrl.u32 %v1432, 7
        %v1434 = vsub.s32 0, %v1433
        %v1435 = vrot.slane %v1367, %v1434
        %v1436 = vlaneseq
        %v1437 = vshrl.u32 %v1436, 7
        %v1438 = vsub.s32 0, %v1437
        %v1439 = vrot.slane %v1375, %v1438
        %v1440 = vlaneseq
        %v1441 = vshrl.u32 %v1440, 7
        %v1442 = vsub.s32 0, %v1441
        %v1443 = vrot.slane %v1377, %v1442
        %v1444 = vlaneseq
        %v1445 = vshrl.u32 %v1444, 7
        %v1446 = vsub.s32 0, %v1445
        %v1447 = vrot.slane %v1360, %v1446
        %v1448 = vlaneseq
        %v1449 = vshrl.u32 %v1448, 7
        %v1450 = vsub.s32 0, %v1449
        %v1451 = vrot.slane %v1374, %v1450
        %v1452 = vlaneseq
        %v1453 = vshrl.u32 %v1452, 7
        %v1454 = vsub.s32 0, %v1453
        %v1455 = vrot.slane %v1376, %v1454
        %v1456 = vlaneseq
        %v1457 = vshrl.u32 %v1456, 7
        %v1458 = vsub.s32 0, %v1457
        %v1459 = vrot.slane %v1378, %v1458
        %v1460 = vlaneseq
        %v1461 = vshrl.u32 %v1460, 7
        %v1462 = vsub.s32 0, %v1461
        %v1463 = vrot.slane %v1402, %v1462
        %v1464 = vlaneseq
        %v1465 = vshrl.u32 %v1464, 7
        %v1466 = vsub.s32 0, %v1465
        %v1467 = vrot.slane %v1416, %v1466
        %v1468 = vlaneseq
        %v1469 = vshrl.u32 %v1468, 7
        %v1470 = vsub.s32 0, %v1469
        %v1471 = vrot.slane %v1424, %v1470
        %v1472 = vlaneseq
        %v1473 = vshrl.u32 %v1472, 7
        %v1474 = vsub.s32 0, %v1473
        %v1475 = vrot.slane %v1426, %v1474
        %v1476 = vlaneseq
        %v1477 = vshrl.u32 %v1476, 7
        %v1478 = vsub.s32 0, %v1477
        %v1479 = vrot.slane %v1409, %v1478
        %v1480 = vlaneseq
        %v1481 = vshrl.u32 %v1480, 7
        %v1482 = vsub.s32 0, %v1481
        %v1483 = vrot.slane %v1423, %v1482
        %v1484 = vlaneseq
        %v1485 = vshrl.u32 %v1484, 7
        %v1486 = vsub.s32 0, %v1485
        %v1487 = vrot.slane %v1425, %v1486
        %v1488 = vlaneseq
        %v1489 = vshrl.u32 %v1488, 7
        %v1490 = vsub.s32 0, %v1489
        %v1491 = vrot.slane %v1427, %v1490
        %v1508 = vmul.f32 %v1431, %v1326
        %v1509 = vmul.f32 %v1431, %v1327
        %v1510 = vmul.f32 %v1435, %v1326
        %v1511 = vmul.f32 %v1435, %v1327
        %v1512 = vmul.f32 %v1439, %v1326
        %v1513 = vmul.f32 %v1439, %v1327
        %v1514 = vmul.f32 %v1443, %v1326
        %v1515 = vmul.f32 %v1443, %v1327
        %v1516 = vmul.f32 %v1447, %v1326
        %v1517 = vmul.f32 %v1447, %v1327
        %v1518 = vmul.f32 %v1451, %v1326
        %v1519 = vmul.f32 %v1451, %v1327
        %v1520 = vmul.f32 %v1455, %v1326
        %v1521 = vmul.f32 %v1455, %v1327
        %v1522 = vmul.f32 %v1459, %v1326
        %v1523 = vmul.f32 %v1459, %v1327
        %v1524 = vmul.f32 %v1463, %v1326
        %v1525 = vmul.f32 %v1463, %v1327
        %v1526 = vmul.f32 %v1467, %v1326
        %v1527 = vmul.f32 %v1467, %v1327
        %v1528 = vmul.f32 %v1471, %v1326
        %v1529 = vmul.f32 %v1471, %v1327
        %v1530 = vmul.f32 %v1475, %v1326
        %v1531 = vmul.f32 %v1475, %v1327
        %v1532 = vmul.f32 %v1479, %v1326
        %v1533 = vmul.f32 %v1479, %v1327
        %v1534 = vmul.f32 %v1483, %v1326
        %v1535 = vmul.f32 %v1483, %v1327
        %v1536 = vmul.f32 %v1487, %v1326
        %v1537 = vmul.f32 %v1487, %v1327
        %v1538 = vmul.f32 %v1491, %v1326
        %v1539 = vmul.f32 %v1491, %v1327
        %v1540 = vmul.f32 %v1508, 1.442695
        %v1541 = vpow.pop %v1540
        %v1542 = vmul.f32 %v1509, 1.442695
        %v1543 = vpow.pop %v1542
        %v1544 = vmul.f32 %v1510, 1.442695
        %v1545 = vpow.pop %v1544
        %v1546 = vmul.f32 %v1511, 1.442695
        %v1547 = vpow.pop %v1546
        %v1548 = vmul.f32 %v1512, 1.442695
        %v1549 = vpow.pop %v1548
        %v1550 = vmul.f32 %v1513, 1.442695
        %v1551 = vpow.pop %v1550
        %v1552 = vmul.f32 %v1514, 1.442695
        %v1553 = vpow.pop %v1552
        %v1554 = vmul.f32 %v1515, 1.442695
        %v1555 = vpow.pop %v1554
        %v1556 = vmul.f32 %v1516, 1.442695
        %v1557 = vpow.pop %v1556
        %v1558 = vmul.f32 %v1517, 1.442695
        %v1559 = vpow.pop %v1558
        %v1560 = vmul.f32 %v1518, 1.442695
        %v1561 = vpow.pop %v1560
        %v1562 = vmul.f32 %v1519, 1.442695
        %v1563 = vpow.pop %v1562
        %v1564 = vmul.f32 %v1520, 1.442695
        %v1565 = vpow.pop %v1564
        %v1566 = vmul.f32 %v1521, 1.442695
        %v1567 = vpow.pop %v1566
        %v1568 = vmul.f32 %v1522, 1.442695
        %v1569 = vpow.pop %v1568
        %v1570 = vmul.f32 %v1523, 1.442695
        %v1571 = vpow.pop %v1570
        %v1572 = vmul.f32 %v1524, 1.442695
        %v1573 = vpow.pop %v1572
        %v1574 = vmul.f32 %v1525, 1.442695
        %v1575 = vpow.pop %v1574
        %v1576 = vmul.f32 %v1526, 1.442695
        %v1577 = vpow.pop %v1576
        %v1578 = vmul.f32 %v1527, 1.442695
        %v1579 = vpow.pop %v1578
        %v1580 = vmul.f32 %v1528, 1.442695
        %v1581 = vpow.pop %v1580
        %v1582 = vmul.f32 %v1529, 1.442695
        %v1583 = vpow.pop %v1582
        %v1584 = vmul.f32 %v1530, 1.442695
        %v1585 = vpow.pop %v1584
        %v1586 = vmul.f32 %v1531, 1.442695
        %v1587 = vpow.pop %v1586
        %v1588 = vmul.f32 %v1532, 1.442695
        %v1589 = vpow.pop %v1588
        %v1590 = vmul.f32 %v1533, 1.442695
        %v1591 = vpow.pop %v1590
        %v1592 = vmul.f32 %v1534, 1.442695
        %v1593 = vpow.pop %v1592
        %v1594 = vmul.f32 %v1535, 1.442695
        %v1595 = vpow.pop %v1594
        %v1596 = vmul.f32 %v1536, 1.442695
        %v1597 = vpow.pop %v1596
        %v1598 = vmul.f32 %v1537, 1.442695
        %v1599 = vpow.pop %v1598
        %v1600 = vmul.f32 %v1538, 1.442695
        %v1601 = vpow.pop %v1600
        %v1602 = vmul.f32 %v1539, 1.442695
        %v1603 = vpow.pop %v1602
        %1604 = vst.msk [vmem:[#allocation2] sm:$0xff] %vm906, %v1541
        %1605 = vst.msk [vmem:[#allocation2 + $0x8] sm:$0xff] %vm906, %v1543
        %1606 = vst.msk [vmem:[#allocation2 + $0x10] sm:$0xff] %vm906, %v1545
        %1607 = vst.msk [vmem:[#allocation2 + $0x18] sm:$0xff] %vm906, %v1547
        %1608 = vst.msk [vmem:[#allocation2 + $0x20] sm:$0xff] %vm906, %v1549
        %1609 = vst.msk [vmem:[#allocation2 + $0x28] sm:$0xff] %vm906, %v1551
        %1610 = vst.msk [vmem:[#allocation2 + $0x30] sm:$0xff] %vm906, %v1553
        %1611 = vst.msk [vmem:[#allocation2 + $0x38] sm:$0xff] %vm906, %v1555
        %1612 = vst.msk [vmem:[#allocation2 + $0x40] sm:$0xff] %vm906, %v1557
        %1613 = vst.msk [vmem:[#allocation2 + $0x48] sm:$0xff] %vm906, %v1559
        %1614 = vst.msk [vmem:[#allocation2 + $0x50] sm:$0xff] %vm906, %v1561
        %1615 = vst.msk [vmem:[#allocation2 + $0x58] sm:$0xff] %vm906, %v1563
        %1616 = vst.msk [vmem:[#allocation2 + $0x60] sm:$0xff] %vm906, %v1565
        %1617 = vst.msk [vmem:[#allocation2 + $0x68] sm:$0xff] %vm906, %v1567
        %1618 = vst.msk [vmem:[#allocation2 + $0x70] sm:$0xff] %vm906, %v1569
        %1619 = vst.msk [vmem:[#allocation2 + $0x78] sm:$0xff] %vm906, %v1571
        %1620 = vst.msk [vmem:[#allocation2 + $0x80] sm:$0xff] %vm906, %v1573
        %1621 = vst.msk [vmem:[#allocation2 + $0x88] sm:$0xff] %vm906, %v1575
        %1622 = vst.msk [vmem:[#allocation2 + $0x90] sm:$0xff] %vm906, %v1577
        %1623 = vst.msk [vmem:[#allocation2 + $0x98] sm:$0xff] %vm906, %v1579
        %1624 = vst.msk [vmem:[#allocation2 + $0xa0] sm:$0xff] %vm906, %v1581
        %1625 = vst.msk [vmem:[#allocation2 + $0xa8] sm:$0xff] %vm906, %v1583
        %1626 = vst.msk [vmem:[#allocation2 + $0xb0] sm:$0xff] %vm906, %v1585
        %1627 = vst.msk [vmem:[#allocation2 + $0xb8] sm:$0xff] %vm906, %v1587
        %1628 = vst.msk [vmem:[#allocation2 + $0xc0] sm:$0xff] %vm906, %v1589
        %1629 = vst.msk [vmem:[#allocation2 + $0xc8] sm:$0xff] %vm906, %v1591
        %1630 = vst.msk [vmem:[#allocation2 + $0xd0] sm:$0xff] %vm906, %v1593
        %1631 = vst.msk [vmem:[#allocation2 + $0xd8] sm:$0xff] %vm906, %v1595
        %1632 = vst.msk [vmem:[#allocation2 + $0xe0] sm:$0xff] %vm906, %v1597
        %1633 = vst.msk [vmem:[#allocation2 + $0xe8] sm:$0xff] %vm906, %v1599
        %1634 = vst.msk [vmem:[#allocation2 + $0xf0] sm:$0xff] %vm906, %v1601
        %1635 = vst.msk [vmem:[#allocation2 + $0xf8] sm:$0xff] %vm906, %v1603
        %v1636 = vmul.f32 %v1178, %v970
        %v1637 = vmul.f32 %v1179, %v971
        %v1640 = vcombine.high %v1636, %v1636
        %v1642 = vunpack.c.l.s4 1966171168
        %v1643 = vunpack.c.0.s8 %v1642
        %v1644 = vlaneseq
        %v1645 = vshrl.u32 %v1644, 7
        %v1646 = vsub.s32 %v1643, %v1645
        %v1647 = vrot.slane %v1636, %v1646
        %v1649 = vunpack.c.l.s4 1966171168
        %v1650 = vunpack.c.0.s8 %v1649
        %v1651 = vlaneseq
        %v1652 = vshrl.u32 %v1651, 7
        %v1653 = vsub.s32 %v1650, %v1652
        %v1654 = vrot.slane %v1640, %v1653
        %v1655 = vcombine.high %v1647, %v1647
        %v1656 = vcombine.high %v1654, %v1654
        %v1658 = vunpack.c.l.s4 1966171168
        %v1659 = vunpack.c.0.s8 %v1658
        %v1660 = vlaneseq
        %v1661 = vshrl.u32 %v1660, 7
        %v1662 = vsub.s32 %v1659, %v1661
        %v1663 = vrot.slane %v1647, %v1662
        %v1665 = vunpack.c.l.s4 1966171168
        %v1666 = vunpack.c.0.s8 %v1665
        %v1667 = vlaneseq
        %v1668 = vshrl.u32 %v1667, 7
        %v1669 = vsub.s32 %v1666, %v1668
        %v1670 = vrot.slane %v1654, %v1669
        %v1672 = vunpack.c.l.s4 1966171168
        %v1673 = vunpack.c.0.s8 %v1672
        %v1674 = vlaneseq
        %v1675 = vshrl.u32 %v1674, 7
        %v1676 = vsub.s32 %v1673, %v1675
        %v1677 = vrot.slane %v1655, %v1676
        %v1679 = vunpack.c.l.s4 1966171168
        %v1680 = vunpack.c.0.s8 %v1679
        %v1681 = vlaneseq
        %v1682 = vshrl.u32 %v1681, 7
        %v1683 = vsub.s32 %v1680, %v1682
        %v1684 = vrot.slane %v1656, %v1683
        %v1685 = vcombine.high %v1663, %v1663
        %v1686 = vcombine.high %v1670, %v1670
        %v1687 = vcombine.high %v1677, %v1677
        %v1688 = vcombine.high %v1684, %v1684
        %v1689 = vcombine.high %v1637, %v1637
        %v1691 = vunpack.c.l.s4 1966171168
        %v1692 = vunpack.c.0.s8 %v1691
        %v1693 = vlaneseq
        %v1694 = vshrl.u32 %v1693, 7
        %v1695 = vsub.s32 %v1692, %v1694
        %v1696 = vrot.slane %v1637, %v1695
        %v1698 = vunpack.c.l.s4 1966171168
        %v1699 = vunpack.c.0.s8 %v1698
        %v1700 = vlaneseq
        %v1701 = vshrl.u32 %v1700, 7
        %v1702 = vsub.s32 %v1699, %v1701
        %v1703 = vrot.slane %v1689, %v1702
        %v1704 = vcombine.high %v1696, %v1696
        %v1705 = vcombine.high %v1703, %v1703
        %v1707 = vunpack.c.l.s4 1966171168
        %v1708 = vunpack.c.0.s8 %v1707
        %v1709 = vlaneseq
        %v1710 = vshrl.u32 %v1709, 7
        %v1711 = vsub.s32 %v1708, %v1710
        %v1712 = vrot.slane %v1696, %v1711
        %v1714 = vunpack.c.l.s4 1966171168
        %v1715 = vunpack.c.0.s8 %v1714
        %v1716 = vlaneseq
        %v1717 = vshrl.u32 %v1716, 7
        %v1718 = vsub.s32 %v1715, %v1717
        %v1719 = vrot.slane %v1703, %v1718
        %v1721 = vunpack.c.l.s4 1966171168
        %v1722 = vunpack.c.0.s8 %v1721
        %v1723 = vlaneseq
        %v1724 = vshrl.u32 %v1723, 7
        %v1725 = vsub.s32 %v1722, %v1724
        %v1726 = vrot.slane %v1704, %v1725
        %v1728 = vunpack.c.l.s4 1966171168
        %v1729 = vunpack.c.0.s8 %v1728
        %v1730 = vlaneseq
        %v1731 = vshrl.u32 %v1730, 7
        %v1732 = vsub.s32 %v1729, %v1731
        %v1733 = vrot.slane %v1705, %v1732
        %v1734 = vcombine.high %v1712, %v1712
        %v1735 = vcombine.high %v1719, %v1719
        %v1736 = vcombine.high %v1726, %v1726
        %v1737 = vcombine.high %v1733, %v1733
        %v1738 = vlaneseq
        %v1739 = vshrl.u32 %v1738, 7
        %v1740 = vsub.s32 0, %v1739
        %v1741 = vrot.slane %v1247, %v1740
        %1743 = vbcast.lane.b32.xlu0 %v1741, 256
        %v1744 = vpop.permute.xlu0 %1743
        %s1746 = sor.u32 256, 8
        %1747 = vbcast.lane.b32.xlu0 %v1741, %s1746
        %v1748 = vpop.permute.xlu0 %1747
        %v1749 = vlaneseq
        %v1750 = vshrl.u32 %v1749, 7
        %v1751 = vsub.s32 1, %v1750
        %v1752 = vrot.slane %v1247, %v1751
        %1754 = vbcast.lane.b32.xlu0 %v1752, 256
        %v1755 = vpop.permute.xlu0 %1754
        %s1757 = sor.u32 256, 8
        %1758 = vbcast.lane.b32.xlu0 %v1752, %s1757
        %v1759 = vpop.permute.xlu0 %1758
        %v1760 = vlaneseq
        %v1761 = vshrl.u32 %v1760, 7
        %v1762 = vsub.s32 2, %v1761
        %v1763 = vrot.slane %v1247, %v1762
        %1765 = vbcast.lane.b32.xlu0 %v1763, 256
        %v1766 = vpop.permute.xlu0 %1765
        %s1768 = sor.u32 256, 8
        %1769 = vbcast.lane.b32.xlu0 %v1763, %s1768
        %v1770 = vpop.permute.xlu0 %1769
        %v1771 = vlaneseq
        %v1772 = vshrl.u32 %v1771, 7
        %v1773 = vsub.s32 3, %v1772
        %v1774 = vrot.slane %v1247, %v1773
        %1776 = vbcast.lane.b32.xlu0 %v1774, 256
        %v1777 = vpop.permute.xlu0 %1776
        %s1779 = sor.u32 256, 8
        %1780 = vbcast.lane.b32.xlu0 %v1774, %s1779
        %v1781 = vpop.permute.xlu0 %1780
        %v1782 = vlaneseq
        %v1783 = vshrl.u32 %v1782, 7
        %v1784 = vsub.s32 4, %v1783
        %v1785 = vrot.slane %v1247, %v1784
        %1787 = vbcast.lane.b32.xlu0 %v1785, 256
        %v1788 = vpop.permute.xlu0 %1787
        %s1790 = sor.u32 256, 8
        %1791 = vbcast.lane.b32.xlu0 %v1785, %s1790
        %v1792 = vpop.permute.xlu0 %1791
        %v1793 = vlaneseq
        %v1794 = vshrl.u32 %v1793, 7
        %v1795 = vsub.s32 5, %v1794
        %v1796 = vrot.slane %v1247, %v1795
        %1798 = vbcast.lane.b32.xlu0 %v1796, 256
        %v1799 = vpop.permute.xlu0 %1798
        %s1801 = sor.u32 256, 8
        %1802 = vbcast.lane.b32.xlu0 %v1796, %s1801
        %v1803 = vpop.permute.xlu0 %1802
        %v1804 = vlaneseq
        %v1805 = vshrl.u32 %v1804, 7
        %v1806 = vsub.s32 6, %v1805
        %v1807 = vrot.slane %v1247, %v1806
        %1809 = vbcast.lane.b32.xlu0 %v1807, 256
        %v1810 = vpop.permute.xlu0 %1809
        %s1812 = sor.u32 256, 8
        %1813 = vbcast.lane.b32.xlu0 %v1807, %s1812
        %v1814 = vpop.permute.xlu0 %1813
        %v1815 = vlaneseq
        %v1816 = vshrl.u32 %v1815, 7
        %v1817 = vsub.s32 7, %v1816
        %v1818 = vrot.slane %v1247, %v1817
        %1820 = vbcast.lane.b32.xlu0 %v1818, 256
        %v1821 = vpop.permute.xlu0 %1820
        %s1823 = sor.u32 256, 8
        %1824 = vbcast.lane.b32.xlu0 %v1818, %s1823
        %v1825 = vpop.permute.xlu0 %1824
        %v1826 = vlaneseq
        %v1827 = vshrl.u32 %v1826, 7
        %v1828 = vsub.s32 0, %v1827
        %v1829 = vrot.slane %v1250, %v1828
        %1831 = vbcast.lane.b32.xlu0 %v1829, 256
        %v1832 = vpop.permute.xlu0 %1831
        %s1834 = sor.u32 256, 8
        %1835 = vbcast.lane.b32.xlu0 %v1829, %s1834
        %v1836 = vpop.permute.xlu0 %1835
        %v1837 = vlaneseq
        %v1838 = vshrl.u32 %v1837, 7
        %v1839 = vsub.s32 1, %v1838
        %v1840 = vrot.slane %v1250, %v1839
        %1842 = vbcast.lane.b32.xlu0 %v1840, 256
        %v1843 = vpop.permute.xlu0 %1842
        %s1845 = sor.u32 256, 8
        %1846 = vbcast.lane.b32.xlu0 %v1840, %s1845
        %v1847 = vpop.permute.xlu0 %1846
        %v1848 = vlaneseq
        %v1849 = vshrl.u32 %v1848, 7
        %v1850 = vsub.s32 2, %v1849
        %v1851 = vrot.slane %v1250, %v1850
        %1853 = vbcast.lane.b32.xlu0 %v1851, 256
        %v1854 = vpop.permute.xlu0 %1853
        %s1856 = sor.u32 256, 8
        %1857 = vbcast.lane.b32.xlu0 %v1851, %s1856
        %v1858 = vpop.permute.xlu0 %1857
        %v1859 = vlaneseq
        %v1860 = vshrl.u32 %v1859, 7
        %v1861 = vsub.s32 3, %v1860
        %v1862 = vrot.slane %v1250, %v1861
        %1864 = vbcast.lane.b32.xlu0 %v1862, 256
        %v1865 = vpop.permute.xlu0 %1864
        %s1867 = sor.u32 256, 8
        %1868 = vbcast.lane.b32.xlu0 %v1862, %s1867
        %v1869 = vpop.permute.xlu0 %1868
        %v1870 = vlaneseq
        %v1871 = vshrl.u32 %v1870, 7
        %v1872 = vsub.s32 4, %v1871
        %v1873 = vrot.slane %v1250, %v1872
        %1875 = vbcast.lane.b32.xlu0 %v1873, 256
        %v1876 = vpop.permute.xlu0 %1875
        %s1878 = sor.u32 256, 8
        %1879 = vbcast.lane.b32.xlu0 %v1873, %s1878
        %v1880 = vpop.permute.xlu0 %1879
        %v1881 = vlaneseq
        %v1882 = vshrl.u32 %v1881, 7
        %v1883 = vsub.s32 5, %v1882
        %v1884 = vrot.slane %v1250, %v1883
        %1886 = vbcast.lane.b32.xlu0 %v1884, 256
        %v1887 = vpop.permute.xlu0 %1886
        %s1889 = sor.u32 256, 8
        %1890 = vbcast.lane.b32.xlu0 %v1884, %s1889
        %v1891 = vpop.permute.xlu0 %1890
        %v1892 = vlaneseq
        %v1893 = vshrl.u32 %v1892, 7
        %v1894 = vsub.s32 6, %v1893
        %v1895 = vrot.slane %v1250, %v1894
        %1897 = vbcast.lane.b32.xlu0 %v1895, 256
        %v1898 = vpop.permute.xlu0 %1897
        %s1900 = sor.u32 256, 8
        %1901 = vbcast.lane.b32.xlu0 %v1895, %s1900
        %v1902 = vpop.permute.xlu0 %1901
        %v1903 = vlaneseq
        %v1904 = vshrl.u32 %v1903, 7
        %v1905 = vsub.s32 7, %v1904
        %v1906 = vrot.slane %v1250, %v1905
        %1908 = vbcast.lane.b32.xlu0 %v1906, 256
        %v1909 = vpop.permute.xlu0 %1908
        %s1911 = sor.u32 256, 8
        %1912 = vbcast.lane.b32.xlu0 %v1906, %s1911
        %v1913 = vpop.permute.xlu0 %1912
        %v1914 = vlaneseq
        %v1915 = vshrl.u32 %v1914, 7
        %v1916 = vsub.s32 0, %v1915
        %v1917 = vrot.slane %v1663, %v1916
        %v1918 = vlaneseq
        %v1919 = vshrl.u32 %v1918, 7
        %v1920 = vsub.s32 0, %v1919
        %v1921 = vrot.slane %v1677, %v1920
        %v1922 = vlaneseq
        %v1923 = vshrl.u32 %v1922, 7
        %v1924 = vsub.s32 0, %v1923
        %v1925 = vrot.slane %v1685, %v1924
        %v1926 = vlaneseq
        %v1927 = vshrl.u32 %v1926, 7
        %v1928 = vsub.s32 0, %v1927
        %v1929 = vrot.slane %v1687, %v1928
        %v1930 = vlaneseq
        %v1931 = vshrl.u32 %v1930, 7
        %v1932 = vsub.s32 0, %v1931
        %v1933 = vrot.slane %v1670, %v1932
        %v1934 = vlaneseq
        %v1935 = vshrl.u32 %v1934, 7
        %v1936 = vsub.s32 0, %v1935
        %v1937 = vrot.slane %v1684, %v1936
        %v1938 = vlaneseq
        %v1939 = vshrl.u32 %v1938, 7
        %v1940 = vsub.s32 0, %v1939
        %v1941 = vrot.slane %v1686, %v1940
        %v1942 = vlaneseq
        %v1943 = vshrl.u32 %v1942, 7
        %v1944 = vsub.s32 0, %v1943
        %v1945 = vrot.slane %v1688, %v1944
        %v1946 = vlaneseq
        %v1947 = vshrl.u32 %v1946, 7
        %v1948 = vsub.s32 0, %v1947
        %v1949 = vrot.slane %v1712, %v1948
        %v1950 = vlaneseq
        %v1951 = vshrl.u32 %v1950, 7
        %v1952 = vsub.s32 0, %v1951
        %v1953 = vrot.slane %v1726, %v1952
        %v1954 = vlaneseq
        %v1955 = vshrl.u32 %v1954, 7
        %v1956 = vsub.s32 0, %v1955
        %v1957 = vrot.slane %v1734, %v1956
        %v1958 = vlaneseq
        %v1959 = vshrl.u32 %v1958, 7
        %v1960 = vsub.s32 0, %v1959
        %v1961 = vrot.slane %v1736, %v1960
        %v1962 = vlaneseq
        %v1963 = vshrl.u32 %v1962, 7
        %v1964 = vsub.s32 0, %v1963
        %v1965 = vrot.slane %v1719, %v1964
        %v1966 = vlaneseq
        %v1967 = vshrl.u32 %v1966, 7
        %v1968 = vsub.s32 0, %v1967
        %v1969 = vrot.slane %v1733, %v1968
        %v1970 = vlaneseq
        %v1971 = vshrl.u32 %v1970, 7
        %v1972 = vsub.s32 0, %v1971
        %v1973 = vrot.slane %v1735, %v1972
        %v1974 = vlaneseq
        %v1975 = vshrl.u32 %v1974, 7
        %v1976 = vsub.s32 0, %v1975
        %v1977 = vrot.slane %v1737, %v1976
        %v1994 = vmul.f32 %v1917, %v1744
        %v1995 = vmul.f32 %v1917, %v1748
        %v1996 = vmul.f32 %v1921, %v1755
        %v1997 = vmul.f32 %v1921, %v1759
        %v1998 = vmul.f32 %v1925, %v1766
        %v1999 = vmul.f32 %v1925, %v1770
        %v2000 = vmul.f32 %v1929, %v1777
        %v2001 = vmul.f32 %v1929, %v1781
        %v2002 = vmul.f32 %v1933, %v1788
        %v2003 = vmul.f32 %v1933, %v1792
        %v2004 = vmul.f32 %v1937, %v1799
        %v2005 = vmul.f32 %v1937, %v1803
        %v2006 = vmul.f32 %v1941, %v1810
        %v2007 = vmul.f32 %v1941, %v1814
        %v2008 = vmul.f32 %v1945, %v1821
        %v2009 = vmul.f32 %v1945, %v1825
        %v2010 = vmul.f32 %v1949, %v1832
        %v2011 = vmul.f32 %v1949, %v1836
        %v2012 = vmul.f32 %v1953, %v1843
        %v2013 = vmul.f32 %v1953, %v1847
        %v2014 = vmul.f32 %v1957, %v1854
        %v2015 = vmul.f32 %v1957, %v1858
        %v2016 = vmul.f32 %v1961, %v1865
        %v2017 = vmul.f32 %v1961, %v1869
        %v2018 = vmul.f32 %v1965, %v1876
        %v2019 = vmul.f32 %v1965, %v1880
        %v2020 = vmul.f32 %v1969, %v1887
        %v2021 = vmul.f32 %v1969, %v1891
        %v2022 = vmul.f32 %v1973, %v1898
        %v2023 = vmul.f32 %v1973, %v1902
        %v2024 = vmul.f32 %v1977, %v1909
        %v2025 = vmul.f32 %v1977, %v1913
        %2026 = vst.msk [vmem:[#allocation3] sm:$0xff] %vm906, %v1994
        %2027 = vst.msk [vmem:[#allocation3 + $0x8] sm:$0xff] %vm906, %v1995
        %2028 = vst.msk [vmem:[#allocation3 + $0x10] sm:$0xff] %vm906, %v1996
        %2029 = vst.msk [vmem:[#allocation3 + $0x18] sm:$0xff] %vm906, %v1997
        %2030 = vst.msk [vmem:[#allocation3 + $0x20] sm:$0xff] %vm906, %v1998
        %2031 = vst.msk [vmem:[#allocation3 + $0x28] sm:$0xff] %vm906, %v1999
        %2032 = vst.msk [vmem:[#allocation3 + $0x30] sm:$0xff] %vm906, %v2000
        %2033 = vst.msk [vmem:[#allocation3 + $0x38] sm:$0xff] %vm906, %v2001
        %2034 = vst.msk [vmem:[#allocation3 + $0x40] sm:$0xff] %vm906, %v2002
        %2035 = vst.msk [vmem:[#allocation3 + $0x48] sm:$0xff] %vm906, %v2003
        %2036 = vst.msk [vmem:[#allocation3 + $0x50] sm:$0xff] %vm906, %v2004
        %2037 = vst.msk [vmem:[#allocation3 + $0x58] sm:$0xff] %vm906, %v2005
        %2038 = vst.msk [vmem:[#allocation3 + $0x60] sm:$0xff] %vm906, %v2006
        %2039 = vst.msk [vmem:[#allocation3 + $0x68] sm:$0xff] %vm906, %v2007
        %2040 = vst.msk [vmem:[#allocation3 + $0x70] sm:$0xff] %vm906, %v2008
        %2041 = vst.msk [vmem:[#allocation3 + $0x78] sm:$0xff] %vm906, %v2009
        %2042 = vst.msk [vmem:[#allocation3 + $0x80] sm:$0xff] %vm906, %v2010
        %2043 = vst.msk [vmem:[#allocation3 + $0x88] sm:$0xff] %vm906, %v2011
        %2044 = vst.msk [vmem:[#allocation3 + $0x90] sm:$0xff] %vm906, %v2012
        %2045 = vst.msk [vmem:[#allocation3 + $0x98] sm:$0xff] %vm906, %v2013
        %2046 = vst.msk [vmem:[#allocation3 + $0xa0] sm:$0xff] %vm906, %v2014
        %2047 = vst.msk [vmem:[#allocation3 + $0xa8] sm:$0xff] %vm906, %v2015
        %2048 = vst.msk [vmem:[#allocation3 + $0xb0] sm:$0xff] %vm906, %v2016
        %2049 = vst.msk [vmem:[#allocation3 + $0xb8] sm:$0xff] %vm906, %v2017
        %2050 = vst.msk [vmem:[#allocation3 + $0xc0] sm:$0xff] %vm906, %v2018
        %2051 = vst.msk [vmem:[#allocation3 + $0xc8] sm:$0xff] %vm906, %v2019
        %2052 = vst.msk [vmem:[#allocation3 + $0xd0] sm:$0xff] %vm906, %v2020
        %2053 = vst.msk [vmem:[#allocation3 + $0xd8] sm:$0xff] %vm906, %v2021
        %2054 = vst.msk [vmem:[#allocation3 + $0xe0] sm:$0xff] %vm906, %v2022
        %2055 = vst.msk [vmem:[#allocation3 + $0xe8] sm:$0xff] %vm906, %v2023
        %2056 = vst.msk [vmem:[#allocation3 + $0xf0] sm:$0xff] %vm906, %v2024
        %2057 = vst.msk [vmem:[#allocation3 + $0xf8] sm:$0xff] %vm906, %v2025
        %vm2058 = vcmask 130048
        %2059 = vst.msk [vmem:[#allocation4] sm:$0xff] %vm2058, %v1320
        %2060 = vst.msk [vmem:[#allocation4 + $0x8] sm:$0xff] %vm2058, %v1323
        %v2061 = vld [vmem:[#allocation6] sm:$0xff]
        %v2062 = vld [vmem:[#allocation6 + $0x8] sm:$0xff]
        %v2063 = vld [vmem:[#allocation6 + $0x10] sm:$0xff]
        %v2064 = vld [vmem:[#allocation6 + $0x18] sm:$0xff]
        %v2065 = vsel %vm900, %v2061, 0.0
        %v2066 = vsel %vm900, %v2062, 0.0
        %v2067 = vsel %vm900, %v2063, 0.0
        %v2068 = vsel %vm900, %v2064, 0.0
        %v2069 = vld [vmem:[#allocation2] sm:$0xff]
        %v2070 = vld [vmem:[#allocation2 + $0x8] sm:$0xff]
        %v2071 = vld [vmem:[#allocation2 + $0x80] sm:$0xff]
        %v2072 = vld [vmem:[#allocation2 + $0x88] sm:$0xff]
        %v2073 = vld [vmem:[#allocation3] sm:$0xff]
        %v2074 = vld [vmem:[#allocation3 + $0x8] sm:$0xff]
        %v2075 = vld [vmem:[#allocation3 + $0x80] sm:$0xff]
        %v2076 = vld [vmem:[#allocation3 + $0x88] sm:$0xff]
        %v2077 = vld [vmem:[#allocation4] sm:$0x1]
        %v2078 = vld [vmem:[#allocation4 + $0x8] sm:$0x1]
        %v2079 = vmul.f32 %v2069, %v2065
        %v2080 = vmul.f32 %v2070, %v2066
        %v2081 = vmul.f32 %v2071, %v2067
        %v2082 = vmul.f32 %v2072, %v2068
        %v2083 = vadd.f32 %v2079, %v2073
        %v2084 = vadd.f32 %v2080, %v2074
        %v2085 = vadd.f32 %v2081, %v2075
        %v2086 = vadd.f32 %v2082, %v2076
        %v2087 = vlaneseq
        %v2088 = vshrl.u32 %v2087, 7
        %v2089 = vsub.s32 0, %v2088
        %v2090 = vrot.slane %v2077, %v2089
        %2092 = vbcast.lane.b32.xlu0 %v2090, 256
        %v2093 = vpop.permute.xlu0 %2092
        %s2095 = sor.u32 256, 8
        %2096 = vbcast.lane.b32.xlu0 %v2090, %s2095
        %v2097 = vpop.permute.xlu0 %2096
        %v2098 = vlaneseq
        %v2099 = vshrl.u32 %v2098, 7
        %v2100 = vsub.s32 0, %v2099
        %v2101 = vrot.slane %v2078, %v2100
        %2103 = vbcast.lane.b32.xlu0 %v2101, 256
        %v2104 = vpop.permute.xlu0 %2103
        %s2106 = sor.u32 256, 8
        %2107 = vbcast.lane.b32.xlu0 %v2101, %s2106
        %v2108 = vpop.permute.xlu0 %2107
        %v2109 = vmul.f32 %v2083, %v2093
        %v2110 = vmul.f32 %v2084, %v2097
        %v2111 = vmul.f32 %v2085, %v2104
        %v2112 = vmul.f32 %v2086, %v2108
        %v2113 = vsel %vm906, %v2109, 0.0
        %v2114 = vsel %vm906, %v2110, 0.0
        %v2115 = vadd.f32 %v2113, %v2114
        %v2116 = vrot.slane %v2115, 4
        %v2117 = vadd.f32 %v2115, %v2116
        %v2118 = vrot.slane %v2117, 2
        %v2119 = vadd.f32 %v2117, %v2118
        %v2120 = vrot.slane %v2119, 1
        %v2121 = vadd.f32 %v2119, %v2120
        %v2122 = vsel %vm906, %v2111, 0.0
        %v2123 = vsel %vm906, %v2112, 0.0
        %v2124 = vadd.f32 %v2122, %v2123
        %v2125 = vrot.slane %v2124, 4
        %v2126 = vadd.f32 %v2124, %v2125
        %v2127 = vrot.slane %v2126, 2
        %v2128 = vadd.f32 %v2126, %v2127
        %v2129 = vrot.slane %v2128, 1
        %v2130 = vadd.f32 %v2128, %v2129
        %vm2131 = vcmask 516096
        %2132 = vst.msk [vmem:[#allocation5] sm:$0x1] %vm2131, %v2121
        %2133 = vst.msk [vmem:[#allocation5 + $0x8] sm:$0x1] %vm2131, %v2130
        %s2134 = scalar_lea.vmem [#allocation2], 16
        %v2135 = vld [vmem:[%s2134] sm:$0xff]
        %v2136 = vld [vmem:[%s2134 + $0x8] sm:$0xff]
        %v2137 = vld [vmem:[%s2134 + $0x80] sm:$0xff]
        %v2138 = vld [vmem:[%s2134 + $0x88] sm:$0xff]
        %s2139 = scalar_lea.vmem [#allocation3], 16
        %v2140 = vld [vmem:[%s2139] sm:$0xff]
        %v2141 = vld [vmem:[%s2139 + $0x8] sm:$0xff]
        %v2142 = vld [vmem:[%s2139 + $0x80] sm:$0xff]
        %v2143 = vld [vmem:[%s2139 + $0x88] sm:$0xff]
        %v2144 = vld [vmem:[#allocation4 + $0x1] sm:$0x1]
        %v2145 = vld [vmem:[#allocation4 + $0x9] sm:$0x1]
        %v2146 = vmul.f32 %v2135, %v2083
        %v2147 = vmul.f32 %v2136, %v2084
        %v2148 = vmul.f32 %v2137, %v2085
        %v2149 = vmul.f32 %v2138, %v2086
        %v2150 = vadd.f32 %v2146, %v2140
        %v2151 = vadd.f32 %v2147, %v2141
        %v2152 = vadd.f32 %v2148, %v2142
        %v2153 = vadd.f32 %v2149, %v2143
        %v2154 = vlaneseq
        %v2155 = vshrl.u32 %v2154, 7
        %v2156 = vsub.s32 0, %v2155
        %v2157 = vrot.slane %v2144, %v2156
        %2159 = vbcast.lane.b32.xlu0 %v2157, 256
        %v2160 = vpop.permute.xlu0 %2159
        %s2162 = sor.u32 256, 8
        %2163 = vbcast.lane.b32.xlu0 %v2157, %s2162
        %v2164 = vpop.permute.xlu0 %2163
        %v2165 = vlaneseq
        %v2166 = vshrl.u32 %v2165, 7
        %v2167 = vsub.s32 0, %v2166
        %v2168 = vrot.slane %v2145, %v2167
        %2170 = vbcast.lane.b32.xlu0 %v2168, 256
        %v2171 = vpop.permute.xlu0 %2170
        %s2173 = sor.u32 256, 8
        %2174 = vbcast.lane.b32.xlu0 %v2168, %s2173
        %v2175 = vpop.permute.xlu0 %2174
        %v2176 = vmul.f32 %v2150, %v2160
        %v2177 = vmul.f32 %v2151, %v2164
        %v2178 = vmul.f32 %v2152, %v2171
        %v2179 = vmul.f32 %v2153, %v2175
        %v2180 = vsel %vm906, %v2176, 0.0
        %v2181 = vsel %vm906, %v2177, 0.0
        %v2182 = vadd.f32 %v2180, %v2181
        %v2183 = vrot.slane %v2182, 4
        %v2184 = vadd.f32 %v2182, %v2183
        %v2185 = vrot.slane %v2184, 2
        %v2186 = vadd.f32 %v2184, %v2185
        %v2187 = vrot.slane %v2186, 1
        %v2188 = vadd.f32 %v2186, %v2187
        %v2189 = vsel %vm906, %v2178, 0.0
        %v2190 = vsel %vm906, %v2179, 0.0
        %v2191 = vadd.f32 %v2189, %v2190
        %v2192 = vrot.slane %v2191, 4
        %v2193 = vadd.f32 %v2191, %v2192
        %v2194 = vrot.slane %v2193, 2
        %v2195 = vadd.f32 %v2193, %v2194
        %v2196 = vrot.slane %v2195, 1
        %v2197 = vadd.f32 %v2195, %v2196
        %2198 = vst.msk [vmem:[#allocation5 + $0x1] sm:$0x1] %vm2131, %v2188
        %2199 = vst.msk [vmem:[#allocation5 + $0x9] sm:$0x1] %vm2131, %v2197
        %s2200 = scalar_lea.vmem [#allocation2], 32
        %v2201 = vld [vmem:[%s2200] sm:$0xff]
        %v2202 = vld [vmem:[%s2200 + $0x8] sm:$0xff]
        %v2203 = vld [vmem:[%s2200 + $0x80] sm:$0xff]
        %v2204 = vld [vmem:[%s2200 + $0x88] sm:$0xff]
        %s2205 = scalar_lea.vmem [#allocation3], 32
        %v2206 = vld [vmem:[%s2205] sm:$0xff]
        %v2207 = vld [vmem:[%s2205 + $0x8] sm:$0xff]
        %v2208 = vld [vmem:[%s2205 + $0x80] sm:$0xff]
        %v2209 = vld [vmem:[%s2205 + $0x88] sm:$0xff]
        %v2210 = vld [vmem:[#allocation4 + $0x2] sm:$0x1]
        %v2211 = vld [vmem:[#allocation4 + $0xa] sm:$0x1]
        %v2212 = vmul.f32 %v2201, %v2150
        %v2213 = vmul.f32 %v2202, %v2151
        %v2214 = vmul.f32 %v2203, %v2152
        %v2215 = vmul.f32 %v2204, %v2153
        %v2216 = vadd.f32 %v2212, %v2206
        %v2217 = vadd.f32 %v2213, %v2207
        %v2218 = vadd.f32 %v2214, %v2208
        %v2219 = vadd.f32 %v2215, %v2209
        %v2220 = vlaneseq
        %v2221 = vshrl.u32 %v2220, 7
        %v2222 = vsub.s32 0, %v2221
        %v2223 = vrot.slane %v2210, %v2222
        %2225 = vbcast.lane.b32.xlu0 %v2223, 256
        %v2226 = vpop.permute.xlu0 %2225
        %s2228 = sor.u32 256, 8
        %2229 = vbcast.lane.b32.xlu0 %v2223, %s2228
        %v2230 = vpop.permute.xlu0 %2229
        %v2231 = vlaneseq
        %v2232 = vshrl.u32 %v2231, 7
        %v2233 = vsub.s32 0, %v2232
        %v2234 = vrot.slane %v2211, %v2233
        %2236 = vbcast.lane.b32.xlu0 %v2234, 256
        %v2237 = vpop.permute.xlu0 %2236
        %s2239 = sor.u32 256, 8
        %2240 = vbcast.lane.b32.xlu0 %v2234, %s2239
        %v2241 = vpop.permute.xlu0 %2240
        %v2242 = vmul.f32 %v2216, %v2226
        %v2243 = vmul.f32 %v2217, %v2230
        %v2244 = vmul.f32 %v2218, %v2237
        %v2245 = vmul.f32 %v2219, %v2241
        %v2246 = vsel %vm906, %v2242, 0.0
        %v2247 = vsel %vm906, %v2243, 0.0
        %v2248 = vadd.f32 %v2246, %v2247
        %v2249 = vrot.slane %v2248, 4
        %v2250 = vadd.f32 %v2248, %v2249
        %v2251 = vrot.slane %v2250, 2
        %v2252 = vadd.f32 %v2250, %v2251
        %v2253 = vrot.slane %v2252, 1
        %v2254 = vadd.f32 %v2252, %v2253
        %v2255 = vsel %vm906, %v2244, 0.0
        %v2256 = vsel %vm906, %v2245, 0.0
        %v2257 = vadd.f32 %v2255, %v2256
        %v2258 = vrot.slane %v2257, 4
        %v2259 = vadd.f32 %v2257, %v2258
        %v2260 = vrot.slane %v2259, 2
        %v2261 = vadd.f32 %v2259, %v2260
        %v2262 = vrot.slane %v2261, 1
        %v2263 = vadd.f32 %v2261, %v2262
        %2264 = vst.msk [vmem:[#allocation5 + $0x2] sm:$0x1] %vm2131, %v2254
        %2265 = vst.msk [vmem:[#allocation5 + $0xa] sm:$0x1] %vm2131, %v2263
        %s2266 = scalar_lea.vmem [#allocation2], 48
        %v2267 = vld [vmem:[%s2266] sm:$0xff]
        %v2268 = vld [vmem:[%s2266 + $0x8] sm:$0xff]
        %v2269 = vld [vmem:[%s2266 + $0x80] sm:$0xff]
        %v2270 = vld [vmem:[%s2266 + $0x88] sm:$0xff]
        %s2271 = scalar_lea.vmem [#allocation3], 48
        %v2272 = vld [vmem:[%s2271] sm:$0xff]
        %v2273 = vld [vmem:[%s2271 + $0x8] sm:$0xff]
        %v2274 = vld [vmem:[%s2271 + $0x80] sm:$0xff]
        %v2275 = vld [vmem:[%s2271 + $0x88] sm:$0xff]
        %v2276 = vld [vmem:[#allocation4 + $0x3] sm:$0x1]
        %v2277 = vld [vmem:[#allocation4 + $0xb] sm:$0x1]
        %v2278 = vmul.f32 %v2267, %v2216
        %v2279 = vmul.f32 %v2268, %v2217
        %v2280 = vmul.f32 %v2269, %v2218
        %v2281 = vmul.f32 %v2270, %v2219
        %v2282 = vadd.f32 %v2278, %v2272
        %v2283 = vadd.f32 %v2279, %v2273
        %v2284 = vadd.f32 %v2280, %v2274
        %v2285 = vadd.f32 %v2281, %v2275
        %v2286 = vlaneseq
        %v2287 = vshrl.u32 %v2286, 7
        %v2288 = vsub.s32 0, %v2287
        %v2289 = vrot.slane %v2276, %v2288
        %2291 = vbcast.lane.b32.xlu0 %v2289, 256
        %v2292 = vpop.permute.xlu0 %2291
        %s2294 = sor.u32 256, 8
        %2295 = vbcast.lane.b32.xlu0 %v2289, %s2294
        %v2296 = vpop.permute.xlu0 %2295
        %v2297 = vlaneseq
        %v2298 = vshrl.u32 %v2297, 7
        %v2299 = vsub.s32 0, %v2298
        %v2300 = vrot.slane %v2277, %v2299
        %2302 = vbcast.lane.b32.xlu0 %v2300, 256
        %v2303 = vpop.permute.xlu0 %2302
        %s2305 = sor.u32 256, 8
        %2306 = vbcast.lane.b32.xlu0 %v2300, %s2305
        %v2307 = vpop.permute.xlu0 %2306
        %v2308 = vmul.f32 %v2282, %v2292
        %v2309 = vmul.f32 %v2283, %v2296
        %v2310 = vmul.f32 %v2284, %v2303
        %v2311 = vmul.f32 %v2285, %v2307
        %v2312 = vsel %vm906, %v2308, 0.0
        %v2313 = vsel %vm906, %v2309, 0.0
        %v2314 = vadd.f32 %v2312, %v2313
        %v2315 = vrot.slane %v2314, 4
        %v2316 = vadd.f32 %v2314, %v2315
        %v2317 = vrot.slane %v2316, 2
        %v2318 = vadd.f32 %v2316, %v2317
        %v2319 = vrot.slane %v2318, 1
        %v2320 = vadd.f32 %v2318, %v2319
        %v2321 = vsel %vm906, %v2310, 0.0
        %v2322 = vsel %vm906, %v2311, 0.0
        %v2323 = vadd.f32 %v2321, %v2322
        %v2324 = vrot.slane %v2323, 4
        %v2325 = vadd.f32 %v2323, %v2324
        %v2326 = vrot.slane %v2325, 2
        %v2327 = vadd.f32 %v2325, %v2326
        %v2328 = vrot.slane %v2327, 1
        %v2329 = vadd.f32 %v2327, %v2328
        %2330 = vst.msk [vmem:[#allocation5 + $0x3] sm:$0x1] %vm2131, %v2320
        %2331 = vst.msk [vmem:[#allocation5 + $0xb] sm:$0x1] %vm2131, %v2329
        %s2332 = scalar_lea.vmem [#allocation2], 64
        %v2333 = vld [vmem:[%s2332] sm:$0xff]
        %v2334 = vld [vmem:[%s2332 + $0x8] sm:$0xff]
        %v2335 = vld [vmem:[%s2332 + $0x80] sm:$0xff]
        %v2336 = vld [vmem:[%s2332 + $0x88] sm:$0xff]
        %s2337 = scalar_lea.vmem [#allocation3], 64
        %v2338 = vld [vmem:[%s2337] sm:$0xff]
        %v2339 = vld [vmem:[%s2337 + $0x8] sm:$0xff]
        %v2340 = vld [vmem:[%s2337 + $0x80] sm:$0xff]
        %v2341 = vld [vmem:[%s2337 + $0x88] sm:$0xff]
        %v2342 = vld [vmem:[#allocation4 + $0x4] sm:$0x1]
        %v2343 = vld [vmem:[#allocation4 + $0xc] sm:$0x1]
        %v2344 = vmul.f32 %v2333, %v2282
        %v2345 = vmul.f32 %v2334, %v2283
        %v2346 = vmul.f32 %v2335, %v2284
        %v2347 = vmul.f32 %v2336, %v2285
        %v2348 = vadd.f32 %v2344, %v2338
        %v2349 = vadd.f32 %v2345, %v2339
        %v2350 = vadd.f32 %v2346, %v2340
        %v2351 = vadd.f32 %v2347, %v2341
        %v2352 = vlaneseq
        %v2353 = vshrl.u32 %v2352, 7
        %v2354 = vsub.s32 0, %v2353
        %v2355 = vrot.slane %v2342, %v2354
        %2357 = vbcast.lane.b32.xlu0 %v2355, 256
        %v2358 = vpop.permute.xlu0 %2357
        %s2360 = sor.u32 256, 8
        %2361 = vbcast.lane.b32.xlu0 %v2355, %s2360
        %v2362 = vpop.permute.xlu0 %2361
        %v2363 = vlaneseq
        %v2364 = vshrl.u32 %v2363, 7
        %v2365 = vsub.s32 0, %v2364
        %v2366 = vrot.slane %v2343, %v2365
        %2368 = vbcast.lane.b32.xlu0 %v2366, 256
        %v2369 = vpop.permute.xlu0 %2368
        %s2371 = sor.u32 256, 8
        %2372 = vbcast.lane.b32.xlu0 %v2366, %s2371
        %v2373 = vpop.permute.xlu0 %2372
        %v2374 = vmul.f32 %v2348, %v2358
        %v2375 = vmul.f32 %v2349, %v2362
        %v2376 = vmul.f32 %v2350, %v2369
        %v2377 = vmul.f32 %v2351, %v2373
        %v2378 = vsel %vm906, %v2374, 0.0
        %v2379 = vsel %vm906, %v2375, 0.0
        %v2380 = vadd.f32 %v2378, %v2379
        %v2381 = vrot.slane %v2380, 4
        %v2382 = vadd.f32 %v2380, %v2381
        %v2383 = vrot.slane %v2382, 2
        %v2384 = vadd.f32 %v2382, %v2383
        %v2385 = vrot.slane %v2384, 1
        %v2386 = vadd.f32 %v2384, %v2385
        %v2387 = vsel %vm906, %v2376, 0.0
        %v2388 = vsel %vm906, %v2377, 0.0
        %v2389 = vadd.f32 %v2387, %v2388
        %v2390 = vrot.slane %v2389, 4
        %v2391 = vadd.f32 %v2389, %v2390
        %v2392 = vrot.slane %v2391, 2
        %v2393 = vadd.f32 %v2391, %v2392
        %v2394 = vrot.slane %v2393, 1
        %v2395 = vadd.f32 %v2393, %v2394
        %2396 = vst.msk [vmem:[#allocation5 + $0x4] sm:$0x1] %vm2131, %v2386
        %2397 = vst.msk [vmem:[#allocation5 + $0xc] sm:$0x1] %vm2131, %v2395
        %s2398 = scalar_lea.vmem [#allocation2], 80
        %v2399 = vld [vmem:[%s2398] sm:$0xff]
        %v2400 = vld [vmem:[%s2398 + $0x8] sm:$0xff]
        %v2401 = vld [vmem:[%s2398 + $0x80] sm:$0xff]
        %v2402 = vld [vmem:[%s2398 + $0x88] sm:$0xff]
        %s2403 = scalar_lea.vmem [#allocation3], 80
        %v2404 = vld [vmem:[%s2403] sm:$0xff]
        %v2405 = vld [vmem:[%s2403 + $0x8] sm:$0xff]
        %v2406 = vld [vmem:[%s2403 + $0x80] sm:$0xff]
        %v2407 = vld [vmem:[%s2403 + $0x88] sm:$0xff]
        %v2408 = vld [vmem:[#allocation4 + $0x5] sm:$0x1]
        %v2409 = vld [vmem:[#allocation4 + $0xd] sm:$0x1]
        %v2410 = vmul.f32 %v2399, %v2348
        %v2411 = vmul.f32 %v2400, %v2349
        %v2412 = vmul.f32 %v2401, %v2350
        %v2413 = vmul.f32 %v2402, %v2351
        %v2414 = vadd.f32 %v2410, %v2404
        %v2415 = vadd.f32 %v2411, %v2405
        %v2416 = vadd.f32 %v2412, %v2406
        %v2417 = vadd.f32 %v2413, %v2407
        %v2418 = vlaneseq
        %v2419 = vshrl.u32 %v2418, 7
        %v2420 = vsub.s32 0, %v2419
        %v2421 = vrot.slane %v2408, %v2420
        %2423 = vbcast.lane.b32.xlu0 %v2421, 256
        %v2424 = vpop.permute.xlu0 %2423
        %s2426 = sor.u32 256, 8
        %2427 = vbcast.lane.b32.xlu0 %v2421, %s2426
        %v2428 = vpop.permute.xlu0 %2427
        %v2429 = vlaneseq
        %v2430 = vshrl.u32 %v2429, 7
        %v2431 = vsub.s32 0, %v2430
        %v2432 = vrot.slane %v2409, %v2431
        %2434 = vbcast.lane.b32.xlu0 %v2432, 256
        %v2435 = vpop.permute.xlu0 %2434
        %s2437 = sor.u32 256, 8
        %2438 = vbcast.lane.b32.xlu0 %v2432, %s2437
        %v2439 = vpop.permute.xlu0 %2438
        %v2440 = vmul.f32 %v2414, %v2424
        %v2441 = vmul.f32 %v2415, %v2428
        %v2442 = vmul.f32 %v2416, %v2435
        %v2443 = vmul.f32 %v2417, %v2439
        %v2444 = vsel %vm906, %v2440, 0.0
        %v2445 = vsel %vm906, %v2441, 0.0
        %v2446 = vadd.f32 %v2444, %v2445
        %v2447 = vrot.slane %v2446, 4
        %v2448 = vadd.f32 %v2446, %v2447
        %v2449 = vrot.slane %v2448, 2
        %v2450 = vadd.f32 %v2448, %v2449
        %v2451 = vrot.slane %v2450, 1
        %v2452 = vadd.f32 %v2450, %v2451
        %v2453 = vsel %vm906, %v2442, 0.0
        %v2454 = vsel %vm906, %v2443, 0.0
        %v2455 = vadd.f32 %v2453, %v2454
        %v2456 = vrot.slane %v2455, 4
        %v2457 = vadd.f32 %v2455, %v2456
        %v2458 = vrot.slane %v2457, 2
        %v2459 = vadd.f32 %v2457, %v2458
        %v2460 = vrot.slane %v2459, 1
        %v2461 = vadd.f32 %v2459, %v2460
        %2462 = vst.msk [vmem:[#allocation5 + $0x5] sm:$0x1] %vm2131, %v2452
        %2463 = vst.msk [vmem:[#allocation5 + $0xd] sm:$0x1] %vm2131, %v2461
        %s2464 = scalar_lea.vmem [#allocation2], 96
        %v2465 = vld [vmem:[%s2464] sm:$0xff]
        %v2466 = vld [vmem:[%s2464 + $0x8] sm:$0xff]
        %v2467 = vld [vmem:[%s2464 + $0x80] sm:$0xff]
        %v2468 = vld [vmem:[%s2464 + $0x88] sm:$0xff]
        %s2469 = scalar_lea.vmem [#allocation3], 96
        %v2470 = vld [vmem:[%s2469] sm:$0xff]
        %v2471 = vld [vmem:[%s2469 + $0x8] sm:$0xff]
        %v2472 = vld [vmem:[%s2469 + $0x80] sm:$0xff]
        %v2473 = vld [vmem:[%s2469 + $0x88] sm:$0xff]
        %v2474 = vld [vmem:[#allocation4 + $0x6] sm:$0x1]
        %v2475 = vld [vmem:[#allocation4 + $0xe] sm:$0x1]
        %v2476 = vmul.f32 %v2465, %v2414
        %v2477 = vmul.f32 %v2466, %v2415
        %v2478 = vmul.f32 %v2467, %v2416
        %v2479 = vmul.f32 %v2468, %v2417
        %v2480 = vadd.f32 %v2476, %v2470
        %v2481 = vadd.f32 %v2477, %v2471
        %v2482 = vadd.f32 %v2478, %v2472
        %v2483 = vadd.f32 %v2479, %v2473
        %v2484 = vlaneseq
        %v2485 = vshrl.u32 %v2484, 7
        %v2486 = vsub.s32 0, %v2485
        %v2487 = vrot.slane %v2474, %v2486
        %2489 = vbcast.lane.b32.xlu0 %v2487, 256
        %v2490 = vpop.permute.xlu0 %2489
        %s2492 = sor.u32 256, 8
        %2493 = vbcast.lane.b32.xlu0 %v2487, %s2492
        %v2494 = vpop.permute.xlu0 %2493
        %v2495 = vlaneseq
        %v2496 = vshrl.u32 %v2495, 7
        %v2497 = vsub.s32 0, %v2496
        %v2498 = vrot.slane %v2475, %v2497
        %2500 = vbcast.lane.b32.xlu0 %v2498, 256
        %v2501 = vpop.permute.xlu0 %2500
        %s2503 = sor.u32 256, 8
        %2504 = vbcast.lane.b32.xlu0 %v2498, %s2503
        %v2505 = vpop.permute.xlu0 %2504
        %v2506 = vmul.f32 %v2480, %v2490
        %v2507 = vmul.f32 %v2481, %v2494
        %v2508 = vmul.f32 %v2482, %v2501
        %v2509 = vmul.f32 %v2483, %v2505
        %v2510 = vsel %vm906, %v2506, 0.0
        %v2511 = vsel %vm906, %v2507, 0.0
        %v2512 = vadd.f32 %v2510, %v2511
        %v2513 = vrot.slane %v2512, 4
        %v2514 = vadd.f32 %v2512, %v2513
        %v2515 = vrot.slane %v2514, 2
        %v2516 = vadd.f32 %v2514, %v2515
        %v2517 = vrot.slane %v2516, 1
        %v2518 = vadd.f32 %v2516, %v2517
        %v2519 = vsel %vm906, %v2508, 0.0
        %v2520 = vsel %vm906, %v2509, 0.0
        %v2521 = vadd.f32 %v2519, %v2520
        %v2522 = vrot.slane %v2521, 4
        %v2523 = vadd.f32 %v2521, %v2522
        %v2524 = vrot.slane %v2523, 2
        %v2525 = vadd.f32 %v2523, %v2524
        %v2526 = vrot.slane %v2525, 1
        %v2527 = vadd.f32 %v2525, %v2526
        %2528 = vst.msk [vmem:[#allocation5 + $0x6] sm:$0x1] %vm2131, %v2518
        %2529 = vst.msk [vmem:[#allocation5 + $0xe] sm:$0x1] %vm2131, %v2527
        %s2530 = scalar_lea.vmem [#allocation2], 112
        %v2531 = vld [vmem:[%s2530] sm:$0xff]
        %v2532 = vld [vmem:[%s2530 + $0x8] sm:$0xff]
        %v2533 = vld [vmem:[%s2530 + $0x80] sm:$0xff]
        %v2534 = vld [vmem:[%s2530 + $0x88] sm:$0xff]
        %s2535 = scalar_lea.vmem [#allocation3], 112
        %v2536 = vld [vmem:[%s2535] sm:$0xff]
        %v2537 = vld [vmem:[%s2535 + $0x8] sm:$0xff]
        %v2538 = vld [vmem:[%s2535 + $0x80] sm:$0xff]
        %v2539 = vld [vmem:[%s2535 + $0x88] sm:$0xff]
        %v2540 = vld [vmem:[#allocation4 + $0x7] sm:$0x1]
        %v2541 = vld [vmem:[#allocation4 + $0xf] sm:$0x1]
        %v2542 = vmul.f32 %v2531, %v2480
        %v2543 = vmul.f32 %v2532, %v2481
        %v2544 = vmul.f32 %v2533, %v2482
        %v2545 = vmul.f32 %v2534, %v2483
        %v2546 = vadd.f32 %v2542, %v2536
        %v2547 = vadd.f32 %v2543, %v2537
        %v2548 = vadd.f32 %v2544, %v2538
        %v2549 = vadd.f32 %v2545, %v2539
        %v2550 = vlaneseq
        %v2551 = vshrl.u32 %v2550, 7
        %v2552 = vsub.s32 0, %v2551
        %v2553 = vrot.slane %v2540, %v2552
        %2555 = vbcast.lane.b32.xlu0 %v2553, 256
        %v2556 = vpop.permute.xlu0 %2555
        %s2558 = sor.u32 256, 8
        %2559 = vbcast.lane.b32.xlu0 %v2553, %s2558
        %v2560 = vpop.permute.xlu0 %2559
        %v2561 = vlaneseq
        %v2562 = vshrl.u32 %v2561, 7
        %v2563 = vsub.s32 0, %v2562
        %v2564 = vrot.slane %v2541, %v2563
        %2566 = vbcast.lane.b32.xlu0 %v2564, 256
        %v2567 = vpop.permute.xlu0 %2566
        %s2569 = sor.u32 256, 8
        %2570 = vbcast.lane.b32.xlu0 %v2564, %s2569
        %v2571 = vpop.permute.xlu0 %2570
        %v2572 = vmul.f32 %v2546, %v2556
        %v2573 = vmul.f32 %v2547, %v2560
        %v2574 = vmul.f32 %v2548, %v2567
        %v2575 = vmul.f32 %v2549, %v2571
        %v2576 = vsel %vm906, %v2572, 0.0
        %v2577 = vsel %vm906, %v2573, 0.0
        %v2578 = vadd.f32 %v2576, %v2577
        %v2579 = vrot.slane %v2578, 4
        %v2580 = vadd.f32 %v2578, %v2579
        %v2581 = vrot.slane %v2580, 2
        %v2582 = vadd.f32 %v2580, %v2581
        %v2583 = vrot.slane %v2582, 1
        %v2584 = vadd.f32 %v2582, %v2583
        %v2585 = vsel %vm906, %v2574, 0.0
        %v2586 = vsel %vm906, %v2575, 0.0
        %v2587 = vadd.f32 %v2585, %v2586
        %v2588 = vrot.slane %v2587, 4
        %v2589 = vadd.f32 %v2587, %v2588
        %v2590 = vrot.slane %v2589, 2
        %v2591 = vadd.f32 %v2589, %v2590
        %v2592 = vrot.slane %v2591, 1
        %v2593 = vadd.f32 %v2591, %v2592
        %2594 = vst.msk [vmem:[#allocation5 + $0x7] sm:$0x1] %vm2131, %v2584
        %2595 = vst.msk [vmem:[#allocation5 + $0xf] sm:$0x1] %vm2131, %v2593
        %2596 = vst.msk [vmem:[#allocation6] sm:$0xff] %vm906, %v2546
        %2597 = vst.msk [vmem:[#allocation6 + $0x8] sm:$0xff] %vm906, %v2547
        %2598 = vst.msk [vmem:[#allocation6 + $0x10] sm:$0xff] %vm906, %v2548
        %2599 = vst.msk [vmem:[#allocation6 + $0x18] sm:$0xff] %vm906, %v2549
        %v2600 = vld [vmem:[#allocation5] sm:$0xff]
        %v2601 = vld [vmem:[#allocation5 + $0x8] sm:$0xff]
        %v2602 = vld [vmem:[%s731] sm:$0x1]
        %v2604 = vlaneseq
        %v2605 = vshrl.u32 %v2604, 7
        %v2606 = vsub.s32 0, %v2605
        %v2607 = vrot.slane %v2602, %v2606
        %v2609 = vmul.f32 %v970, %v2607
        %v2610 = vmul.f32 %v971, %v2607
        %v2611 = vadd.f32 %v2600, %v2609
        %v2612 = vadd.f32 %v2601, %v2610
        %v2613 = vxor.u32 %v889, 2147483648
        %v2614 = vxor.u32 %v892, 2147483648
        %v2615 = vmul.f32 %v2613, 1.442695
        %v2616 = vpow.pop %v2615
        %v2617 = vmul.f32 %v2614, 1.442695
        %v2618 = vpow.pop %v2617
        %v2619 = vadd.f32 %v2616, 1.0
        %v2620 = vadd.f32 %v2618, 1.0
        %v2621 = vrcp.pop %v2619
        %v2622 = vmul.f32 1.0, %v2621
        %v2623 = vrcp.pop %v2620
        %v2624 = vmul.f32 1.0, %v2623
        %v2625 = vmul.f32 %v889, %v2622
        %v2626 = vmul.f32 %v892, %v2624
        %v2627 = vmul.f32 %v2611, %v2625
        %v2628 = vmul.f32 %v2612, %v2626
        %v2629 = vpack.c.bf16 %v2628, %v2627
        %v2630 = vld [vmem:[%s736] sm:$0xf]
        %v2631 = vld [vmem:[%s736 + $0x4] sm:$0xf]
        %v2632 = vld [vmem:[%s736 + $0x8] sm:$0xf]
        %v2633 = vld [vmem:[%s736 + $0xc] sm:$0xf]
        %v2634 = vld [vmem:[%s736 + $0x10] sm:$0xf]
        %v2635 = vld [vmem:[%s736 + $0x14] sm:$0xf]
        %v2636 = vld [vmem:[%s736 + $0x18] sm:$0xf]
        %v2637 = vld [vmem:[%s736 + $0x1c] sm:$0xf]
        %v2646 = vunpack.c.l.b16 %v2630
        %v2647 = vunpack.c.l.b16 %v2631
        %v2648 = vunpack.c.l.b16 %v2632
        %v2649 = vunpack.c.l.b16 %v2633
        %v2650 = vunpack.c.l.b16 %v2634
        %v2651 = vunpack.c.l.b16 %v2635
        %v2652 = vunpack.c.l.b16 %v2636
        %v2653 = vunpack.c.l.b16 %v2637
        %v2654 = vpack.c.b16 %v2647, %v2646
        %v2655 = vpack.c.b16 %v2649, %v2648
        %v2656 = vpack.c.b16 %v2651, %v2650
        %v2657 = vpack.c.b16 %v2653, %v2652
        %v2663 = vsel %vm906, %v2629, 0
        %2665 = vmatprep.subr.bf16.mxu0 0
        %2666 = vmatpush1.bf16.msra.mxu0 %v2654
        %2667 = vmatprep.subr.bf16.mxu0 0
        %2668 = vmatpush1.bf16.msra.mxu0 %v2655
        %2669 = vmatprep.subr.bf16.mxu0 0
        %2670 = vmatpush1.bf16.msra.mxu0 %v2656
        %2671 = vmatprep.subr.bf16.mxu0 0
        %2672 = vmatpush1.bf16.msra.mxu0 %v2657
        %2673 = vmatprep.subr.bf16.mxu0 0
        %2674 = vmatpush1.bf16.msra.mxu0 0
        %2675 = vmatprep.subr.bf16.mxu0 0
        %2676 = vmatpush1.bf16.msra.mxu0 0
        %2677 = vmatprep.subr.bf16.mxu0 0
        %2678 = vmatpush1.bf16.msra.mxu0 0
        %2679 = vmatprep.subr.bf16.mxu0 0
        %2680 = vmatpush1.bf16.msra.mxu0 0
        %2681 = vmatprep.subr.bf16.mxu0 0
        %2682 = vmatpush1.bf16.msra.mxu0 0
        %2683 = vmatprep.subr.bf16.mxu0 0
        %2684 = vmatpush1.bf16.msra.mxu0 0
        %2685 = vmatprep.subr.bf16.mxu0 0
        %2686 = vmatpush1.bf16.msra.mxu0 0
        %2687 = vmatprep.subr.bf16.mxu0 0
        %2688 = vmatpush1.bf16.msra.mxu0 0
        %2689 = vmatprep.subr.bf16.mxu0 0
        %2690 = vmatpush1.bf16.msra.mxu0 0
        %2691 = vmatprep.subr.bf16.mxu0 0
        %2692 = vmatpush1.bf16.msra.mxu0 0
        %2693 = vmatprep.subr.bf16.mxu0 0
        %2694 = vmatpush1.bf16.msra.mxu0 0
        %2695 = vmatprep.subr.bf16.mxu0 0
        %2696 = vmatpush1.bf16.msra.mxu0 0
        %2697 = vmatprep.mubr.bf16.mxu0 0
        %2698 = vmatmul.mubr.bf16.gmra.mrb[0].mxu0 %v2663
        %v2699 = vpop.f32.mrb[0].mxu0
        %v2700 = vadd.f32 0.0, %v2699
        %v2701 = vpop.f32.mrb[0].mxu0
        %v2702 = vpop.f32.mrb[0].mxu0
        %v2703 = vadd.f32 0.0, %v2702
        %v2704 = vpop.f32.mrb[0].mxu0
        %2705 = vdwg.mxu0
        %v2706 = vadd.f32 %v2700, %v748
        %v2707 = vadd.f32 %v2703, %v749
        %2708 = vst.msk [vmem:[%s742] sm:$0xff] %vm753, %v2706
        %2709 = vst.msk [vmem:[%s742 + $0x10] sm:$0xff] %vm753, %v2707
        // Predicated region
        $region115: #{tpu_custom_call.1} parent=109 // pred_check
          %p2710 = pneg %p415
        $region116: #{tpu_custom_call.1} parent=109 // pred_check_branch
          %2712 = sbr.rel (%p2710) target = $region118
        $region117: #{tpu_custom_call.1} parent=109 // pred_region
          %s2714 = ssub.s32 512, 512
          %2715 = vsyncadd [#allocation10], %s2714
          %s2716 = sshll.u32 [#allocation9], 4
          %s2717 = int_to_ptr.vmem [resolvable:$true] %s2716
          %2722 = dma.vmem_to_hbm [thread:$0]  %s2717, 512, %s14, [#allocation10], 128, 128, 8
        $region118: #{tpu_custom_call.1} parent=109 // pred_fallthru
          _
        // Predicated region
        $region119: #{tpu_custom_call.1} parent=109 // pred_check
          %p2723 = pneg %p415
        $region120: #{tpu_custom_call.1} parent=109 // pred_check_branch
          %2725 = sbr.rel (%p2723) target = $region122
        $region121: #{tpu_custom_call.1} parent=109 // pred_region
          %2726 = dma.done [#allocation10], 512
        $region122: #{tpu_custom_call.1} parent=109 // pred_fallthru
          _
      $region110: #{tpu_custom_call.1} parent=5 // pred_fallthru
        _
      %p2727 = scmp.le.s32.totalorder 2, %s21
      // Predicated region
      $region123: #{tpu_custom_call.1} parent=5 // pred_check
        %p2728 = pneg %p2727
      $region124: #{tpu_custom_call.1} parent=5 // pred_check_branch
        %2730 = sbr.rel (%p2728) target = $region126
      $region125: #{tpu_custom_call.1} parent=5 // pred_region
        %s2731 = ssub.s32 %s21, 2
      $region126: #{tpu_custom_call.1} parent=5 // pred_fallthru
        _
    $region6: #{tpu_custom_call.1} parent=1 // loop_footer
      %s25 = sadd.s32 1, %s21
    $region7: #{tpu_custom_call.1} parent=1 // loop_footer_branch
      %20 = sbr.rel target = $region3
    $region8: #{tpu_custom_call.1} parent=1 // loop_exit
      _
    %2732 = vsyncpa [#allocation10], 1
    %s2733 = scalar_lea.sflag [#allocation10], 1
    %2734 = vsyncpa %s2733, 1

</llo_original>
